<compile_context>
chip_gen: v7x
topology: tpu7x:2x2x1
jax: 0.10.0
libtpu: 0.0.40
codegen_flags: <defaults>
</compile_context>

<pallas_src>
import jax
import jax.numpy as jnp
from jax.experimental import pallas as pl
from jax.experimental.pallas import tpu as pltpu

# ----------------------------------------------------------------------------
# Hyper-parameters consistent with forward(): embed_dim % 30 == 0,
# maxlen % sample == 0, maxlen // sample >= max(filter_sizes) = 40
# ----------------------------------------------------------------------------
B            = 2
MAXLEN       = 80
SAMPLE       = 2
EMBED_DIM    = 60
NUM_CLASS    = 5
KERNEL_NUM   = 128
KERNEL_NUM_V = 16
F20, F40     = 20, 40          # horizontal filter sizes
FV2, FV4     = 2, 4            # vertical filter sizes

L2      = MAXLEN // SAMPLE     # 40   horizontal length after sample-avg
LV      = 30                   # vertical length (embed grouped into 30)
LOUT_H  = L2 - F20 + 1         # 21   output positions of the packed horizontal conv
LOUT_V  = LV - FV2 + 1         # 29   output positions of the packed vertical conv
XLEN    = LOUT_H + F40 - 1     # 60   zero-padded horizontal length
VLEN    = LOUT_V + FV4 - 1     # 32   zero-padded vertical length
KH_RAW  = F20 * EMBED_DIM      # 1200 contraction length of each horizontal half-matmul
KT      = 2                    # K-blocked grid steps (weight-DMA / compute overlap)
KH      = 1280                 # 1200 padded so KH // KT = 640 is 128-lane aligned
KV      = FV4 * MAXLEN         # 320  vertical im2col contraction length
COUT_H  = 2 * KERNEL_NUM       # 256  packed horizontal channels (fills one v6e N-tile)
COUT_V  = 2 * KERNEL_NUM_V     # 32   packed vertical channels
NEG     = -1e30                # mask value (relu -> 0, never wins the max-pool)


# ----------------------------------------------------------------------------
# The single fused kernel: K-blocked horizontal im2col matmuls into fp32 scratch,
# then (last step) vertical matmul, bias/mask/relu/max-pool, VPU dense, log-softmax.
# ----------------------------------------------------------------------------
def fused_kernel(p1_ref, w1_ref, p2_ref, w2_ref,
                 bh_ref, mh40_ref,
                 pv_ref, wv_ref, bv_ref, mv_ref,
                 wd20_ref, wd40_ref, wdv_ref, bd_ref,
                 out_ref, acc1_ref, acc2_ref):
    k = pl.program_id(0)
    dn = (((2,), (0,)), ((), ()))          # contract last dim of lhs with first of rhs

    @pl.when(k == 0)
    def _init():
        acc1_ref[...] = jnp.zeros_like(acc1_ref)
        acc2_ref[...] = jnp.zeros_like(acc2_ref)

    # ---- packed horizontal im2col matmuls: bf16 operands, fp32 accumulation ----
    # acc1: taps 0..19, N=256 (f=20 head cols 0:128, f=40 head cols 128:256)
    # acc2: taps 20..39, N=128 (f=40 head only — f=20's zero taps never run)
    acc1_ref[...] += jax.lax.dot_general(p1_ref[...], w1_ref[...],
                                         dimension_numbers=dn,
                                         preferred_element_type=jnp.float32)
    acc2_ref[...] += jax.lax.dot_general(p2_ref[...], w2_ref[...],
                                         dimension_numbers=dn,
                                         preferred_element_type=jnp.float32)

    @pl.when(k == pl.num_programs(0) - 1)
    def _finalize():
        acc1 = acc1_ref[...]
        bh = bh_ref[...]                                            # (1, 256) fp32

        # f=20 head: all 21 positions valid
        h20 = acc1[:, :, :KERNEL_NUM] + bh[:, :KERNEL_NUM][None]
        # f=40 head: only position 0 valid -> mask t>=1 with -1e30 before relu
        h40 = (acc1[:, :, KERNEL_NUM:] + acc2_ref[...]
               + bh[:, KERNEL_NUM:][None] + mh40_ref[...][None])
        q20 = jnp.max(jnp.maximum(h20, 0.0), axis=1)                # (B, 128)
        q40 = jnp.max(jnp.maximum(h40, 0.0), axis=1)                # (B, 128)

        # ---- vertical stream: one tiny packed im2col matmul ----
        accv = jax.lax.dot_general(pv_ref[...], wv_ref[...],
                                   dimension_numbers=dn,
                                   preferred_element_type=jnp.float32)
        hv = accv + bv_ref[...][None] + mv_ref[...][None]
        vq = jnp.max(jnp.maximum(hv, 0.0), axis=1)                  # (B, 32)

        # (dropout == identity in eval; the outer ReLU of the torch code is a no-op)

        # ---- dense on the VPU/XLU (no M=2, N=5 MXU fill/drain), then LogSoftmax ----
        logits = (jnp.sum(q20[:, None, :] * wd20_ref[...][None], axis=-1)
                  + jnp.sum(q40[:, None, :] * wd40_ref[...][None], axis=-1)
                  + jnp.sum(vq[:, None, :] * wdv_ref[...][None], axis=-1)
                  + bd_ref[...])
        m = jnp.max(logits, axis=1, keepdims=True)
        z = logits - m
        lse = jnp.log(jnp.sum(jnp.exp(z), axis=1, keepdims=True))
        out_ref[...] = z - lse


# ----------------------------------------------------------------------------
# Full forward: im2col / pos-embed / group-sum prep in XLA (fuses with the pads),
# then ONE K-blocked pallas_call.
# ----------------------------------------------------------------------------
def two_stream_forward(data, params):
    # ---- horizontal stream prep: sample-average + GRE (approx) pos-embed ----
    x = data.reshape(B, L2, SAMPLE, EMBED_DIM).sum(axis=2) * (1.0 / SAMPLE)
    x = x + params["pos_embed"]
    # TODO(synk): MCAT transformer source not provided -> identity.
    xb = jnp.pad(x, ((0, 0), (0, XLEN - L2), (0, 0))).astype(jnp.bfloat16)   # (B, 60, 60)

    def im2col(src, taps, lout, kdim):
        p = jnp.stack([src[:, t:t + taps, :] for t in range(lout)], axis=1)
        p = p.reshape(B, lout, taps * src.shape[-1])
        if p.shape[-1] < kdim:
            p = jnp.pad(p, ((0, 0), (0, 0), (0, kdim - p.shape[-1])))
        return p

    p1 = im2col(xb, F20, LOUT_H, KH)                 # taps 0..19  -> (B, 21, 1280) bf16
    p2 = im2col(xb[:, F20:, :], F20, LOUT_H, KH)     # taps 20..39 -> (B, 21, 1280) bf16

    # ---- vertical stream prep: 30-group sum, transpose, TRUE zero pad, im2col ----
    v = data.reshape(B, MAXLEN, EMBED_DIM // 30, 30).sum(axis=2)             # (B, 80, 30)
    v = jnp.swapaxes(v, 1, 2)                                                # (B, 30, 80)
    # TODO(synk): vertical Transformer source not provided -> identity.
    vb = jnp.pad(v, ((0, 0), (0, VLEN - LV), (0, 0))).astype(jnp.bfloat16)   # (B, 32, 80)
    pv = im2col(vb, FV4, LOUT_V, KV)                                         # (B, 29, 320)

    args = (p1, params["w1"], p2, params["w2"],
            params["bh"], params["mh40"],
            pv, params["wv"], params["bv"], params["mv"],
            params["wd20"], params["wd40"], params["wdv"], params["bd"])

    kblk = KH // KT

    def full_spec(shape):
        n = len(shape)
        return pl.BlockSpec(shape, lambda k: (0,) * n)

    in_specs = [
        pl.BlockSpec((B, LOUT_H, kblk), lambda k: (0, 0, k)),    # p1  (K-blocked)
        pl.BlockSpec((kblk, COUT_H), lambda k: (k, 0)),          # w1  (K-blocked)
        pl.BlockSpec((B, LOUT_H, kblk), lambda k: (0, 0, k)),    # p2  (K-blocked)
        pl.BlockSpec((kblk, KERNEL_NUM), lambda k: (k, 0)),      # w2  (K-blocked)
        full_spec((1, COUT_H)),                                  # bh
        full_spec((LOUT_H, KERNEL_NUM)),                         # mh40
        full_spec((B, LOUT_V, KV)),                              # pv
        full_spec((KV, COUT_V)),                                 # wv
        full_spec((1, COUT_V)),                                  # bv
        full_spec((LOUT_V, COUT_V)),                             # mv
        full_spec((NUM_CLASS, KERNEL_NUM)),                      # wd20
        full_spec((NUM_CLASS, KERNEL_NUM)),                      # wd40
        full_spec((NUM_CLASS, COUT_V)),                          # wdv
        full_spec((1, NUM_CLASS)),                               # bd
    ]

    flops = 2 * (B * LOUT_H * KH * (COUT_H + KERNEL_NUM)
                 + B * LOUT_V * KV * COUT_V
                 + B * (COUT_H + COUT_V) * NUM_CLASS)
    bytes_accessed = sum(int(a.size) * a.dtype.itemsize for a in args) + B * NUM_CLASS * 4

    # TODO(synk): at this size the kernel is weight-DMA bound; only add a "parallel"
    # batch grid axis (v7x megacore) once batch is large enough to be compute-bound.
    return pl.pallas_call(
        fused_kernel,
        grid=(KT,),
        in_specs=in_specs,
        out_specs=pl.BlockSpec((B, NUM_CLASS), lambda k: (0, 0)),
        out_shape=jax.ShapeDtypeStruct((B, NUM_CLASS), jnp.float32),
        scratch_shapes=[pltpu.VMEM((B, LOUT_H, COUT_H), jnp.float32),
                        pltpu.VMEM((B, LOUT_H, KERNEL_NUM), jnp.float32)],
        compiler_params=pltpu.CompilerParams(dimension_semantics=("arbitrary",)),
        cost_estimate=pl.CostEstimate(flops=flops,
                                      transcendentals=B * (NUM_CLASS + 1),
                                      bytes_accessed=bytes_accessed),
    )(*args)


# ----------------------------------------------------------------------------
# Deterministic parameter init (synthetic — no checkpoint loading).
# Raw fp32 weights are kept for the reference; packed bf16 weights feed the kernel.
# ----------------------------------------------------------------------------
def init_params(key):
    ks = jax.random.split(key, 11)
    p = {}

    # GRE approximated as a learned additive positional embedding (added in wrapper)
    p["pos_embed"] = 0.02 * jax.random.normal(ks[0], (L2, EMBED_DIM), jnp.float32)

    # raw (unpacked, fp32) conv / dense weights — used by the pure-JAX reference
    w20 = 0.05 * jax.random.normal(ks[1], (F20, EMBED_DIM, KERNEL_NUM), jnp.float32)
    w40 = 0.05 * jax.random.normal(ks[2], (F40, EMBED_DIM, KERNEL_NUM), jnp.float32)
    b20 = 0.01 * jax.random.normal(ks[3], (1, KERNEL_NUM), jnp.float32)
    b40 = 0.01 * jax.random.normal(ks[4], (1, KERNEL_NUM), jnp.float32)
    wv2 = 0.05 * jax.random.normal(ks[5], (FV2, MAXLEN, KERNEL_NUM_V), jnp.float32)
    wv4 = 0.05 * jax.random.normal(ks[6], (FV4, MAXLEN, KERNEL_NUM_V), jnp.float32)
    bv2 = 0.01 * jax.random.normal(ks[7], (1, KERNEL_NUM_V), jnp.float32)
    bv4 = 0.01 * jax.random.normal(ks[8], (1, KERNEL_NUM_V), jnp.float32)
    wd  = 0.05 * jax.random.normal(ks[9], (COUT_H + COUT_V, NUM_CLASS), jnp.float32)
    bd  = 0.01 * jax.random.normal(ks[10], (1, NUM_CLASS), jnp.float32)
    p["ref"] = dict(w20=w20, w40=w40, b20=b20, b40=b40,
                    wv2=wv2, wv4=wv4, bv2=bv2, bv4=bv4, wd=wd, bd=bd)

    # packed horizontal weights (bf16):
    #   W1 (taps 0..19): cols 0:128 = f=20 head, cols 128:256 = f=40 head taps 0..19
    #   W2 (taps 20..39): f=40 head taps 20..39 only
    w1 = jnp.zeros((KH, COUT_H), jnp.float32)
    w1 = w1.at[:KH_RAW, :KERNEL_NUM].set(w20.reshape(KH_RAW, KERNEL_NUM))
    w1 = w1.at[:KH_RAW, KERNEL_NUM:].set(w40[:F20].reshape(KH_RAW, KERNEL_NUM))
    w2 = jnp.zeros((KH, KERNEL_NUM), jnp.float32)
    w2 = w2.at[:KH_RAW, :].set(w40[F20:].reshape(KH_RAW, KERNEL_NUM))
    p["w1"] = w1.astype(jnp.bfloat16)
    p["w2"] = w2.astype(jnp.bfloat16)
    p["bh"] = jnp.concatenate([b20, b40], axis=1)                       # fp32 (1, 256)
    # f=40 head has a single valid position: kill t>=1 before relu + max-pool
    p["mh40"] = jnp.zeros((LOUT_H, KERNEL_NUM), jnp.float32).at[1:, :].set(NEG)

    # packed vertical weight (bf16): cols 0:16 = f=2 head (taps 2,3 structurally zero),
    # cols 16:32 = f=4 head; f=4 positions 27,28 hit zero-pad rows -> masked via mv.
    wv = jnp.zeros((FV4, MAXLEN, COUT_V), jnp.float32)
    wv = wv.at[:FV2, :, :KERNEL_NUM_V].set(wv2)
    wv = wv.at[:, :, KERNEL_NUM_V:].set(wv4)
    # packed-head equivalence requires the f=2 columns' taps >= 2 to be exactly zero
    assert bool(jnp.all(wv[FV2:, :, :KERNEL_NUM_V] == 0.0))
    p["wv"] = wv.reshape(KV, COUT_V).astype(jnp.bfloat16)
    p["bv"] = jnp.concatenate([bv2, bv4], axis=1)                       # fp32 (1, 32)
    p["mv"] = jnp.zeros((LOUT_V, COUT_V), jnp.float32).at[LV - FV4 + 1:, KERNEL_NUM_V:].set(NEG)

    # dense split per feature group and transposed (class-major) for the in-kernel VPU dot
    p["wd20"] = wd[:KERNEL_NUM].T                                       # (5, 128) fp32
    p["wd40"] = wd[KERNEL_NUM:COUT_H].T                                 # (5, 128) fp32
    p["wdv"]  = wd[COUT_H:].T                                           # (5, 32)  fp32
    p["bd"]   = bd                                                      # (1, 5)   fp32
    return p


# ----------------------------------------------------------------------------
# Pure-JAX fp32 reference (unpacked heads) — validates packing / masking / bf16 / fusion.
# ----------------------------------------------------------------------------
def reference_forward(data, params):
    r = params["ref"]
    with jax.default_matmul_precision("highest"):
        x = data.reshape(B, L2, SAMPLE, EMBED_DIM).sum(axis=2) / SAMPLE
        x = x + params["pos_embed"]                                     # GRE approx
        y = data.reshape(B, MAXLEN, EMBED_DIM // 30, 30).sum(axis=2)    # (B, 80, 30)
        v = jnp.swapaxes(y, 1, 2)                                       # (B, 30, 80)

        def head(inp, w, b):
            f = w.shape[0]
            lo = inp.shape[1] - f + 1
            acc = sum(jnp.einsum("blc,co->blo", inp[:, j:j + lo, :], w[j]) for j in range(f))
            return jnp.max(jax.nn.relu(acc + b), axis=1)

        q_re = jnp.concatenate([head(x, r["w20"], r["b20"]),
                                head(x, r["w40"], r["b40"])], axis=1)
        v_re = jnp.concatenate([head(v, r["wv2"], r["bv2"]),
                                head(v, r["wv4"], r["bv4"])], axis=1)
        feats = jnp.concatenate([q_re, v_re], axis=1)
        logits = feats @ r["wd"] + r["bd"]
        return jax.nn.log_softmax(logits, axis=1)


if __name__ == "__main__":
    key = jax.random.PRNGKey(0)
    kd, kp = jax.random.split(key)
    data = jax.random.normal(kd, (B, MAXLEN, EMBED_DIM), jnp.float32)
    params = init_params(kp)

    out = jax.jit(two_stream_forward)(data, params)
    out = jax.block_until_ready(out)

    assert out.shape == (B, NUM_CLASS), out.shape
    assert bool(jnp.all(jnp.isfinite(out)))
    # log-softmax rows should exp-sum to ~1
    assert bool(jnp.allclose(jnp.sum(jnp.exp(out), axis=1), 1.0, atol=1e-4))
    # fused / packed bf16 kernel should match the unpacked fp32 pure-JAX reference
    ref = reference_forward(data, params)
    assert bool(jnp.allclose(out, ref, atol=5e-2)), float(jnp.max(jnp.abs(out - ref)))

    print("KERNEL_OK")
</pallas_src>

<mosaic_0001>
module attributes {stable_mosaic.version = 11 : i64} {
  func.func @fused_kernel(%arg0: i32, %arg1: memref<2x21x640xbf16, #tpu.memory_space<vmem>>, %arg2: memref<640x256xbf16, #tpu.memory_space<vmem>>, %arg3: memref<2x21x640xbf16, #tpu.memory_space<vmem>>, %arg4: memref<640x128xbf16, #tpu.memory_space<vmem>>, %arg5: memref<1x256xf32, #tpu.memory_space<vmem>>, %arg6: memref<21x128xf32, #tpu.memory_space<vmem>>, %arg7: memref<2x29x320xbf16, #tpu.memory_space<vmem>>, %arg8: memref<320x32xbf16, #tpu.memory_space<vmem>>, %arg9: memref<1x32xf32, #tpu.memory_space<vmem>>, %arg10: memref<29x32xf32, #tpu.memory_space<vmem>>, %arg11: memref<5x128xf32, #tpu.memory_space<vmem>>, %arg12: memref<5x128xf32, #tpu.memory_space<vmem>>, %arg13: memref<5x32xf32, #tpu.memory_space<vmem>>, %arg14: memref<1x5xf32, #tpu.memory_space<vmem>>, %arg15: memref<2x5xf32, #tpu.memory_space<vmem>>, %arg16: memref<2x21x256xf32, #tpu.memory_space<vmem>>, %arg17: memref<2x21x128xf32, #tpu.memory_space<vmem>>) attributes {dimension_semantics = [#tpu.dimension_semantics<arbitrary>], iteration_bounds = array<i64: 2>, scalar_prefetch = 0 : i64, scratch_operands = 2 : i64, tpu.core_type = #tpu.core_type<tc>, window_params = [{transform_indices = @transform_0, window_bounds = array<i64: 2, 21, 640>}, {transform_indices = @transform_1, window_bounds = array<i64: 640, 256>}, {transform_indices = @transform_2, window_bounds = array<i64: 2, 21, 640>}, {transform_indices = @transform_3, window_bounds = array<i64: 640, 128>}, {pipeline_mode = #tpu.pipeline_mode<synchronous>, transform_indices = @transform_4, window_bounds = array<i64: 1, 256>}, {pipeline_mode = #tpu.pipeline_mode<synchronous>, transform_indices = @transform_5, window_bounds = array<i64: 21, 128>}, {pipeline_mode = #tpu.pipeline_mode<synchronous>, transform_indices = @transform_6, window_bounds = array<i64: 2, 29, 320>}, {pipeline_mode = #tpu.pipeline_mode<synchronous>, transform_indices = @transform_7, window_bounds = array<i64: 320, 32>}, {pipeline_mode = #tpu.pipeline_mode<synchronous>, transform_indices = @transform_8, window_bounds = array<i64: 1, 32>}, {pipeline_mode = #tpu.pipeline_mode<synchronous>, transform_indices = @transform_9, window_bounds = array<i64: 29, 32>}, {pipeline_mode = #tpu.pipeline_mode<synchronous>, transform_indices = @transform_10, window_bounds = array<i64: 5, 128>}, {pipeline_mode = #tpu.pipeline_mode<synchronous>, transform_indices = @transform_11, window_bounds = array<i64: 5, 128>}, {pipeline_mode = #tpu.pipeline_mode<synchronous>, transform_indices = @transform_12, window_bounds = array<i64: 5, 32>}, {pipeline_mode = #tpu.pipeline_mode<synchronous>, transform_indices = @transform_13, window_bounds = array<i64: 1, 5>}, {pipeline_mode = #tpu.pipeline_mode<synchronous>, transform_indices = @transform_14, window_bounds = array<i64: 2, 5>}]} {
    %c0_i32 = arith.constant 0 : i32
    %0 = arith.cmpi eq, %arg0, %c0_i32 : i32
    %1 = arith.extui %0 : i1 to i32
    %c0_i32_0 = arith.constant 0 : i32
    %2 = arith.cmpi ne, %1, %c0_i32_0 : i32
    scf.if %2 {
      %cst_24 = arith.constant 0.000000e+00 : f32
      %18 = vector.broadcast %cst_24 : f32 to vector<2x21x256xf32>
      %c0_25 = arith.constant 0 : index
      %c0_26 = arith.constant 0 : index
      %c0_27 = arith.constant 0 : index
      %19 = vector.load %arg16[%c0_25, %c0_26, %c0_27] : memref<2x21x256xf32, #tpu.memory_space<vmem>>, vector<2x21x256xf32>
      tpu.vector_store %arg16[%c0_25, %c0_26, %c0_27], %18 {strides = array<i32>} : memref<2x21x256xf32, #tpu.memory_space<vmem>>, vector<2x21x256xf32>,
      %cst_28 = arith.constant 0.000000e+00 : f32
      %20 = vector.broadcast %cst_28 : f32 to vector<2x21x128xf32>
      %c0_29 = arith.constant 0 : index
      %c0_30 = arith.constant 0 : index
      %c0_31 = arith.constant 0 : index
      %21 = vector.load %arg17[%c0_29, %c0_30, %c0_31] : memref<2x21x128xf32, #tpu.memory_space<vmem>>, vector<2x21x128xf32>
      tpu.vector_store %arg17[%c0_29, %c0_30, %c0_31], %20 {strides = array<i32>} : memref<2x21x128xf32, #tpu.memory_space<vmem>>, vector<2x21x128xf32>,
    } else {
    }
    %c0 = arith.constant 0 : index
    %c0_1 = arith.constant 0 : index
    %c0_2 = arith.constant 0 : index
    %3 = vector.load %arg16[%c0, %c0_1, %c0_2] : memref<2x21x256xf32, #tpu.memory_space<vmem>>, vector<2x21x256xf32>
    %c0_3 = arith.constant 0 : index
    %c0_4 = arith.constant 0 : index
    %c0_5 = arith.constant 0 : index
    %4 = vector.load %arg1[%c0_3, %c0_4, %c0_5] : memref<2x21x640xbf16, #tpu.memory_space<vmem>>, vector<2x21x640xbf16>
    %c0_6 = arith.constant 0 : index
    %c0_7 = arith.constant 0 : index
    %5 = vector.load %arg2[%c0_6, %c0_7] : memref<640x256xbf16, #tpu.memory_space<vmem>>, vector<640x256xbf16>
    %cst = arith.constant dense<0.000000e+00> : vector<2x21x256xf32>
    %6 = tpu.matmul %4, %5, %cst {dimension_numbers = #tpu.dot_dimension_numbers<[2], [0], [0, 1], [1], [0, 0, 0, 1, 1, 1], [], []>} : vector<2x21x640xbf16>, vector<640x256xbf16>, vector<2x21x256xf32> -> vector<2x21x256xf32>
    %7 = arith.addf %3, %6 : vector<2x21x256xf32>
    %c0_8 = arith.constant 0 : index
    %c0_9 = arith.constant 0 : index
    %c0_10 = arith.constant 0 : index
    %8 = vector.load %arg16[%c0_8, %c0_9, %c0_10] : memref<2x21x256xf32, #tpu.memory_space<vmem>>, vector<2x21x256xf32>
    tpu.vector_store %arg16[%c0_8, %c0_9, %c0_10], %7 {strides = array<i32>} : memref<2x21x256xf32, #tpu.memory_space<vmem>>, vector<2x21x256xf32>,
    %c0_11 = arith.constant 0 : index
    %c0_12 = arith.constant 0 : index
    %c0_13 = arith.constant 0 : index
    %9 = vector.load %arg17[%c0_11, %c0_12, %c0_13] : memref<2x21x128xf32, #tpu.memory_space<vmem>>, vector<2x21x128xf32>
    %c0_14 = arith.constant 0 : index
    %c0_15 = arith.constant 0 : index
    %c0_16 = arith.constant 0 : index
    %10 = vector.load %arg3[%c0_14, %c0_15, %c0_16] : memref<2x21x640xbf16, #tpu.memory_space<vmem>>, vector<2x21x640xbf16>
    %c0_17 = arith.constant 0 : index
    %c0_18 = arith.constant 0 : index
    %11 = vector.load %arg4[%c0_17, %c0_18] : memref<640x128xbf16, #tpu.memory_space<vmem>>, vector<640x128xbf16>
    %cst_19 = arith.constant dense<0.000000e+00> : vector<2x21x128xf32>
    %12 = tpu.matmul %10, %11, %cst_19 {dimension_numbers = #tpu.dot_dimension_numbers<[2], [0], [0, 1], [1], [0, 0, 0, 1, 1, 1], [], []>} : vector<2x21x640xbf16>, vector<640x128xbf16>, vector<2x21x128xf32> -> vector<2x21x128xf32>
    %13 = arith.addf %9, %12 : vector<2x21x128xf32>
    %c0_20 = arith.constant 0 : index
    %c0_21 = arith.constant 0 : index
    %c0_22 = arith.constant 0 : index
    %14 = vector.load %arg17[%c0_20, %c0_21, %c0_22] : memref<2x21x128xf32, #tpu.memory_space<vmem>>, vector<2x21x128xf32>
    tpu.vector_store %arg17[%c0_20, %c0_21, %c0_22], %13 {strides = array<i32>} : memref<2x21x128xf32, #tpu.memory_space<vmem>>, vector<2x21x128xf32>,
    %c1_i32 = arith.constant 1 : i32
    %15 = arith.cmpi eq, %arg0, %c1_i32 : i32
    %16 = arith.extui %15 : i1 to i32
    %c0_i32_23 = arith.constant 0 : i32
    %17 = arith.cmpi ne, %16, %c0_i32_23 : i32
    scf.if %17 {
      %c0_24 = arith.constant 0 : index
      %c0_25 = arith.constant 0 : index
      %c0_26 = arith.constant 0 : index
      %18 = vector.load %arg16[%c0_24, %c0_25, %c0_26] : memref<2x21x256xf32, #tpu.memory_space<vmem>>, vector<2x21x256xf32>
      %c0_27 = arith.constant 0 : index
      %c0_28 = arith.constant 0 : index
      %19 = vector.load %arg5[%c0_27, %c0_28] : memref<1x256xf32, #tpu.memory_space<vmem>>, vector<1x256xf32>
      %20 = vector.extract_strided_slice %18 {offsets = [0, 0, 0], sizes = [2, 21, 128], strides = [1, 1, 1]} : vector<2x21x256xf32> to vector<2x21x128xf32>
      %21 = vector.extract_strided_slice %19 {offsets = [0, 0], sizes = [1, 128], strides = [1, 1]} : vector<1x256xf32> to vector<1x128xf32>
      %22 = vector.shape_cast %21 : vector<1x128xf32> to vector<1x1x128xf32>
      %23 = vector.broadcast %22 : vector<1x1x128xf32> to vector<2x21x128xf32>
      %24 = arith.addf %20, %23 : vector<2x21x128xf32>
      %25 = vector.extract_strided_slice %18 {offsets = [0, 0, 128], sizes = [2, 21, 128], strides = [1, 1, 1]} : vector<2x21x256xf32> to vector<2x21x128xf32>
      %c0_29 = arith.constant 0 : index
      %c0_30 = arith.constant 0 : index
      %c0_31 = arith.constant 0 : index
      %26 = vector.load %arg17[%c0_29, %c0_30, %c0_31] : memref<2x21x128xf32, #tpu.memory_space<vmem>>, vector<2x21x128xf32>
      %27 = arith.addf %25, %26 : vector<2x21x128xf32>
      %28 = vector.extract_strided_slice %19 {offsets = [0, 128], sizes = [1, 128], strides = [1, 1]} : vector<1x256xf32> to vector<1x128xf32>
      %29 = vector.shape_cast %28 : vector<1x128xf32> to vector<1x1x128xf32>
      %30 = vector.broadcast %29 : vector<1x1x128xf32> to vector<2x21x128xf32>
      %31 = arith.addf %27, %30 : vector<2x21x128xf32>
      %c0_32 = arith.constant 0 : index
      %c0_33 = arith.constant 0 : index
      %32 = vector.load %arg6[%c0_32, %c0_33] : memref<21x128xf32, #tpu.memory_space<vmem>>, vector<21x128xf32>
      %33 = vector.shape_cast %32 : vector<21x128xf32> to vector<1x21x128xf32>
      %34 = vector.broadcast %33 : vector<1x21x128xf32> to vector<2x21x128xf32>
      %35 = arith.addf %31, %34 : vector<2x21x128xf32>
      %cst_34 = arith.constant 0.000000e+00 : f32
      %36 = vector.broadcast %cst_34 : f32 to vector<2x21x128xf32>
      %37 = arith.maximumf %24, %36 : vector<2x21x128xf32>
      %cst_35 = arith.constant dense<0xFF800000> : vector<2x128xf32>
      %38 = vector.multi_reduction <maximumf>, %37, %cst_35 [1] : vector<2x21x128xf32> to vector<2x128xf32>
      %cst_36 = arith.constant 0.000000e+00 : f32
      %39 = vector.broadcast %cst_36 : f32 to vector<2x21x128xf32>
      %40 = arith.maximumf %35, %39 : vector<2x21x128xf32>
      %cst_37 = arith.constant dense<0xFF800000> : vector<2x128xf32>
      %41 = vector.multi_reduction <maximumf>, %40, %cst_37 [1] : vector<2x21x128xf32> to vector<2x128xf32>
      %c0_38 = arith.constant 0 : index
      %c0_39 = arith.constant 0 : index
      %c0_40 = arith.constant 0 : index
      %42 = vector.load %arg7[%c0_38, %c0_39, %c0_40] : memref<2x29x320xbf16, #tpu.memory_space<vmem>>, vector<2x29x320xbf16>
      %c0_41 = arith.constant 0 : index
      %c0_42 = arith.constant 0 : index
      %43 = vector.load %arg8[%c0_41, %c0_42] : memref<320x32xbf16, #tpu.memory_space<vmem>>, vector<320x32xbf16>
      %cst_43 = arith.constant dense<0.000000e+00> : vector<2x29x32xf32>
      %44 = tpu.matmul %42, %43, %cst_43 {dimension_numbers = #tpu.dot_dimension_numbers<[2], [0], [0, 1], [1], [0, 0, 0, 1, 1, 1], [], []>} : vector<2x29x320xbf16>, vector<320x32xbf16>, vector<2x29x32xf32> -> vector<2x29x32xf32>
      %c0_44 = arith.constant 0 : index
      %c0_45 = arith.constant 0 : index
      %45 = vector.load %arg9[%c0_44, %c0_45] : memref<1x32xf32, #tpu.memory_space<vmem>>, vector<1x32xf32>
      %46 = vector.shape_cast %45 : vector<1x32xf32> to vector<1x1x32xf32>
      %47 = vector.broadcast %46 : vector<1x1x32xf32> to vector<2x29x32xf32>
      %48 = arith.addf %44, %47 : vector<2x29x32xf32>
      %c0_46 = arith.constant 0 : index
      %c0_47 = arith.constant 0 : index
      %49 = vector.load %arg10[%c0_46, %c0_47] : memref<29x32xf32, #tpu.memory_space<vmem>>, vector<29x32xf32>
      %50 = vector.shape_cast %49 : vector<29x32xf32> to vector<1x29x32xf32>
      %51 = vector.broadcast %50 : vector<1x29x32xf32> to vector<2x29x32xf32>
      %52 = arith.addf %48, %51 : vector<2x29x32xf32>
      %cst_48 = arith.constant 0.000000e+00 : f32
      %53 = vector.broadcast %cst_48 : f32 to vector<2x29x32xf32>
      %54 = arith.maximumf %52, %53 : vector<2x29x32xf32>
      %cst_49 = arith.constant dense<0xFF800000> : vector<2x32xf32>
      %55 = vector.multi_reduction <maximumf>, %54, %cst_49 [1] : vector<2x29x32xf32> to vector<2x32xf32>
      %56 = vector.shape_cast %38 : vector<2x128xf32> to vector<2x1x128xf32>
      %c0_50 = arith.constant 0 : index
      %c0_51 = arith.constant 0 : index
      %57 = vector.load %arg11[%c0_50, %c0_51] : memref<5x128xf32, #tpu.memory_space<vmem>>, vector<5x128xf32>
      %58 = vector.shape_cast %57 : vector<5x128xf32> to vector<1x5x128xf32>
      %59 = vector.broadcast %56 : vector<2x1x128xf32> to vector<2x5x128xf32>
      %60 = vector.broadcast %58 : vector<1x5x128xf32> to vector<2x5x128xf32>
      %61 = arith.mulf %59, %60 : vector<2x5x128xf32>
      %cst_52 = arith.constant dense<0.000000e+00> : vector<2x5xf32>
      %62 = vector.multi_reduction <add>, %61, %cst_52 [2] : vector<2x5x128xf32> to vector<2x5xf32>
      %63 = vector.shape_cast %41 : vector<2x128xf32> to vector<2x1x128xf32>
      %c0_53 = arith.constant 0 : index
      %c0_54 = arith.constant 0 : index
      %64 = vector.load %arg12[%c0_53, %c0_54] : memref<5x128xf32, #tpu.memory_space<vmem>>, vector<5x128xf32>
      %65 = vector.shape_cast %64 : vector<5x128xf32> to vector<1x5x128xf32>
      %66 = vector.broadcast %63 : vector<2x1x128xf32> to vector<2x5x128xf32>
      %67 = vector.broadcast %65 : vector<1x5x128xf32> to vector<2x5x128xf32>
      %68 = arith.mulf %66, %67 : vector<2x5x128xf32>
      %cst_55 = arith.constant dense<0.000000e+00> : vector<2x5xf32>
      %69 = vector.multi_reduction <add>, %68, %cst_55 [2] : vector<2x5x128xf32> to vector<2x5xf32>
      %70 = arith.addf %62, %69 : vector<2x5xf32>
      %71 = vector.shape_cast %55 : vector<2x32xf32> to vector<2x1x32xf32>
      %c0_56 = arith.constant 0 : index
      %c0_57 = arith.constant 0 : index
      %72 = vector.load %arg13[%c0_56, %c0_57] : memref<5x32xf32, #tpu.memory_space<vmem>>, vector<5x32xf32>
      %73 = vector.shape_cast %72 : vector<5x32xf32> to vector<1x5x32xf32>
      %74 = vector.broadcast %71 : vector<2x1x32xf32> to vector<2x5x32xf32>
      %75 = vector.broadcast %73 : vector<1x5x32xf32> to vector<2x5x32xf32>
      %76 = arith.mulf %74, %75 : vector<2x5x32xf32>
      %cst_58 = arith.constant dense<0.000000e+00> : vector<2x5xf32>
      %77 = vector.multi_reduction <add>, %76, %cst_58 [2] : vector<2x5x32xf32> to vector<2x5xf32>
      %78 = arith.addf %70, %77 : vector<2x5xf32>
      %c0_59 = arith.constant 0 : index
      %c0_60 = arith.constant 0 : index
      %79 = vector.load %arg14[%c0_59, %c0_60] : memref<1x5xf32, #tpu.memory_space<vmem>>, vector<1x5xf32>
      %80 = vector.broadcast %79 : vector<1x5xf32> to vector<2x5xf32>
      %81 = arith.addf %78, %80 : vector<2x5xf32>
      %cst_61 = arith.constant dense<0xFF800000> : vector<2xf32>
      %82 = vector.multi_reduction <maximumf>, %81, %cst_61 [1] : vector<2x5xf32> to vector<2xf32>
      %83 = vector.shape_cast %82 : vector<2xf32> to vector<2x1xf32>
      %84 = vector.broadcast %83 : vector<2x1xf32> to vector<2x5xf32>
      %85 = arith.subf %81, %84 : vector<2x5xf32>
      %86 = math.exp %85 : vector<2x5xf32>
      %cst_62 = arith.constant dense<0.000000e+00> : vector<2xf32>
      %87 = vector.multi_reduction <add>, %86, %cst_62 [1] : vector<2x5xf32> to vector<2xf32>
      %88 = vector.shape_cast %87 : vector<2xf32> to vector<2x1xf32>
      %89 = math.log %88 : vector<2x1xf32>
      %90 = vector.broadcast %89 : vector<2x1xf32> to vector<2x5xf32>
      %91 = arith.subf %85, %90 : vector<2x5xf32>
      %c0_63 = arith.constant 0 : index
      %c0_64 = arith.constant 0 : index
      %92 = vector.load %arg15[%c0_63, %c0_64] : memref<2x5xf32, #tpu.memory_space<vmem>>, vector<2x5xf32>
      tpu.vector_store %arg15[%c0_63, %c0_64], %91 {strides = array<i32>} : memref<2x5xf32, #tpu.memory_space<vmem>>, vector<2x5xf32>,
    } else {
    }
    return
  }
  func.func @transform_0(%arg0: i32) -> (i32, i32, i32) {
    %c0_i32 = arith.constant 0 : i32
    %c0_i32_0 = arith.constant 0 : i32
    %c0_i32_1 = arith.constant 0 : i32
    return %c0_i32, %c0_i32_0, %arg0 : i32, i32, i32
  }
  func.func @transform_1(%arg0: i32) -> (i32, i32) {
    %c0_i32 = arith.constant 0 : i32
    %c0_i32_0 = arith.constant 0 : i32
    return %arg0, %c0_i32 : i32, i32
  }
  func.func @transform_2(%arg0: i32) -> (i32, i32, i32) {
    %c0_i32 = arith.constant 0 : i32
    %c0_i32_0 = arith.constant 0 : i32
    %c0_i32_1 = arith.constant 0 : i32
    return %c0_i32, %c0_i32_0, %arg0 : i32, i32, i32
  }
  func.func @transform_3(%arg0: i32) -> (i32, i32) {
    %c0_i32 = arith.constant 0 : i32
    %c0_i32_0 = arith.constant 0 : i32
    return %arg0, %c0_i32 : i32, i32
  }
  func.func @transform_4(%arg0: i32) -> (i32, i32) {
    %c0_i32 = arith.constant 0 : i32
    %c0_i32_0 = arith.constant 0 : i32
    %c0_i32_1 = arith.constant 0 : i32
    return %c0_i32, %c0_i32_0 : i32, i32
  }
  func.func @transform_5(%arg0: i32) -> (i32, i32) {
    %c0_i32 = arith.constant 0 : i32
    %c0_i32_0 = arith.constant 0 : i32
    %c0_i32_1 = arith.constant 0 : i32
    return %c0_i32, %c0_i32_0 : i32, i32
  }
  func.func @transform_6(%arg0: i32) -> (i32, i32, i32) {
    %c0_i32 = arith.constant 0 : i32
    %c0_i32_0 = arith.constant 0 : i32
    %c0_i32_1 = arith.constant 0 : i32
    %c0_i32_2 = arith.constant 0 : i32
    return %c0_i32, %c0_i32_0, %c0_i32_1 : i32, i32, i32
  }
  func.func @transform_7(%arg0: i32) -> (i32, i32) {
    %c0_i32 = arith.constant 0 : i32
    %c0_i32_0 = arith.constant 0 : i32
    %c0_i32_1 = arith.constant 0 : i32
    return %c0_i32, %c0_i32_0 : i32, i32
  }
  func.func @transform_8(%arg0: i32) -> (i32, i32) {
    %c0_i32 = arith.constant 0 : i32
    %c0_i32_0 = arith.constant 0 : i32
    %c0_i32_1 = arith.constant 0 : i32
    return %c0_i32, %c0_i32_0 : i32, i32
  }
  func.func @transform_9(%arg0: i32) -> (i32, i32) {
    %c0_i32 = arith.constant 0 : i32
    %c0_i32_0 = arith.constant 0 : i32
    %c0_i32_1 = arith.constant 0 : i32
    return %c0_i32, %c0_i32_0 : i32, i32
  }
  func.func @transform_10(%arg0: i32) -> (i32, i32) {
    %c0_i32 = arith.constant 0 : i32
    %c0_i32_0 = arith.constant 0 : i32
    %c0_i32_1 = arith.constant 0 : i32
    return %c0_i32, %c0_i32_0 : i32, i32
  }
  func.func @transform_11(%arg0: i32) -> (i32, i32) {
    %c0_i32 = arith.constant 0 : i32
    %c0_i32_0 = arith.constant 0 : i32
    %c0_i32_1 = arith.constant 0 : i32
    return %c0_i32, %c0_i32_0 : i32, i32
  }
  func.func @transform_12(%arg0: i32) -> (i32, i32) {
    %c0_i32 = arith.constant 0 : i32
    %c0_i32_0 = arith.constant 0 : i32
    %c0_i32_1 = arith.constant 0 : i32
    return %c0_i32, %c0_i32_0 : i32, i32
  }
  func.func @transform_13(%arg0: i32) -> (i32, i32) {
    %c0_i32 = arith.constant 0 : i32
    %c0_i32_0 = arith.constant 0 : i32
    %c0_i32_1 = arith.constant 0 : i32
    return %c0_i32, %c0_i32_0 : i32, i32
  }
  func.func @transform_14(%arg0: i32) -> (i32, i32) {
    %c0_i32 = arith.constant 0 : i32
    %c0_i32_0 = arith.constant 0 : i32
    %c0_i32_1 = arith.constant 0 : i32
    return %c0_i32, %c0_i32_0 : i32, i32
  }
}

</mosaic_0001>

<llo_original>
// kernel: two_stream_forward.1
$region0: #{two_stream_forward.1}
  #allocation0 [shape = 'u32[]', space=smem, size = 0x4, offset = 0x4, fixed_abs, tag = 'smem constant byte address 0x4 - core index']
  #allocation1 [shape = 'u32[144,128]{1,0:T(1,128)}', space=vmem, size = 0x12000, scoped, tag = 'internal scratch']
  #allocation2 [shape = 'f32[2,21,256]{2,1,0:T(8,128)}', space=vmem, size = 0xc000, scoped, tag = 'scratch operand']
  #allocation3 [shape = 'f32[2,21,128]{2,1,0:T(8,128)}', space=vmem, size = 0x6000, scoped, tag = 'scratch operand']
  %s0 = inlined_call_operand.vmem [shape: bf16[2,21,1280], index: 0, kind: input, shape index: {}]
  %s1 = inlined_call_operand.vmem [shape: bf16[1280,256], index: 1, kind: input, shape index: {}]
  %s2 = inlined_call_operand.vmem [shape: bf16[2,21,1280], index: 2, kind: input, shape index: {}]
  %s3 = inlined_call_operand.vmem [shape: bf16[1280,128], index: 3, kind: input, shape index: {}]
  %s4 = inlined_call_operand.vmem [shape: f32[1,256], index: 4, kind: input, shape index: {}]
  %s5 = inlined_call_operand.vmem [shape: f32[21,128], index: 5, kind: input, shape index: {}]
  %s6 = inlined_call_operand.vmem [shape: bf16[2,29,320], index: 6, kind: input, shape index: {}]
  %s7 = inlined_call_operand.vmem [shape: bf16[320,32], index: 7, kind: input, shape index: {}]
  %s8 = inlined_call_operand.vmem [shape: f32[1,32], index: 8, kind: input, shape index: {}]
  %s9 = inlined_call_operand.vmem [shape: f32[29,32], index: 9, kind: input, shape index: {}]
  %s10 = inlined_call_operand.vmem [shape: f32[5,128], index: 10, kind: input, shape index: {}]
  %s11 = inlined_call_operand.vmem [shape: f32[5,128], index: 11, kind: input, shape index: {}]
  %s12 = inlined_call_operand.vmem [shape: f32[5,32], index: 12, kind: input, shape index: {}]
  %s13 = inlined_call_operand.vmem [shape: f32[1,5], index: 13, kind: input, shape index: {}]
  %s14 = inlined_call_operand.hbm [shape: f32[2,5], index: 14, kind: output, shape index: {}]
  %s15 = sld [smem:[#allocation0]]
  $region149: #{two_stream_forward.1} parent=0
    _
  %s17 = ssub.s32 1, %s15
  %s18 = scalar_select 0, %s17, %s15
  $region1: #{two_stream_forward.1} parent=0
    #allocation4 [shape = 'u8[122880]{0}', space=vmem, size = 0x1e000, scoped, tag = 'input window, operand 0']
    #allocation5 [shape = 'u8[122880]{0}', space=vmem, size = 0x1e000, scoped, tag = 'input window, operand 2']
    #allocation6 [shape = 'u8[1024]{0}', space=vmem, size = 0x400, scoped, tag = 'output window, operand 0, single buffered']
    #allocation7 [shape = 's32[2]{0}', space=sflag, size = 0x8, scoped, tag = 'scoped memory for two_stream_forward.1']
    %19 = vsyncpa [#allocation7], 0
    loop: start=0, step=1, limit=4
    $region2: #{two_stream_forward.1} parent=1 // loop_pre_header
      _
    $region3: #{two_stream_forward.1} parent=1 // loop_header
      %s21 = sphi 0, %s25
      %p22 = scmp.ge.s32.totalorder %s21, 4
      %s31 = sphi 0, %s33
      %s34 = sphi 0, %s31
      %s35 = sphi 0, %s34
      %s51 = sphi 0, %s35
      %s57 = sphi 0, %s59
      %s60 = sphi 0, %s57
      %s61 = sphi 0, %s60
      %s77 = sphi 0, %s61
      %s83 = sphi 0, %s85
      %s86 = sphi 0, %s83
      %s87 = sphi 0, %s86
      %s103 = sphi 0, %s87
      %s109 = sphi 0, %s111
      %s112 = sphi 0, %s109
      %s113 = sphi 0, %s112
      %s129 = sphi 0, %s113
      %s133 = sphi 0, %s133
      %s135 = sphi 0, %s133
      %s136 = sphi 0, %s135
      %s150 = sphi 0, %s136
      %s154 = sphi 0, %s154
      %s156 = sphi 0, %s154
      %s157 = sphi 0, %s156
      %s171 = sphi 0, %s157
      %s175 = sphi 0, %s175
      %s177 = sphi 0, %s175
      %s178 = sphi 0, %s177
      %s192 = sphi 0, %s178
      %s196 = sphi 0, %s196
      %s198 = sphi 0, %s196
      %s199 = sphi 0, %s198
      %s213 = sphi 0, %s199
      %s217 = sphi 0, %s217
      %s219 = sphi 0, %s217
      %s220 = sphi 0, %s219
      %s234 = sphi 0, %s220
      %s238 = sphi 0, %s238
      %s240 = sphi 0, %s238
      %s241 = sphi 0, %s240
      %s255 = sphi 0, %s241
      %s259 = sphi 0, %s259
      %s261 = sphi 0, %s259
      %s262 = sphi 0, %s261
      %s276 = sphi 0, %s262
      %s280 = sphi 0, %s280
      %s282 = sphi 0, %s280
      %s283 = sphi 0, %s282
      %s297 = sphi 0, %s283
      %s301 = sphi 0, %s301
      %s303 = sphi 0, %s301
      %s304 = sphi 0, %s303
      %s318 = sphi 0, %s304
      %s322 = sphi 0, %s322
      %s324 = sphi 0, %s322
      %s325 = sphi 0, %s324
      %s339 = sphi 0, %s325
      %s343 = sphi 0, %s343
      %s345 = sphi 0, %s343
      %s346 = sphi 0, %s345
      %s360 = sphi 0, %s346
    $region4: #{two_stream_forward.1} parent=1 // loop_header_branch
      %24 = sbr.rel (%p22) target = $region8
    $region5: #{two_stream_forward.1} parent=1 // loop_body
      %s26 = ssub.s32 %s21, 1
      %s27 = ssub.s32 %s21, 2
      %s28 = sadd.s32 %s21, 1
      %s29 = ssub.s32 %s21, %s28
      %p30 = scmp.eq.s32.totalorder %s29, 0
      %s32 = sadd.s32 %s31, 1
      %s33 = scalar_select %p30, %s31, %s32
      %p36 = pneg %p30
      %p37 = scmp.eq.s32.totalorder %s21, 1
      %p38 = por %p36, %p37
      %p39 = scmp.ne.s32.totalorder %s31, %s34
      %p40 = scmp.eq.s32.totalorder %s21, 0
      %p41 = por %p39, %p40
      %p42 = scmp.ne.s32.totalorder %s31, %s34
      %p43 = scmp.eq.s32.totalorder %s26, 1
      %p44 = por %p42, %p43
      %p45 = scmp.ne.s32.totalorder %s34, %s35
      %p46 = scmp.eq.s32.totalorder %s26, 0
      %p47 = por %p45, %p46
      %p48 = scmp.ne.s32.totalorder %s34, %s35
      %p49 = scmp.eq.s32.totalorder %s27, 1
      %p50 = por %p48, %p49
      %p52 = scmp.ne.s32.totalorder %s35, %s51
      %p53 = scmp.eq.s32.totalorder %s27, 0
      %p54 = por %p52, %p53
      %s55 = ssub.s32 %s21, %s28
      %p56 = scmp.eq.s32.totalorder %s55, 0
      %s58 = sadd.s32 %s57, 1
      %s59 = scalar_select %p56, %s57, %s58
      %p62 = pneg %p56
      %p63 = scmp.eq.s32.totalorder %s21, 1
      %p64 = por %p62, %p63
      %p65 = scmp.ne.s32.totalorder %s57, %s60
      %p66 = scmp.eq.s32.totalorder %s21, 0
      %p67 = por %p65, %p66
      %p68 = scmp.ne.s32.totalorder %s57, %s60
      %p69 = scmp.eq.s32.totalorder %s26, 1
      %p70 = por %p68, %p69
      %p71 = scmp.ne.s32.totalorder %s60, %s61
      %p72 = scmp.eq.s32.totalorder %s26, 0
      %p73 = por %p71, %p72
      %p74 = scmp.ne.s32.totalorder %s60, %s61
      %p75 = scmp.eq.s32.totalorder %s27, 1
      %p76 = por %p74, %p75
      %p78 = scmp.ne.s32.totalorder %s61, %s77
      %p79 = scmp.eq.s32.totalorder %s27, 0
      %p80 = por %p78, %p79
      %s81 = ssub.s32 %s21, %s28
      %p82 = scmp.eq.s32.totalorder %s81, 0
      %s84 = sadd.s32 %s83, 1
      %s85 = scalar_select %p82, %s83, %s84
      %p88 = pneg %p82
      %p89 = scmp.eq.s32.totalorder %s21, 1
      %p90 = por %p88, %p89
      %p91 = scmp.ne.s32.totalorder %s83, %s86
      %p92 = scmp.eq.s32.totalorder %s21, 0
      %p93 = por %p91, %p92
      %p94 = scmp.ne.s32.totalorder %s83, %s86
      %p95 = scmp.eq.s32.totalorder %s26, 1
      %p96 = por %p94, %p95
      %p97 = scmp.ne.s32.totalorder %s86, %s87
      %p98 = scmp.eq.s32.totalorder %s26, 0
      %p99 = por %p97, %p98
      %p100 = scmp.ne.s32.totalorder %s86, %s87
      %p101 = scmp.eq.s32.totalorder %s27, 1
      %p102 = por %p100, %p101
      %p104 = scmp.ne.s32.totalorder %s87, %s103
      %p105 = scmp.eq.s32.totalorder %s27, 0
      %p106 = por %p104, %p105
      %s107 = ssub.s32 %s21, %s28
      %p108 = scmp.eq.s32.totalorder %s107, 0
      %s110 = sadd.s32 %s109, 1
      %s111 = scalar_select %p108, %s109, %s110
      %p114 = pneg %p108
      %p115 = scmp.eq.s32.totalorder %s21, 1
      %p116 = por %p114, %p115
      %p117 = scmp.ne.s32.totalorder %s109, %s112
      %p118 = scmp.eq.s32.totalorder %s21, 0
      %p119 = por %p117, %p118
      %p120 = scmp.ne.s32.totalorder %s109, %s112
      %p121 = scmp.eq.s32.totalorder %s26, 1
      %p122 = por %p120, %p121
      %p123 = scmp.ne.s32.totalorder %s112, %s113
      %p124 = scmp.eq.s32.totalorder %s26, 0
      %p125 = por %p123, %p124
      %p126 = scmp.ne.s32.totalorder %s112, %s113
      %p127 = scmp.eq.s32.totalorder %s27, 1
      %p128 = por %p126, %p127
      %p130 = scmp.ne.s32.totalorder %s113, %s129
      %p131 = scmp.eq.s32.totalorder %s27, 0
      %p132 = por %p130, %p131
      %s134 = sadd.s32 %s133, 1
      %p137 = scmp.eq.s32.totalorder %s21, 1
      %p138 = scmp.ne.s32.totalorder %s133, %s135
      %p139 = scmp.eq.s32.totalorder %s21, 0
      %p140 = por %p138, %p139
      %p141 = scmp.ne.s32.totalorder %s133, %s135
      %p142 = scmp.eq.s32.totalorder %s26, 1
      %p143 = por %p141, %p142
      %p144 = scmp.ne.s32.totalorder %s135, %s136
      %p145 = scmp.eq.s32.totalorder %s26, 0
      %p146 = por %p144, %p145
      %p147 = scmp.ne.s32.totalorder %s135, %s136
      %p148 = scmp.eq.s32.totalorder %s27, 1
      %p149 = por %p147, %p148
      %p151 = scmp.ne.s32.totalorder %s136, %s150
      %p152 = scmp.eq.s32.totalorder %s27, 0
      %p153 = por %p151, %p152
      %s155 = sadd.s32 %s154, 1
      %p158 = scmp.eq.s32.totalorder %s21, 1
      %p159 = scmp.ne.s32.totalorder %s154, %s156
      %p160 = scmp.eq.s32.totalorder %s21, 0
      %p161 = por %p159, %p160
      %p162 = scmp.ne.s32.totalorder %s154, %s156
      %p163 = scmp.eq.s32.totalorder %s26, 1
      %p164 = por %p162, %p163
      %p165 = scmp.ne.s32.totalorder %s156, %s157
      %p166 = scmp.eq.s32.totalorder %s26, 0
      %p167 = por %p165, %p166
      %p168 = scmp.ne.s32.totalorder %s156, %s157
      %p169 = scmp.eq.s32.totalorder %s27, 1
      %p170 = por %p168, %p169
      %p172 = scmp.ne.s32.totalorder %s157, %s171
      %p173 = scmp.eq.s32.totalorder %s27, 0
      %p174 = por %p172, %p173
      %s176 = sadd.s32 %s175, 1
      %p179 = scmp.eq.s32.totalorder %s21, 1
      %p180 = scmp.ne.s32.totalorder %s175, %s177
      %p181 = scmp.eq.s32.totalorder %s21, 0
      %p182 = por %p180, %p181
      %p183 = scmp.ne.s32.totalorder %s175, %s177
      %p184 = scmp.eq.s32.totalorder %s26, 1
      %p185 = por %p183, %p184
      %p186 = scmp.ne.s32.totalorder %s177, %s178
      %p187 = scmp.eq.s32.totalorder %s26, 0
      %p188 = por %p186, %p187
      %p189 = scmp.ne.s32.totalorder %s177, %s178
      %p190 = scmp.eq.s32.totalorder %s27, 1
      %p191 = por %p189, %p190
      %p193 = scmp.ne.s32.totalorder %s178, %s192
      %p194 = scmp.eq.s32.totalorder %s27, 0
      %p195 = por %p193, %p194
      %s197 = sadd.s32 %s196, 1
      %p200 = scmp.eq.s32.totalorder %s21, 1
      %p201 = scmp.ne.s32.totalorder %s196, %s198
      %p202 = scmp.eq.s32.totalorder %s21, 0
      %p203 = por %p201, %p202
      %p204 = scmp.ne.s32.totalorder %s196, %s198
      %p205 = scmp.eq.s32.totalorder %s26, 1
      %p206 = por %p204, %p205
      %p207 = scmp.ne.s32.totalorder %s198, %s199
      %p208 = scmp.eq.s32.totalorder %s26, 0
      %p209 = por %p207, %p208
      %p210 = scmp.ne.s32.totalorder %s198, %s199
      %p211 = scmp.eq.s32.totalorder %s27, 1
      %p212 = por %p210, %p211
      %p214 = scmp.ne.s32.totalorder %s199, %s213
      %p215 = scmp.eq.s32.totalorder %s27, 0
      %p216 = por %p214, %p215
      %s218 = sadd.s32 %s217, 1
      %p221 = scmp.eq.s32.totalorder %s21, 1
      %p222 = scmp.ne.s32.totalorder %s217, %s219
      %p223 = scmp.eq.s32.totalorder %s21, 0
      %p224 = por %p222, %p223
      %p225 = scmp.ne.s32.totalorder %s217, %s219
      %p226 = scmp.eq.s32.totalorder %s26, 1
      %p227 = por %p225, %p226
      %p228 = scmp.ne.s32.totalorder %s219, %s220
      %p229 = scmp.eq.s32.totalorder %s26, 0
      %p230 = por %p228, %p229
      %p231 = scmp.ne.s32.totalorder %s219, %s220
      %p232 = scmp.eq.s32.totalorder %s27, 1
      %p233 = por %p231, %p232
      %p235 = scmp.ne.s32.totalorder %s220, %s234
      %p236 = scmp.eq.s32.totalorder %s27, 0
      %p237 = por %p235, %p236
      %s239 = sadd.s32 %s238, 1
      %p242 = scmp.eq.s32.totalorder %s21, 1
      %p243 = scmp.ne.s32.totalorder %s238, %s240
      %p244 = scmp.eq.s32.totalorder %s21, 0
      %p245 = por %p243, %p244
      %p246 = scmp.ne.s32.totalorder %s238, %s240
      %p247 = scmp.eq.s32.totalorder %s26, 1
      %p248 = por %p246, %p247
      %p249 = scmp.ne.s32.totalorder %s240, %s241
      %p250 = scmp.eq.s32.totalorder %s26, 0
      %p251 = por %p249, %p250
      %p252 = scmp.ne.s32.totalorder %s240, %s241
      %p253 = scmp.eq.s32.totalorder %s27, 1
      %p254 = por %p252, %p253
      %p256 = scmp.ne.s32.totalorder %s241, %s255
      %p257 = scmp.eq.s32.totalorder %s27, 0
      %p258 = por %p256, %p257
      %s260 = sadd.s32 %s259, 1
      %p263 = scmp.eq.s32.totalorder %s21, 1
      %p264 = scmp.ne.s32.totalorder %s259, %s261
      %p265 = scmp.eq.s32.totalorder %s21, 0
      %p266 = por %p264, %p265
      %p267 = scmp.ne.s32.totalorder %s259, %s261
      %p268 = scmp.eq.s32.totalorder %s26, 1
      %p269 = por %p267, %p268
      %p270 = scmp.ne.s32.totalorder %s261, %s262
      %p271 = scmp.eq.s32.totalorder %s26, 0
      %p272 = por %p270, %p271
      %p273 = scmp.ne.s32.totalorder %s261, %s262
      %p274 = scmp.eq.s32.totalorder %s27, 1
      %p275 = por %p273, %p274
      %p277 = scmp.ne.s32.totalorder %s262, %s276
      %p278 = scmp.eq.s32.totalorder %s27, 0
      %p279 = por %p277, %p278
      %s281 = sadd.s32 %s280, 1
      %p284 = scmp.eq.s32.totalorder %s21, 1
      %p285 = scmp.ne.s32.totalorder %s280, %s282
      %p286 = scmp.eq.s32.totalorder %s21, 0
      %p287 = por %p285, %p286
      %p288 = scmp.ne.s32.totalorder %s280, %s282
      %p289 = scmp.eq.s32.totalorder %s26, 1
      %p290 = por %p288, %p289
      %p291 = scmp.ne.s32.totalorder %s282, %s283
      %p292 = scmp.eq.s32.totalorder %s26, 0
      %p293 = por %p291, %p292
      %p294 = scmp.ne.s32.totalorder %s282, %s283
      %p295 = scmp.eq.s32.totalorder %s27, 1
      %p296 = por %p294, %p295
      %p298 = scmp.ne.s32.totalorder %s283, %s297
      %p299 = scmp.eq.s32.totalorder %s27, 0
      %p300 = por %p298, %p299
      %s302 = sadd.s32 %s301, 1
      %p305 = scmp.eq.s32.totalorder %s21, 1
      %p306 = scmp.ne.s32.totalorder %s301, %s303
      %p307 = scmp.eq.s32.totalorder %s21, 0
      %p308 = por %p306, %p307
      %p309 = scmp.ne.s32.totalorder %s301, %s303
      %p310 = scmp.eq.s32.totalorder %s26, 1
      %p311 = por %p309, %p310
      %p312 = scmp.ne.s32.totalorder %s303, %s304
      %p313 = scmp.eq.s32.totalorder %s26, 0
      %p314 = por %p312, %p313
      %p315 = scmp.ne.s32.totalorder %s303, %s304
      %p316 = scmp.eq.s32.totalorder %s27, 1
      %p317 = por %p315, %p316
      %p319 = scmp.ne.s32.totalorder %s304, %s318
      %p320 = scmp.eq.s32.totalorder %s27, 0
      %p321 = por %p319, %p320
      %s323 = sadd.s32 %s322, 1
      %p326 = scmp.eq.s32.totalorder %s21, 1
      %p327 = scmp.ne.s32.totalorder %s322, %s324
      %p328 = scmp.eq.s32.totalorder %s21, 0
      %p329 = por %p327, %p328
      %p330 = scmp.ne.s32.totalorder %s322, %s324
      %p331 = scmp.eq.s32.totalorder %s26, 1
      %p332 = por %p330, %p331
      %p333 = scmp.ne.s32.totalorder %s324, %s325
      %p334 = scmp.eq.s32.totalorder %s26, 0
      %p335 = por %p333, %p334
      %p336 = scmp.ne.s32.totalorder %s324, %s325
      %p337 = scmp.eq.s32.totalorder %s27, 1
      %p338 = por %p336, %p337
      %p340 = scmp.ne.s32.totalorder %s325, %s339
      %p341 = scmp.eq.s32.totalorder %s27, 0
      %p342 = por %p340, %p341
      %s344 = sadd.s32 %s343, 1
      %p347 = scmp.eq.s32.totalorder %s21, 1
      %p348 = scmp.ne.s32.totalorder %s343, %s345
      %p349 = scmp.eq.s32.totalorder %s21, 0
      %p350 = por %p348, %p349
      %p351 = scmp.ne.s32.totalorder %s343, %s345
      %p352 = scmp.eq.s32.totalorder %s26, 1
      %p353 = por %p351, %p352
      %p354 = scmp.ne.s32.totalorder %s345, %s346
      %p355 = scmp.eq.s32.totalorder %s26, 0
      %p356 = por %p354, %p355
      %p357 = scmp.ne.s32.totalorder %s345, %s346
      %p358 = scmp.eq.s32.totalorder %s27, 1
      %p359 = por %p357, %p358
      %p361 = scmp.ne.s32.totalorder %s346, %s360
      %p362 = scmp.eq.s32.totalorder %s27, 0
      %p363 = por %p361, %p362
      %p364 = scmp.le.s32.totalorder 1, %s21
      %p365 = scmp.lt.s32.totalorder %s21, 3
      %p366 = pnand %p364, %p365
      %p367 = pneg %p366
      // Predicated region
      $region9: #{two_stream_forward.1} parent=5 // pred_check
        _
      $region10: #{two_stream_forward.1} parent=5 // pred_check_branch
        %369 = sbr.rel (%p366) target = $region12
      $region11: #{two_stream_forward.1} parent=5 // pred_region
        %s370 = ssub.s32 %s21, 1
        // Predicated region
        $region13: #{two_stream_forward.1} parent=11 // pred_check
          %p371 = pneg %p146
        $region14: #{two_stream_forward.1} parent=11 // pred_check_branch
          %373 = sbr.rel (%p371) target = $region16
        $region15: #{two_stream_forward.1} parent=11 // pred_region
          _
        $region16: #{two_stream_forward.1} parent=11 // pred_fallthru
          _
        // Predicated region
        $region17: #{two_stream_forward.1} parent=11 // pred_check
          %p374 = pneg %p167
        $region18: #{two_stream_forward.1} parent=11 // pred_check_branch
          %376 = sbr.rel (%p374) target = $region20
        $region19: #{two_stream_forward.1} parent=11 // pred_region
          _
        $region20: #{two_stream_forward.1} parent=11 // pred_fallthru
          _
        // Predicated region
        $region21: #{two_stream_forward.1} parent=11 // pred_check
          %p377 = pneg %p188
        $region22: #{two_stream_forward.1} parent=11 // pred_check_branch
          %379 = sbr.rel (%p377) target = $region24
        $region23: #{two_stream_forward.1} parent=11 // pred_region
          _
        $region24: #{two_stream_forward.1} parent=11 // pred_fallthru
          _
        // Predicated region
        $region25: #{two_stream_forward.1} parent=11 // pred_check
          %p380 = pneg %p209
        $region26: #{two_stream_forward.1} parent=11 // pred_check_branch
          %382 = sbr.rel (%p380) target = $region28
        $region27: #{two_stream_forward.1} parent=11 // pred_region
          _
        $region28: #{two_stream_forward.1} parent=11 // pred_fallthru
          _
        // Predicated region
        $region29: #{two_stream_forward.1} parent=11 // pred_check
          %p383 = pneg %p230
        $region30: #{two_stream_forward.1} parent=11 // pred_check_branch
          %385 = sbr.rel (%p383) target = $region32
        $region31: #{two_stream_forward.1} parent=11 // pred_region
          _
        $region32: #{two_stream_forward.1} parent=11 // pred_fallthru
          _
        // Predicated region
        $region33: #{two_stream_forward.1} parent=11 // pred_check
          %p386 = pneg %p251
        $region34: #{two_stream_forward.1} parent=11 // pred_check_branch
          %388 = sbr.rel (%p386) target = $region36
        $region35: #{two_stream_forward.1} parent=11 // pred_region
          _
        $region36: #{two_stream_forward.1} parent=11 // pred_fallthru
          _
        // Predicated region
        $region37: #{two_stream_forward.1} parent=11 // pred_check
          %p389 = pneg %p272
        $region38: #{two_stream_forward.1} parent=11 // pred_check_branch
          %391 = sbr.rel (%p389) target = $region40
        $region39: #{two_stream_forward.1} parent=11 // pred_region
          _
        $region40: #{two_stream_forward.1} parent=11 // pred_fallthru
          _
        // Predicated region
        $region41: #{two_stream_forward.1} parent=11 // pred_check
          %p392 = pneg %p293
        $region42: #{two_stream_forward.1} parent=11 // pred_check_branch
          %394 = sbr.rel (%p392) target = $region44
        $region43: #{two_stream_forward.1} parent=11 // pred_region
          _
        $region44: #{two_stream_forward.1} parent=11 // pred_fallthru
          _
        // Predicated region
        $region45: #{two_stream_forward.1} parent=11 // pred_check
          %p395 = pneg %p314
        $region46: #{two_stream_forward.1} parent=11 // pred_check_branch
          %397 = sbr.rel (%p395) target = $region48
        $region47: #{two_stream_forward.1} parent=11 // pred_region
          _
        $region48: #{two_stream_forward.1} parent=11 // pred_fallthru
          _
        // Predicated region
        $region49: #{two_stream_forward.1} parent=11 // pred_check
          %p398 = pneg %p335
        $region50: #{two_stream_forward.1} parent=11 // pred_check_branch
          %400 = sbr.rel (%p398) target = $region52
        $region51: #{two_stream_forward.1} parent=11 // pred_region
          _
        $region52: #{two_stream_forward.1} parent=11 // pred_fallthru
          _
      $region12: #{two_stream_forward.1} parent=5 // pred_fallthru
        _
      %p401 = scmp.lt.s32.totalorder %s21, 2
      // Predicated region
      $region53: #{two_stream_forward.1} parent=5 // pred_check
        %p402 = pneg %p401
      $region54: #{two_stream_forward.1} parent=5 // pred_check_branch
        %404 = sbr.rel (%p402) target = $region56
      $region55: #{two_stream_forward.1} parent=5 // pred_region
        // Predicated region
        $region57: #{two_stream_forward.1} parent=55 // pred_check
          %p405 = pneg %p41
        $region58: #{two_stream_forward.1} parent=55 // pred_check_branch
          %407 = sbr.rel (%p405) target = $region60
        $region59: #{two_stream_forward.1} parent=55 // pred_region
          %s408 = sand.u32 %s31, 1
          %s409 = sand.u32 %s31, 1
          %s410 = smul.addr %s409, 120
          %s411 = scalar_lea.vmem [#allocation4], %s410
          %s412 = smul.u32 5, %s21
          %s413 = smul.addr %s412, 4
          %s414 = scalar_lea.vmem %s0, %s413
          // Predicated region
          $region61: #{two_stream_forward.1} parent=59 // pred_check
            _
          $region62: #{two_stream_forward.1} parent=59 // pred_check_branch
            %416 = sbr.rel (0) target = $region64
          $region63: #{two_stream_forward.1} parent=59 // pred_region
            // Predicated region
            $region65: #{two_stream_forward.1} parent=63 // pred_check
              _
            $region66: #{two_stream_forward.1} parent=63 // pred_check_branch
              %418 = sbr.rel (0) target = $region68
            $region67: #{two_stream_forward.1} parent=63 // pred_region
              %s419 = scalar_lea.vmem %s414, 16
              %s420 = scalar_lea.vmem %s411, 16 [#allocation4]
              loop: start=0, step=1, limit=1
              $region69: #{two_stream_forward.1} parent=67 // loop_pre_header
                _
              $region70: #{two_stream_forward.1} parent=67 // loop_header
                %s422 = sphi 0, %s426
                %p423 = scmp.ge.s32.totalorder %s422, 1
                %s427 = sphi %s414, %s414
                %s428 = sphi %s411, %s411
              $region71: #{two_stream_forward.1} parent=67 // loop_header_branch
                %425 = sbr.rel (%p423) target = $region75
              $region72: #{two_stream_forward.1} parent=67 // loop_body
                %v429 = vld [vmem:[%s427] sm:$0xff]
                %430 = vst [vmem:[%s428] sm:$0xff] %v429
                %v431 = vld [vmem:[%s427 + $0x8] sm:$0xff]
                %432 = vst [vmem:[%s428 + $0x8] sm:$0xff] %v431
                %v433 = vld [vmem:[%s427 + $0x28] sm:$0xff]
                %434 = vst [vmem:[%s428 + $0x14] sm:$0xff] %v433
                %v435 = vld [vmem:[%s427 + $0x30] sm:$0xff]
                %436 = vst [vmem:[%s428 + $0x1c] sm:$0xff] %v435
                %v437 = vld [vmem:[%s427 + $0x50] sm:$0xff]
                %438 = vst [vmem:[%s428 + $0x28] sm:$0xff] %v437
                %v439 = vld [vmem:[%s427 + $0x58] sm:$0xff]
                %440 = vst [vmem:[%s428 + $0x30] sm:$0xff] %v439
                %v441 = vld [vmem:[%s427 + $0x78] sm:$0xff]
                %442 = vst [vmem:[%s428 + $0x3c] sm:$0xff] %v441
                %v443 = vld [vmem:[%s427 + $0x80] sm:$0xff]
                %444 = vst [vmem:[%s428 + $0x44] sm:$0xff] %v443
                %v445 = vld [vmem:[%s427 + $0xa0] sm:$0xff]
                %446 = vst [vmem:[%s428 + $0x50] sm:$0xff] %v445
                %v447 = vld [vmem:[%s427 + $0xa8] sm:$0xff]
                %448 = vst [vmem:[%s428 + $0x58] sm:$0xff] %v447
                %v449 = vld [vmem:[%s427 + $0xc8] sm:$0xff]
                %450 = vst [vmem:[%s428 + $0x64] sm:$0xff] %v449
                %v451 = vld [vmem:[%s427 + $0xd0] sm:$0xff]
                %452 = vst [vmem:[%s428 + $0x6c] sm:$0xff] %v451
              $region73: #{two_stream_forward.1} parent=67 // loop_footer
                %s426 = sadd.s32 1, %s422
              $region74: #{two_stream_forward.1} parent=67 // loop_footer_branch
                %421 = sbr.rel target = $region70
              $region75: #{two_stream_forward.1} parent=67 // loop_exit
                _
              loop: start=0, step=1, limit=1
              $region76: #{two_stream_forward.1} parent=67 // loop_pre_header
                _
              $region77: #{two_stream_forward.1} parent=67 // loop_header
                %s455 = sphi 0, %s459
                %p456 = scmp.ge.s32.totalorder %s455, 1
                %s460 = sphi %s419, %s419
                %s461 = sphi %s420, %s420
              $region78: #{two_stream_forward.1} parent=67 // loop_header_branch
                %458 = sbr.rel (%p456) target = $region82
              $region79: #{two_stream_forward.1} parent=67 // loop_body
                %v462 = vld [vmem:[%s460] sm:$0xf]
                %463 = vst [vmem:[%s461] sm:$0xf] %v462
                %v464 = vld [vmem:[%s460 + $0x28] sm:$0xf]
                %465 = vst [vmem:[%s461 + $0x14] sm:$0xf] %v464
                %v466 = vld [vmem:[%s460 + $0x50] sm:$0xf]
                %467 = vst [vmem:[%s461 + $0x28] sm:$0xf] %v466
                %v468 = vld [vmem:[%s460 + $0x78] sm:$0xf]
                %469 = vst [vmem:[%s461 + $0x3c] sm:$0xf] %v468
                %v470 = vld [vmem:[%s460 + $0xa0] sm:$0xf]
                %471 = vst [vmem:[%s461 + $0x50] sm:$0xf] %v470
                %v472 = vld [vmem:[%s460 + $0xc8] sm:$0xf]
                %473 = vst [vmem:[%s461 + $0x64] sm:$0xf] %v472
              $region80: #{two_stream_forward.1} parent=67 // loop_footer
                %s459 = sadd.s32 1, %s455
              $region81: #{two_stream_forward.1} parent=67 // loop_footer_branch
                %454 = sbr.rel target = $region77
              $region82: #{two_stream_forward.1} parent=67 // loop_exit
                _
            $region68: #{two_stream_forward.1} parent=63 // pred_fallthru
              _
          $region64: #{two_stream_forward.1} parent=59 // pred_fallthru
            _
          %474 = vnop
        $region60: #{two_stream_forward.1} parent=55 // pred_fallthru
          _
        // Predicated region
        $region83: #{two_stream_forward.1} parent=55 // pred_check
          %p475 = pneg %p67
        $region84: #{two_stream_forward.1} parent=55 // pred_check_branch
          %477 = sbr.rel (%p475) target = $region86
        $region85: #{two_stream_forward.1} parent=55 // pred_region
          %s478 = smul.u32 80, %s21
          %p479 = scmp.lt.s32.totalorder %s478, 159
          %s480 = scalar_select %p479, %s478, 159
          %s481 = smul.addr %s480, 2
          %s482 = smul.addr %s481, 4
          %s483 = scalar_lea.vmem %s1, %s482
          %s484 = smul.u32 80, %s21
        $region86: #{two_stream_forward.1} parent=55 // pred_fallthru
          _
        // Predicated region
        $region87: #{two_stream_forward.1} parent=55 // pred_check
          %p485 = pneg %p93
        $region88: #{two_stream_forward.1} parent=55 // pred_check_branch
          %487 = sbr.rel (%p485) target = $region90
        $region89: #{two_stream_forward.1} parent=55 // pred_region
          %s488 = sand.u32 %s83, 1
          %s489 = sand.u32 %s83, 1
          %s490 = smul.addr %s489, 120
          %s491 = scalar_lea.vmem [#allocation5], %s490
          %s492 = smul.u32 5, %s21
          %s493 = smul.addr %s492, 4
          %s494 = scalar_lea.vmem %s2, %s493
          // Predicated region
          $region91: #{two_stream_forward.1} parent=89 // pred_check
            _
          $region92: #{two_stream_forward.1} parent=89 // pred_check_branch
            %496 = sbr.rel (0) target = $region94
          $region93: #{two_stream_forward.1} parent=89 // pred_region
            // Predicated region
            $region95: #{two_stream_forward.1} parent=93 // pred_check
              _
            $region96: #{two_stream_forward.1} parent=93 // pred_check_branch
              %498 = sbr.rel (0) target = $region98
            $region97: #{two_stream_forward.1} parent=93 // pred_region
              %s499 = scalar_lea.vmem %s494, 16
              %s500 = scalar_lea.vmem %s491, 16 [#allocation5]
              loop: start=0, step=1, limit=1
              $region99: #{two_stream_forward.1} parent=97 // loop_pre_header
                _
              $region100: #{two_stream_forward.1} parent=97 // loop_header
                %s502 = sphi 0, %s506
                %p503 = scmp.ge.s32.totalorder %s502, 1
                %s507 = sphi %s494, %s494
                %s508 = sphi %s491, %s491
              $region101: #{two_stream_forward.1} parent=97 // loop_header_branch
                %505 = sbr.rel (%p503) target = $region105
              $region102: #{two_stream_forward.1} parent=97 // loop_body
                %v509 = vld [vmem:[%s507] sm:$0xff]
                %510 = vst [vmem:[%s508] sm:$0xff] %v509
                %v511 = vld [vmem:[%s507 + $0x8] sm:$0xff]
                %512 = vst [vmem:[%s508 + $0x8] sm:$0xff] %v511
                %v513 = vld [vmem:[%s507 + $0x28] sm:$0xff]
                %514 = vst [vmem:[%s508 + $0x14] sm:$0xff] %v513
                %v515 = vld [vmem:[%s507 + $0x30] sm:$0xff]
                %516 = vst [vmem:[%s508 + $0x1c] sm:$0xff] %v515
                %v517 = vld [vmem:[%s507 + $0x50] sm:$0xff]
                %518 = vst [vmem:[%s508 + $0x28] sm:$0xff] %v517
                %v519 = vld [vmem:[%s507 + $0x58] sm:$0xff]
                %520 = vst [vmem:[%s508 + $0x30] sm:$0xff] %v519
                %v521 = vld [vmem:[%s507 + $0x78] sm:$0xff]
                %522 = vst [vmem:[%s508 + $0x3c] sm:$0xff] %v521
                %v523 = vld [vmem:[%s507 + $0x80] sm:$0xff]
                %524 = vst [vmem:[%s508 + $0x44] sm:$0xff] %v523
                %v525 = vld [vmem:[%s507 + $0xa0] sm:$0xff]
                %526 = vst [vmem:[%s508 + $0x50] sm:$0xff] %v525
                %v527 = vld [vmem:[%s507 + $0xa8] sm:$0xff]
                %528 = vst [vmem:[%s508 + $0x58] sm:$0xff] %v527
                %v529 = vld [vmem:[%s507 + $0xc8] sm:$0xff]
                %530 = vst [vmem:[%s508 + $0x64] sm:$0xff] %v529
                %v531 = vld [vmem:[%s507 + $0xd0] sm:$0xff]
                %532 = vst [vmem:[%s508 + $0x6c] sm:$0xff] %v531
              $region103: #{two_stream_forward.1} parent=97 // loop_footer
                %s506 = sadd.s32 1, %s502
              $region104: #{two_stream_forward.1} parent=97 // loop_footer_branch
                %501 = sbr.rel target = $region100
              $region105: #{two_stream_forward.1} parent=97 // loop_exit
                _
              loop: start=0, step=1, limit=1
              $region106: #{two_stream_forward.1} parent=97 // loop_pre_header
                _
              $region107: #{two_stream_forward.1} parent=97 // loop_header
                %s535 = sphi 0, %s539
                %p536 = scmp.ge.s32.totalorder %s535, 1
                %s540 = sphi %s499, %s499
                %s541 = sphi %s500, %s500
              $region108: #{two_stream_forward.1} parent=97 // loop_header_branch
                %538 = sbr.rel (%p536) target = $region112
              $region109: #{two_stream_forward.1} parent=97 // loop_body
                %v542 = vld [vmem:[%s540] sm:$0xf]
                %543 = vst [vmem:[%s541] sm:$0xf] %v542
                %v544 = vld [vmem:[%s540 + $0x28] sm:$0xf]
                %545 = vst [vmem:[%s541 + $0x14] sm:$0xf] %v544
                %v546 = vld [vmem:[%s540 + $0x50] sm:$0xf]
                %547 = vst [vmem:[%s541 + $0x28] sm:$0xf] %v546
                %v548 = vld [vmem:[%s540 + $0x78] sm:$0xf]
                %549 = vst [vmem:[%s541 + $0x3c] sm:$0xf] %v548
                %v550 = vld [vmem:[%s540 + $0xa0] sm:$0xf]
                %551 = vst [vmem:[%s541 + $0x50] sm:$0xf] %v550
                %v552 = vld [vmem:[%s540 + $0xc8] sm:$0xf]
                %553 = vst [vmem:[%s541 + $0x64] sm:$0xf] %v552
              $region110: #{two_stream_forward.1} parent=97 // loop_footer
                %s539 = sadd.s32 1, %s535
              $region111: #{two_stream_forward.1} parent=97 // loop_footer_branch
                %534 = sbr.rel target = $region107
              $region112: #{two_stream_forward.1} parent=97 // loop_exit
                _
            $region98: #{two_stream_forward.1} parent=93 // pred_fallthru
              _
          $region94: #{two_stream_forward.1} parent=89 // pred_fallthru
            _
          %554 = vnop
        $region90: #{two_stream_forward.1} parent=55 // pred_fallthru
          _
        // Predicated region
        $region113: #{two_stream_forward.1} parent=55 // pred_check
          %p555 = pneg %p119
        $region114: #{two_stream_forward.1} parent=55 // pred_check_branch
          %557 = sbr.rel (%p555) target = $region116
        $region115: #{two_stream_forward.1} parent=55 // pred_region
          %s558 = smul.u32 80, %s21
          %p559 = scmp.lt.s32.totalorder %s558, 159
          %s560 = scalar_select %p559, %s558, 159
          %s561 = smul.addr %s560, 4
          %s562 = scalar_lea.vmem %s3, %s561
          %s563 = smul.u32 80, %s21
        $region116: #{two_stream_forward.1} parent=55 // pred_fallthru
          _
      $region56: #{two_stream_forward.1} parent=5 // pred_fallthru
        _
      %p564 = scmp.le.s32.totalorder 1, %s21
      %p565 = scmp.lt.s32.totalorder %s21, 3
      %p566 = pnand %p564, %p565
      %p567 = pneg %p566
      // Predicated region
      $region117: #{two_stream_forward.1} parent=5 // pred_check
        _
      $region118: #{two_stream_forward.1} parent=5 // pred_check_branch
        %569 = sbr.rel (%p566) target = $region120
      $region119: #{two_stream_forward.1} parent=5 // pred_region
        %s570 = ssub.s32 %s21, 1
        %s571 = sand.u32 %s34, 1
        %s572 = sand.u32 %s34, 1
        %s573 = smul.addr %s572, 120
        %s574 = scalar_lea.vmem [#allocation4], %s573
        // Predicated region
        $region121: #{two_stream_forward.1} parent=119 // pred_check
          %p575 = pneg %p47
        $region122: #{two_stream_forward.1} parent=119 // pred_check_branch
          %577 = sbr.rel (%p575) target = $region124
        $region123: #{two_stream_forward.1} parent=119 // pred_region
          _
        $region124: #{two_stream_forward.1} parent=119 // pred_fallthru
          _
        %s578 = sand.u32 %s86, 1
        %s579 = sand.u32 %s86, 1
        %s580 = smul.addr %s579, 120
        %s581 = scalar_lea.vmem [#allocation5], %s580
        // Predicated region
        $region125: #{two_stream_forward.1} parent=119 // pred_check
          %p582 = pneg %p99
        $region126: #{two_stream_forward.1} parent=119 // pred_check_branch
          %584 = sbr.rel (%p582) target = $region128
        $region127: #{two_stream_forward.1} parent=119 // pred_region
          _
        $region128: #{two_stream_forward.1} parent=119 // pred_fallthru
          _
        %s585 = sand.u32 %s34, 1
        %s586 = sand.u32 %s34, 1
        %s587 = smul.addr %s586, 120
        %s588 = scalar_lea.vmem [#allocation4], %s587
        %p589 = pneg %p47
        %p590 = pneg %p44
        %s591 = smul.u32 80, %s26
        %p592 = scmp.lt.s32.totalorder %s591, 159
        %s593 = scalar_select %p592, %s591, 159
        %s594 = smul.addr %s593, 2
        %s595 = smul.addr %s594, 4
        %s596 = scalar_lea.vmem %s1, %s595
        %p597 = pneg %p73
        %p598 = pneg %p70
        %s599 = sand.u32 %s86, 1
        %s600 = sand.u32 %s86, 1
        %s601 = smul.addr %s600, 120
        %s602 = scalar_lea.vmem [#allocation5], %s601
        %p603 = pneg %p99
        %p604 = pneg %p96
        %s605 = smul.u32 80, %s26
        %p606 = scmp.lt.s32.totalorder %s605, 159
        %s607 = scalar_select %p606, %s605, 159
        %s608 = smul.addr %s607, 4
        %s609 = scalar_lea.vmem %s3, %s608
        %p610 = pneg %p125
        %p611 = pneg %p122
        %p612 = pneg %p146
        %p613 = pneg %p143
        %p614 = pneg %p167
        %p615 = pneg %p164
        %p616 = pneg %p188
        %p617 = pneg %p185
        %p618 = pneg %p209
        %p619 = pneg %p206
        %p620 = pneg %p230
        %p621 = pneg %p227
        %p622 = pneg %p251
        %p623 = pneg %p248
        %p624 = pneg %p272
        %p625 = pneg %p269
        %p626 = pneg %p293
        %p627 = pneg %p290
        %p628 = pneg %p314
        %p629 = pneg %p311
        %p630 = pneg %p335
        %p631 = pneg %p332
        %p632 = pneg %p356
        %p633 = pneg %p353
        %s634 = smul.u32 5, %s26
        %s635 = smul.u32 80, %s26
        %p636 = scmp.lt.s32.totalorder %s635, 159
        %s637 = scalar_select %p636, %s635, 159
        %s638 = smul.addr %s637, 2
        %s639 = smul.addr %s638, 4
        %s640 = scalar_lea.vmem %s1, %s639
        %s641 = smul.u32 80, %s26
        %s642 = smul.u32 5, %s26
        %s643 = smul.u32 80, %s26
        %p644 = scmp.lt.s32.totalorder %s643, 159
        %s645 = scalar_select %p644, %s643, 159
        %s646 = smul.addr %s645, 4
        %s647 = scalar_lea.vmem %s3, %s646
        %s648 = smul.u32 80, %s26
        %p650 = scmp.eq.s32.totalorder %s26, 0
        // Predicated region
        $region129: #{two_stream_forward.1} parent=119 // pred_check
          %p651 = pneg %p650
        $region130: #{two_stream_forward.1} parent=119 // pred_check_branch
          %653 = sbr.rel (%p651) target = $region132
        $region131: #{two_stream_forward.1} parent=119 // pred_region
          %654 = vst [vmem:[#allocation2] sm:$0xff] 0.0
          %655 = vst [vmem:[#allocation2 + $0x8] sm:$0xff] 0.0
          %656 = vst [vmem:[#allocation2 + $0x10] sm:$0xff] 0.0
          %657 = vst [vmem:[#allocation2 + $0x18] sm:$0xff] 0.0
          %658 = vst [vmem:[#allocation2 + $0x20] sm:$0x1f] 0.0
          %659 = vst [vmem:[#allocation2 + $0x28] sm:$0x1f] 0.0
          %660 = vst [vmem:[#allocation2 + $0x30] sm:$0xff] 0.0
          %661 = vst [vmem:[#allocation2 + $0x38] sm:$0xff] 0.0
          %662 = vst [vmem:[#allocation2 + $0x40] sm:$0xff] 0.0
          %663 = vst [vmem:[#allocation2 + $0x48] sm:$0xff] 0.0
          %664 = vst [vmem:[#allocation2 + $0x50] sm:$0x1f] 0.0
          %665 = vst [vmem:[#allocation2 + $0x58] sm:$0x1f] 0.0
          %666 = vst [vmem:[#allocation3] sm:$0xff] 0.0
          %667 = vst [vmem:[#allocation3 + $0x8] sm:$0xff] 0.0
          %668 = vst [vmem:[#allocation3 + $0x10] sm:$0x1f] 0.0
          %669 = vst [vmem:[#allocation3 + $0x18] sm:$0xff] 0.0
          %670 = vst [vmem:[#allocation3 + $0x20] sm:$0xff] 0.0
          %671 = vst [vmem:[#allocation3 + $0x28] sm:$0x1f] 0.0
        $region132: #{two_stream_forward.1} parent=119 // pred_fallthru
          _
        %v672 = vld [vmem:[#allocation2] sm:$0xff]
        %v673 = vld [vmem:[#allocation2 + $0x8] sm:$0xff]
        %v674 = vld [vmem:[#allocation2 + $0x10] sm:$0xff]
        %v675 = vld [vmem:[#allocation2 + $0x18] sm:$0xff]
        %v676 = vld [vmem:[#allocation2 + $0x20] sm:$0x1f]
        %v677 = vld [vmem:[#allocation2 + $0x28] sm:$0x1f]
        %v678 = vld [vmem:[#allocation2 + $0x30] sm:$0xff]
        %v679 = vld [vmem:[#allocation2 + $0x38] sm:$0xff]
        %v680 = vld [vmem:[#allocation2 + $0x40] sm:$0xff]
        %v681 = vld [vmem:[#allocation2 + $0x48] sm:$0xff]
        %v682 = vld [vmem:[#allocation2 + $0x50] sm:$0x1f]
        %v683 = vld [vmem:[#allocation2 + $0x58] sm:$0x1f]
        %v684 = vld [vmem:[%s574] sm:$0xff]
        %v685 = vld [vmem:[%s574 + $0x8] sm:$0xff]
        %v686 = vld [vmem:[%s574 + $0x10] sm:$0xf]
        %v687 = vld [vmem:[%s574 + $0x14] sm:$0xff]
        %v688 = vld [vmem:[%s574 + $0x1c] sm:$0xff]
        %v689 = vld [vmem:[%s574 + $0x24] sm:$0xf]
        %v690 = vld [vmem:[%s574 + $0x28] sm:$0x77]
        %v691 = vld [vmem:[%s574 + $0x30] sm:$0x77]
        %v692 = vld [vmem:[%s574 + $0x38] sm:$0x7]
        %v693 = vld [vmem:[%s574 + $0x3c] sm:$0xff]
        %v694 = vld [vmem:[%s574 + $0x44] sm:$0xff]
        %v695 = vld [vmem:[%s574 + $0x4c] sm:$0xf]
        %v696 = vld [vmem:[%s574 + $0x50] sm:$0xff]
        %v697 = vld [vmem:[%s574 + $0x58] sm:$0xff]
        %v698 = vld [vmem:[%s574 + $0x60] sm:$0xf]
        %v699 = vld [vmem:[%s574 + $0x64] sm:$0x77]
        %v700 = vld [vmem:[%s574 + $0x6c] sm:$0x77]
        %v701 = vld [vmem:[%s574 + $0x74] sm:$0x7]
        %v702 = vld [vmem:[%s640] sm:$0xff]
        %v703 = vld [vmem:[%s640 + $0x8] sm:$0xff]
        %v704 = vld [vmem:[%s640 + $0x10] sm:$0xff]
        %v705 = vld [vmem:[%s640 + $0x18] sm:$0xff]
        %v706 = vld [vmem:[%s640 + $0x20] sm:$0xff]
        %v707 = vld [vmem:[%s640 + $0x28] sm:$0xff]
        %v708 = vld [vmem:[%s640 + $0x30] sm:$0xff]
        %v709 = vld [vmem:[%s640 + $0x38] sm:$0xff]
        %v710 = vld [vmem:[%s640 + $0x40] sm:$0xff]
        %v711 = vld [vmem:[%s640 + $0x48] sm:$0xff]
        %v712 = vld [vmem:[%s640 + $0x50] sm:$0xff]
        %v713 = vld [vmem:[%s640 + $0x58] sm:$0xff]
        %v714 = vld [vmem:[%s640 + $0x60] sm:$0xff]
        %v715 = vld [vmem:[%s640 + $0x68] sm:$0xff]
        %v716 = vld [vmem:[%s640 + $0x70] sm:$0xff]
        %v717 = vld [vmem:[%s640 + $0x78] sm:$0xff]
        %v718 = vld [vmem:[%s640 + $0x80] sm:$0xff]
        %v719 = vld [vmem:[%s640 + $0x88] sm:$0xff]
        %v720 = vld [vmem:[%s640 + $0x90] sm:$0xff]
        %v721 = vld [vmem:[%s640 + $0x98] sm:$0xff]
        %v722 = vld [vmem:[%s640 + $0xa0] sm:$0xff]
        %v723 = vld [vmem:[%s640 + $0xa8] sm:$0xff]
        %v724 = vld [vmem:[%s640 + $0xb0] sm:$0xff]
        %v725 = vld [vmem:[%s640 + $0xb8] sm:$0xff]
        %v726 = vld [vmem:[%s640 + $0xc0] sm:$0xff]
        %v727 = vld [vmem:[%s640 + $0xc8] sm:$0xff]
        %v728 = vld [vmem:[%s640 + $0xd0] sm:$0xff]
        %v729 = vld [vmem:[%s640 + $0xd8] sm:$0xff]
        %v730 = vld [vmem:[%s640 + $0xe0] sm:$0xff]
        %v731 = vld [vmem:[%s640 + $0xe8] sm:$0xff]
        %v732 = vld [vmem:[%s640 + $0xf0] sm:$0xff]
        %v733 = vld [vmem:[%s640 + $0xf8] sm:$0xff]
        %v734 = vld [vmem:[%s640 + $0x100] sm:$0xff]
        %v735 = vld [vmem:[%s640 + $0x108] sm:$0xff]
        %v736 = vld [vmem:[%s640 + $0x110] sm:$0xff]
        %v737 = vld [vmem:[%s640 + $0x118] sm:$0xff]
        %v738 = vld [vmem:[%s640 + $0x120] sm:$0xff]
        %v739 = vld [vmem:[%s640 + $0x128] sm:$0xff]
        %v740 = vld [vmem:[%s640 + $0x130] sm:$0xff]
        %v741 = vld [vmem:[%s640 + $0x138] sm:$0xff]
        %v742 = vld [vmem:[%s640 + $0x140] sm:$0xff]
        %v743 = vld [vmem:[%s640 + $0x148] sm:$0xff]
        %v744 = vld [vmem:[%s640 + $0x150] sm:$0xff]
        %v745 = vld [vmem:[%s640 + $0x158] sm:$0xff]
        %v746 = vld [vmem:[%s640 + $0x160] sm:$0xff]
        %v747 = vld [vmem:[%s640 + $0x168] sm:$0xff]
        %v748 = vld [vmem:[%s640 + $0x170] sm:$0xff]
        %v749 = vld [vmem:[%s640 + $0x178] sm:$0xff]
        %v750 = vld [vmem:[%s640 + $0x180] sm:$0xff]
        %v751 = vld [vmem:[%s640 + $0x188] sm:$0xff]
        %v752 = vld [vmem:[%s640 + $0x190] sm:$0xff]
        %v753 = vld [vmem:[%s640 + $0x198] sm:$0xff]
        %v754 = vld [vmem:[%s640 + $0x1a0] sm:$0xff]
        %v755 = vld [vmem:[%s640 + $0x1a8] sm:$0xff]
        %v756 = vld [vmem:[%s640 + $0x1b0] sm:$0xff]
        %v757 = vld [vmem:[%s640 + $0x1b8] sm:$0xff]
        %v758 = vld [vmem:[%s640 + $0x1c0] sm:$0xff]
        %v759 = vld [vmem:[%s640 + $0x1c8] sm:$0xff]
        %v760 = vld [vmem:[%s640 + $0x1d0] sm:$0xff]
        %v761 = vld [vmem:[%s640 + $0x1d8] sm:$0xff]
        %v762 = vld [vmem:[%s640 + $0x1e0] sm:$0xff]
        %v763 = vld [vmem:[%s640 + $0x1e8] sm:$0xff]
        %v764 = vld [vmem:[%s640 + $0x1f0] sm:$0xff]
        %v765 = vld [vmem:[%s640 + $0x1f8] sm:$0xff]
        %v766 = vld [vmem:[%s640 + $0x200] sm:$0xff]
        %v767 = vld [vmem:[%s640 + $0x208] sm:$0xff]
        %v768 = vld [vmem:[%s640 + $0x210] sm:$0xff]
        %v769 = vld [vmem:[%s640 + $0x218] sm:$0xff]
        %v770 = vld [vmem:[%s640 + $0x220] sm:$0xff]
        %v771 = vld [vmem:[%s640 + $0x228] sm:$0xff]
        %v772 = vld [vmem:[%s640 + $0x230] sm:$0xff]
        %v773 = vld [vmem:[%s640 + $0x238] sm:$0xff]
        %v774 = vld [vmem:[%s640 + $0x240] sm:$0xff]
        %v775 = vld [vmem:[%s640 + $0x248] sm:$0xff]
        %v776 = vld [vmem:[%s640 + $0x250] sm:$0xff]
        %v777 = vld [vmem:[%s640 + $0x258] sm:$0xff]
        %v778 = vld [vmem:[%s640 + $0x260] sm:$0xff]
        %v779 = vld [vmem:[%s640 + $0x268] sm:$0xff]
        %v780 = vld [vmem:[%s640 + $0x270] sm:$0xff]
        %v781 = vld [vmem:[%s640 + $0x278] sm:$0xff]
        %v801 = vunpack.c.l.s4 1966171168
        %v802 = vunpack.c.0.s8 %v801
        %v803 = vlaneseq
        %v804 = vshrl.u32 %v803, 7
        %v805 = vsub.s32 %v802, %v804
        %v806 = vrot.slane %v684, %v805
        %v808 = vunpack.c.l.s4 1966171168
        %v809 = vunpack.c.0.s8 %v808
        %v810 = vlaneseq
        %v811 = vshrl.u32 %v810, 7
        %v812 = vsub.s32 %v809, %v811
        %v813 = vrot.slane %v685, %v812
        %v815 = vunpack.c.l.s4 1966171168
        %v816 = vunpack.c.0.s8 %v815
        %v817 = vlaneseq
        %v818 = vshrl.u32 %v817, 7
        %v819 = vsub.s32 %v816, %v818
        %v820 = vrot.slane %v686, %v819
        %v821 = vcombine.low %v806, %v813
        %v822 = vcombine.high %v806, %v813
        %v823 = vcombine.high %v820, %v820
        %v825 = vunpack.c.l.s4 1966171168
        %v826 = vunpack.c.0.s8 %v825
        %v827 = vlaneseq
        %v828 = vshrl.u32 %v827, 7
        %v829 = vsub.s32 %v826, %v828
        %v830 = vrot.slane %v821, %v829
        %v832 = vunpack.c.l.s4 1966171168
        %v833 = vunpack.c.0.s8 %v832
        %v834 = vlaneseq
        %v835 = vshrl.u32 %v834, 7
        %v836 = vsub.s32 %v833, %v835
        %v837 = vrot.slane %v822, %v836
        %v839 = vunpack.c.l.s4 1966171168
        %v840 = vunpack.c.0.s8 %v839
        %v841 = vlaneseq
        %v842 = vshrl.u32 %v841, 7
        %v843 = vsub.s32 %v840, %v842
        %v844 = vrot.slane %v820, %v843
        %v846 = vunpack.c.l.s4 1966171168
        %v847 = vunpack.c.0.s8 %v846
        %v848 = vlaneseq
        %v849 = vshrl.u32 %v848, 7
        %v850 = vsub.s32 %v847, %v849
        %v851 = vrot.slane %v823, %v850
        %v852 = vcombine.low %v830, %v844
        %v853 = vcombine.high %v830, %v844
        %v854 = vcombine.low %v837, %v851
        %v855 = vcombine.high %v837, %v851
        %v857 = vunpack.c.l.s4 1966171168
        %v858 = vunpack.c.0.s8 %v857
        %v859 = vlaneseq
        %v860 = vshrl.u32 %v859, 7
        %v861 = vsub.s32 %v858, %v860
        %v862 = vrot.slane %v687, %v861
        %v864 = vunpack.c.l.s4 1966171168
        %v865 = vunpack.c.0.s8 %v864
        %v866 = vlaneseq
        %v867 = vshrl.u32 %v866, 7
        %v868 = vsub.s32 %v865, %v867
        %v869 = vrot.slane %v688, %v868
        %v871 = vunpack.c.l.s4 1966171168
        %v872 = vunpack.c.0.s8 %v871
        %v873 = vlaneseq
        %v874 = vshrl.u32 %v873, 7
        %v875 = vsub.s32 %v872, %v874
        %v876 = vrot.slane %v689, %v875
        %v877 = vcombine.low %v862, %v869
        %v878 = vcombine.high %v862, %v869
        %v879 = vcombine.high %v876, %v876
        %v881 = vunpack.c.l.s4 1966171168
        %v882 = vunpack.c.0.s8 %v881
        %v883 = vlaneseq
        %v884 = vshrl.u32 %v883, 7
        %v885 = vsub.s32 %v882, %v884
        %v886 = vrot.slane %v877, %v885
        %v888 = vunpack.c.l.s4 1966171168
        %v889 = vunpack.c.0.s8 %v888
        %v890 = vlaneseq
        %v891 = vshrl.u32 %v890, 7
        %v892 = vsub.s32 %v889, %v891
        %v893 = vrot.slane %v878, %v892
        %v895 = vunpack.c.l.s4 1966171168
        %v896 = vunpack.c.0.s8 %v895
        %v897 = vlaneseq
        %v898 = vshrl.u32 %v897, 7
        %v899 = vsub.s32 %v896, %v898
        %v900 = vrot.slane %v876, %v899
        %v902 = vunpack.c.l.s4 1966171168
        %v903 = vunpack.c.0.s8 %v902
        %v904 = vlaneseq
        %v905 = vshrl.u32 %v904, 7
        %v906 = vsub.s32 %v903, %v905
        %v907 = vrot.slane %v879, %v906
        %v908 = vcombine.low %v886, %v900
        %v909 = vcombine.high %v886, %v900
        %v910 = vcombine.low %v893, %v907
        %v911 = vcombine.high %v893, %v907
        %v913 = vunpack.c.l.s4 1966171168
        %v914 = vunpack.c.0.s8 %v913
        %v915 = vlaneseq
        %v916 = vshrl.u32 %v915, 7
        %v917 = vsub.s32 %v914, %v916
        %v918 = vrot.slane %v690, %v917
        %v920 = vunpack.c.l.s4 1966171168
        %v921 = vunpack.c.0.s8 %v920
        %v922 = vlaneseq
        %v923 = vshrl.u32 %v922, 7
        %v924 = vsub.s32 %v921, %v923
        %v925 = vrot.slane %v691, %v924
        %v927 = vunpack.c.l.s4 1966171168
        %v928 = vunpack.c.0.s8 %v927
        %v929 = vlaneseq
        %v930 = vshrl.u32 %v929, 7
        %v931 = vsub.s32 %v928, %v930
        %v932 = vrot.slane %v692, %v931
        %v933 = vcombine.low %v918, %v925
        %v934 = vcombine.high %v918, %v925
        %v935 = vcombine.high %v932, %v932
        %v937 = vunpack.c.l.s4 1966171168
        %v938 = vunpack.c.0.s8 %v937
        %v939 = vlaneseq
        %v940 = vshrl.u32 %v939, 7
        %v941 = vsub.s32 %v938, %v940
        %v942 = vrot.slane %v933, %v941
        %v944 = vunpack.c.l.s4 1966171168
        %v945 = vunpack.c.0.s8 %v944
        %v946 = vlaneseq
        %v947 = vshrl.u32 %v946, 7
        %v948 = vsub.s32 %v945, %v947
        %v949 = vrot.slane %v934, %v948
        %v951 = vunpack.c.l.s4 1966171168
        %v952 = vunpack.c.0.s8 %v951
        %v953 = vlaneseq
        %v954 = vshrl.u32 %v953, 7
        %v955 = vsub.s32 %v952, %v954
        %v956 = vrot.slane %v932, %v955
        %v958 = vunpack.c.l.s4 1966171168
        %v959 = vunpack.c.0.s8 %v958
        %v960 = vlaneseq
        %v961 = vshrl.u32 %v960, 7
        %v962 = vsub.s32 %v959, %v961
        %v963 = vrot.slane %v935, %v962
        %v964 = vcombine.low %v942, %v956
        %v965 = vcombine.high %v942, %v956
        %v966 = vcombine.low %v949, %v963
        %v968 = vunpack.c.l.s4 1966171168
        %v969 = vunpack.c.0.s8 %v968
        %v970 = vlaneseq
        %v971 = vshrl.u32 %v970, 7
        %v972 = vsub.s32 %v969, %v971
        %v973 = vrot.slane %v693, %v972
        %v975 = vunpack.c.l.s4 1966171168
        %v976 = vunpack.c.0.s8 %v975
        %v977 = vlaneseq
        %v978 = vshrl.u32 %v977, 7
        %v979 = vsub.s32 %v976, %v978
        %v980 = vrot.slane %v694, %v979
        %v982 = vunpack.c.l.s4 1966171168
        %v983 = vunpack.c.0.s8 %v982
        %v984 = vlaneseq
        %v985 = vshrl.u32 %v984, 7
        %v986 = vsub.s32 %v983, %v985
        %v987 = vrot.slane %v695, %v986
        %v988 = vcombine.low %v973, %v980
        %v989 = vcombine.high %v973, %v980
        %v990 = vcombine.high %v987, %v987
        %v992 = vunpack.c.l.s4 1966171168
        %v993 = vunpack.c.0.s8 %v992
        %v994 = vlaneseq
        %v995 = vshrl.u32 %v994, 7
        %v996 = vsub.s32 %v993, %v995
        %v997 = vrot.slane %v988, %v996
        %v999 = vunpack.c.l.s4 1966171168
        %v1000 = vunpack.c.0.s8 %v999
        %v1001 = vlaneseq
        %v1002 = vshrl.u32 %v1001, 7
        %v1003 = vsub.s32 %v1000, %v1002
        %v1004 = vrot.slane %v989, %v1003
        %v1006 = vunpack.c.l.s4 1966171168
        %v1007 = vunpack.c.0.s8 %v1006
        %v1008 = vlaneseq
        %v1009 = vshrl.u32 %v1008, 7
        %v1010 = vsub.s32 %v1007, %v1009
        %v1011 = vrot.slane %v987, %v1010
        %v1013 = vunpack.c.l.s4 1966171168
        %v1014 = vunpack.c.0.s8 %v1013
        %v1015 = vlaneseq
        %v1016 = vshrl.u32 %v1015, 7
        %v1017 = vsub.s32 %v1014, %v1016
        %v1018 = vrot.slane %v990, %v1017
        %v1019 = vcombine.low %v997, %v1011
        %v1020 = vcombine.high %v997, %v1011
        %v1021 = vcombine.low %v1004, %v1018
        %v1022 = vcombine.high %v1004, %v1018
        %v1024 = vunpack.c.l.s4 1966171168
        %v1025 = vunpack.c.0.s8 %v1024
        %v1026 = vlaneseq
        %v1027 = vshrl.u32 %v1026, 7
        %v1028 = vsub.s32 %v1025, %v1027
        %v1029 = vrot.slane %v696, %v1028
        %v1031 = vunpack.c.l.s4 1966171168
        %v1032 = vunpack.c.0.s8 %v1031
        %v1033 = vlaneseq
        %v1034 = vshrl.u32 %v1033, 7
        %v1035 = vsub.s32 %v1032, %v1034
        %v1036 = vrot.slane %v697, %v1035
        %v1038 = vunpack.c.l.s4 1966171168
        %v1039 = vunpack.c.0.s8 %v1038
        %v1040 = vlaneseq
        %v1041 = vshrl.u32 %v1040, 7
        %v1042 = vsub.s32 %v1039, %v1041
        %v1043 = vrot.slane %v698, %v1042
        %v1044 = vcombine.low %v1029, %v1036
        %v1045 = vcombine.high %v1029, %v1036
        %v1046 = vcombine.high %v1043, %v1043
        %v1048 = vunpack.c.l.s4 1966171168
        %v1049 = vunpack.c.0.s8 %v1048
        %v1050 = vlaneseq
        %v1051 = vshrl.u32 %v1050, 7
        %v1052 = vsub.s32 %v1049, %v1051
        %v1053 = vrot.slane %v1044, %v1052
        %v1055 = vunpack.c.l.s4 1966171168
        %v1056 = vunpack.c.0.s8 %v1055
        %v1057 = vlaneseq
        %v1058 = vshrl.u32 %v1057, 7
        %v1059 = vsub.s32 %v1056, %v1058
        %v1060 = vrot.slane %v1045, %v1059
        %v1062 = vunpack.c.l.s4 1966171168
        %v1063 = vunpack.c.0.s8 %v1062
        %v1064 = vlaneseq
        %v1065 = vshrl.u32 %v1064, 7
        %v1066 = vsub.s32 %v1063, %v1065
        %v1067 = vrot.slane %v1043, %v1066
        %v1069 = vunpack.c.l.s4 1966171168
        %v1070 = vunpack.c.0.s8 %v1069
        %v1071 = vlaneseq
        %v1072 = vshrl.u32 %v1071, 7
        %v1073 = vsub.s32 %v1070, %v1072
        %v1074 = vrot.slane %v1046, %v1073
        %v1075 = vcombine.low %v1053, %v1067
        %v1076 = vcombine.high %v1053, %v1067
        %v1077 = vcombine.low %v1060, %v1074
        %v1078 = vcombine.high %v1060, %v1074
        %v1080 = vunpack.c.l.s4 1966171168
        %v1081 = vunpack.c.0.s8 %v1080
        %v1082 = vlaneseq
        %v1083 = vshrl.u32 %v1082, 7
        %v1084 = vsub.s32 %v1081, %v1083
        %v1085 = vrot.slane %v699, %v1084
        %v1087 = vunpack.c.l.s4 1966171168
        %v1088 = vunpack.c.0.s8 %v1087
        %v1089 = vlaneseq
        %v1090 = vshrl.u32 %v1089, 7
        %v1091 = vsub.s32 %v1088, %v1090
        %v1092 = vrot.slane %v700, %v1091
        %v1094 = vunpack.c.l.s4 1966171168
        %v1095 = vunpack.c.0.s8 %v1094
        %v1096 = vlaneseq
        %v1097 = vshrl.u32 %v1096, 7
        %v1098 = vsub.s32 %v1095, %v1097
        %v1099 = vrot.slane %v701, %v1098
        %v1100 = vcombine.low %v1085, %v1092
        %v1101 = vcombine.high %v1085, %v1092
        %v1102 = vcombine.high %v1099, %v1099
        %v1104 = vunpack.c.l.s4 1966171168
        %v1105 = vunpack.c.0.s8 %v1104
        %v1106 = vlaneseq
        %v1107 = vshrl.u32 %v1106, 7
        %v1108 = vsub.s32 %v1105, %v1107
        %v1109 = vrot.slane %v1100, %v1108
        %v1111 = vunpack.c.l.s4 1966171168
        %v1112 = vunpack.c.0.s8 %v1111
        %v1113 = vlaneseq
        %v1114 = vshrl.u32 %v1113, 7
        %v1115 = vsub.s32 %v1112, %v1114
        %v1116 = vrot.slane %v1101, %v1115
        %v1118 = vunpack.c.l.s4 1966171168
        %v1119 = vunpack.c.0.s8 %v1118
        %v1120 = vlaneseq
        %v1121 = vshrl.u32 %v1120, 7
        %v1122 = vsub.s32 %v1119, %v1121
        %v1123 = vrot.slane %v1099, %v1122
        %v1125 = vunpack.c.l.s4 1966171168
        %v1126 = vunpack.c.0.s8 %v1125
        %v1127 = vlaneseq
        %v1128 = vshrl.u32 %v1127, 7
        %v1129 = vsub.s32 %v1126, %v1128
        %v1130 = vrot.slane %v1102, %v1129
        %v1131 = vcombine.low %v1109, %v1123
        %v1132 = vcombine.high %v1109, %v1123
        %v1133 = vcombine.low %v1116, %v1130
        %v1134 = vunpack.i.l.s16 %v852
        %v1135 = vunpack.i.h.s16 %v852
        %v1136 = vunpack.i.l.s16 %v854
        %v1137 = vunpack.i.h.s16 %v854
        %v1138 = vunpack.i.l.s16 %v853
        %v1139 = vunpack.i.h.s16 %v853
        %v1140 = vunpack.i.l.s16 %v855
        %v1141 = vunpack.i.h.s16 %v855
        %v1142 = vunpack.i.l.s16 %v908
        %v1143 = vunpack.i.h.s16 %v908
        %v1144 = vunpack.i.l.s16 %v910
        %v1145 = vunpack.i.h.s16 %v910
        %v1146 = vunpack.i.l.s16 %v909
        %v1147 = vunpack.i.h.s16 %v909
        %v1148 = vunpack.i.l.s16 %v911
        %v1149 = vunpack.i.h.s16 %v911
        %v1150 = vunpack.i.l.s16 %v964
        %v1151 = vunpack.i.h.s16 %v964
        %v1152 = vunpack.i.l.s16 %v966
        %v1153 = vunpack.i.h.s16 %v966
        %v1154 = vunpack.i.l.s16 %v965
        %v1155 = vunpack.i.l.s16 %v1019
        %v1156 = vunpack.i.h.s16 %v1019
        %v1157 = vunpack.i.l.s16 %v1021
        %v1158 = vunpack.i.h.s16 %v1021
        %v1159 = vunpack.i.l.s16 %v1020
        %v1160 = vunpack.i.h.s16 %v1020
        %v1161 = vunpack.i.l.s16 %v1022
        %v1162 = vunpack.i.h.s16 %v1022
        %v1163 = vunpack.i.l.s16 %v1075
        %v1164 = vunpack.i.h.s16 %v1075
        %v1165 = vunpack.i.l.s16 %v1077
        %v1166 = vunpack.i.h.s16 %v1077
        %v1167 = vunpack.i.l.s16 %v1076
        %v1168 = vunpack.i.h.s16 %v1076
        %v1169 = vunpack.i.l.s16 %v1078
        %v1170 = vunpack.i.h.s16 %v1078
        %v1171 = vunpack.i.l.s16 %v1131
        %v1172 = vunpack.i.h.s16 %v1131
        %v1173 = vunpack.i.l.s16 %v1133
        %v1174 = vunpack.i.h.s16 %v1133
        %v1175 = vunpack.i.l.s16 %v1132
        %v1176 = vpack.i.b16 %v1135, %v1134
        %v1177 = vpack.i.b16 %v1137, %v1136
        %v1178 = vpack.i.b16 %v1139, %v1138
        %v1179 = vpack.i.b16 %v1141, %v1140
        %v1180 = vpack.i.b16 %v1143, %v1142
        %v1181 = vpack.i.b16 %v1145, %v1144
        %v1182 = vpack.i.b16 %v1147, %v1146
        %v1183 = vpack.i.b16 %v1149, %v1148
        %v1184 = vpack.i.b16 %v1151, %v1150
        %v1185 = vpack.i.b16 %v1153, %v1152
        %v1186 = vpack.i.b16 %v1155, %v1154
        %v1187 = vpack.i.b16 %v1157, %v1156
        %v1188 = vpack.i.b16 %v1159, %v1158
        %v1189 = vpack.i.b16 %v1161, %v1160
        %v1190 = vpack.i.b16 %v1163, %v1162
        %v1191 = vpack.i.b16 %v1165, %v1164
        %v1192 = vpack.i.b16 %v1167, %v1166
        %v1193 = vpack.i.b16 %v1169, %v1168
        %v1194 = vpack.i.b16 %v1171, %v1170
        %v1195 = vpack.i.b16 %v1173, %v1172
        %v1196 = vpack.i.b16 %v1175, %v1174
        %v1197 = vcombine.low %v1176, %v1177
        %v1198 = vcombine.high %v1176, %v1177
        %v1199 = vcombine.low %v1178, %v1179
        %v1200 = vcombine.high %v1178, %v1179
        %v1201 = vcombine.low %v1180, %v1181
        %v1202 = vcombine.high %v1180, %v1181
        %v1203 = vcombine.low %v1182, %v1183
        %v1204 = vcombine.high %v1182, %v1183
        %v1206 = vunpack.c.l.s4 1966171168
        %v1207 = vunpack.c.0.s8 %v1206
        %v1208 = vlaneseq
        %v1209 = vshrl.u32 %v1208, 7
        %v1210 = vsub.s32 %v1207, %v1209
        %v1211 = vrot.slane %v1197, %v1210
        %v1213 = vunpack.c.l.s4 1966171168
        %v1214 = vunpack.c.0.s8 %v1213
        %v1215 = vlaneseq
        %v1216 = vshrl.u32 %v1215, 7
        %v1217 = vsub.s32 %v1214, %v1216
        %v1218 = vrot.slane %v1198, %v1217
        %v1220 = vunpack.c.l.s4 1966171168
        %v1221 = vunpack.c.0.s8 %v1220
        %v1222 = vlaneseq
        %v1223 = vshrl.u32 %v1222, 7
        %v1224 = vsub.s32 %v1221, %v1223
        %v1225 = vrot.slane %v1199, %v1224
        %v1227 = vunpack.c.l.s4 1966171168
        %v1228 = vunpack.c.0.s8 %v1227
        %v1229 = vlaneseq
        %v1230 = vshrl.u32 %v1229, 7
        %v1231 = vsub.s32 %v1228, %v1230
        %v1232 = vrot.slane %v1200, %v1231
        %v1234 = vunpack.c.l.s4 1966171168
        %v1235 = vunpack.c.0.s8 %v1234
        %v1236 = vlaneseq
        %v1237 = vshrl.u32 %v1236, 7
        %v1238 = vsub.s32 %v1235, %v1237
        %v1239 = vrot.slane %v1201, %v1238
        %v1241 = vunpack.c.l.s4 1966171168
        %v1242 = vunpack.c.0.s8 %v1241
        %v1243 = vlaneseq
        %v1244 = vshrl.u32 %v1243, 7
        %v1245 = vsub.s32 %v1242, %v1244
        %v1246 = vrot.slane %v1202, %v1245
        %v1248 = vunpack.c.l.s4 1966171168
        %v1249 = vunpack.c.0.s8 %v1248
        %v1250 = vlaneseq
        %v1251 = vshrl.u32 %v1250, 7
        %v1252 = vsub.s32 %v1249, %v1251
        %v1253 = vrot.slane %v1203, %v1252
        %v1255 = vunpack.c.l.s4 1966171168
        %v1256 = vunpack.c.0.s8 %v1255
        %v1257 = vlaneseq
        %v1258 = vshrl.u32 %v1257, 7
        %v1259 = vsub.s32 %v1256, %v1258
        %v1260 = vrot.slane %v1204, %v1259
        %v1261 = vcombine.low %v1211, %v1225
        %v1262 = vcombine.high %v1211, %v1225
        %v1263 = vcombine.low %v1218, %v1232
        %v1264 = vcombine.low %v1239, %v1253
        %v1265 = vcombine.high %v1239, %v1253
        %v1266 = vcombine.low %v1246, %v1260
        %v1268 = vunpack.c.l.s4 1966171168
        %v1269 = vunpack.c.0.s8 %v1268
        %v1270 = vlaneseq
        %v1271 = vshrl.u32 %v1270, 7
        %v1272 = vsub.s32 %v1269, %v1271
        %v1273 = vrot.slane %v1261, %v1272
        %v1275 = vunpack.c.l.s4 1966171168
        %v1276 = vunpack.c.0.s8 %v1275
        %v1277 = vlaneseq
        %v1278 = vshrl.u32 %v1277, 7
        %v1279 = vsub.s32 %v1276, %v1278
        %v1280 = vrot.slane %v1263, %v1279
        %v1282 = vunpack.c.l.s4 1966171168
        %v1283 = vunpack.c.0.s8 %v1282
        %v1284 = vlaneseq
        %v1285 = vshrl.u32 %v1284, 7
        %v1286 = vsub.s32 %v1283, %v1285
        %v1287 = vrot.slane %v1262, %v1286
        %v1289 = vunpack.c.l.s4 1966171168
        %v1290 = vunpack.c.0.s8 %v1289
        %v1291 = vlaneseq
        %v1292 = vshrl.u32 %v1291, 7
        %v1293 = vsub.s32 %v1290, %v1292
        %v1294 = vrot.slane %v1264, %v1293
        %v1296 = vunpack.c.l.s4 1966171168
        %v1297 = vunpack.c.0.s8 %v1296
        %v1298 = vlaneseq
        %v1299 = vshrl.u32 %v1298, 7
        %v1300 = vsub.s32 %v1297, %v1299
        %v1301 = vrot.slane %v1266, %v1300
        %v1303 = vunpack.c.l.s4 1966171168
        %v1304 = vunpack.c.0.s8 %v1303
        %v1305 = vlaneseq
        %v1306 = vshrl.u32 %v1305, 7
        %v1307 = vsub.s32 %v1304, %v1306
        %v1308 = vrot.slane %v1265, %v1307
        %v1309 = vcombine.low %v1273, %v1294
        %v1310 = vcombine.high %v1273, %v1294
        %v1311 = vcombine.low %v1280, %v1301
        %v1312 = vcombine.low %v1287, %v1308
        %v1313 = vcombine.high %v1287, %v1308
        %v1314 = vcombine.low %v1184, %v1185
        %v1315 = vcombine.high %v1184, %v1185
        %v1316 = vcombine.low %v1186, %v1187
        %v1317 = vcombine.high %v1186, %v1187
        %v1318 = vcombine.low %v1188, %v1189
        %v1319 = vcombine.high %v1188, %v1189
        %v1320 = vcombine.low %v1190, %v1191
        %v1321 = vcombine.high %v1190, %v1191
        %v1323 = vunpack.c.l.s4 1966171168
        %v1324 = vunpack.c.0.s8 %v1323
        %v1325 = vlaneseq
        %v1326 = vshrl.u32 %v1325, 7
        %v1327 = vsub.s32 %v1324, %v1326
        %v1328 = vrot.slane %v1314, %v1327
        %v1330 = vunpack.c.l.s4 1966171168
        %v1331 = vunpack.c.0.s8 %v1330
        %v1332 = vlaneseq
        %v1333 = vshrl.u32 %v1332, 7
        %v1334 = vsub.s32 %v1331, %v1333
        %v1335 = vrot.slane %v1315, %v1334
        %v1337 = vunpack.c.l.s4 1966171168
        %v1338 = vunpack.c.0.s8 %v1337
        %v1339 = vlaneseq
        %v1340 = vshrl.u32 %v1339, 7
        %v1341 = vsub.s32 %v1338, %v1340
        %v1342 = vrot.slane %v1316, %v1341
        %v1344 = vunpack.c.l.s4 1966171168
        %v1345 = vunpack.c.0.s8 %v1344
        %v1346 = vlaneseq
        %v1347 = vshrl.u32 %v1346, 7
        %v1348 = vsub.s32 %v1345, %v1347
        %v1349 = vrot.slane %v1317, %v1348
        %v1351 = vunpack.c.l.s4 1966171168
        %v1352 = vunpack.c.0.s8 %v1351
        %v1353 = vlaneseq
        %v1354 = vshrl.u32 %v1353, 7
        %v1355 = vsub.s32 %v1352, %v1354
        %v1356 = vrot.slane %v1318, %v1355
        %v1358 = vunpack.c.l.s4 1966171168
        %v1359 = vunpack.c.0.s8 %v1358
        %v1360 = vlaneseq
        %v1361 = vshrl.u32 %v1360, 7
        %v1362 = vsub.s32 %v1359, %v1361
        %v1363 = vrot.slane %v1319, %v1362
        %v1365 = vunpack.c.l.s4 1966171168
        %v1366 = vunpack.c.0.s8 %v1365
        %v1367 = vlaneseq
        %v1368 = vshrl.u32 %v1367, 7
        %v1369 = vsub.s32 %v1366, %v1368
        %v1370 = vrot.slane %v1320, %v1369
        %v1372 = vunpack.c.l.s4 1966171168
        %v1373 = vunpack.c.0.s8 %v1372
        %v1374 = vlaneseq
        %v1375 = vshrl.u32 %v1374, 7
        %v1376 = vsub.s32 %v1373, %v1375
        %v1377 = vrot.slane %v1321, %v1376
        %v1378 = vcombine.low %v1328, %v1342
        %v1379 = vcombine.high %v1328, %v1342
        %v1380 = vcombine.low %v1335, %v1349
        %v1381 = vcombine.low %v1356, %v1370
        %v1382 = vcombine.high %v1356, %v1370
        %v1383 = vcombine.low %v1363, %v1377
        %v1385 = vunpack.c.l.s4 1966171168
        %v1386 = vunpack.c.0.s8 %v1385
        %v1387 = vlaneseq
        %v1388 = vshrl.u32 %v1387, 7
        %v1389 = vsub.s32 %v1386, %v1388
        %v1390 = vrot.slane %v1378, %v1389
        %v1392 = vunpack.c.l.s4 1966171168
        %v1393 = vunpack.c.0.s8 %v1392
        %v1394 = vlaneseq
        %v1395 = vshrl.u32 %v1394, 7
        %v1396 = vsub.s32 %v1393, %v1395
        %v1397 = vrot.slane %v1380, %v1396
        %v1399 = vunpack.c.l.s4 1966171168
        %v1400 = vunpack.c.0.s8 %v1399
        %v1401 = vlaneseq
        %v1402 = vshrl.u32 %v1401, 7
        %v1403 = vsub.s32 %v1400, %v1402
        %v1404 = vrot.slane %v1379, %v1403
        %v1406 = vunpack.c.l.s4 1966171168
        %v1407 = vunpack.c.0.s8 %v1406
        %v1408 = vlaneseq
        %v1409 = vshrl.u32 %v1408, 7
        %v1410 = vsub.s32 %v1407, %v1409
        %v1411 = vrot.slane %v1381, %v1410
        %v1413 = vunpack.c.l.s4 1966171168
        %v1414 = vunpack.c.0.s8 %v1413
        %v1415 = vlaneseq
        %v1416 = vshrl.u32 %v1415, 7
        %v1417 = vsub.s32 %v1414, %v1416
        %v1418 = vrot.slane %v1383, %v1417
        %v1420 = vunpack.c.l.s4 1966171168
        %v1421 = vunpack.c.0.s8 %v1420
        %v1422 = vlaneseq
        %v1423 = vshrl.u32 %v1422, 7
        %v1424 = vsub.s32 %v1421, %v1423
        %v1425 = vrot.slane %v1382, %v1424
        %v1426 = vcombine.low %v1390, %v1411
        %v1427 = vcombine.high %v1390, %v1411
        %v1428 = vcombine.low %v1397, %v1418
        %v1429 = vcombine.low %v1404, %v1425
        %v1430 = vcombine.high %v1404, %v1425
        %v1431 = vcombine.low %v1192, %v1193
        %v1432 = vcombine.high %v1192, %v1193
        %v1433 = vcombine.low %v1194, %v1195
        %v1434 = vcombine.high %v1194, %v1195
        %v1435 = vcombine.high %v1196, %v1196
        %v1437 = vunpack.c.l.s4 1966171168
        %v1438 = vunpack.c.0.s8 %v1437
        %v1439 = vlaneseq
        %v1440 = vshrl.u32 %v1439, 7
        %v1441 = vsub.s32 %v1438, %v1440
        %v1442 = vrot.slane %v1431, %v1441
        %v1444 = vunpack.c.l.s4 1966171168
        %v1445 = vunpack.c.0.s8 %v1444
        %v1446 = vlaneseq
        %v1447 = vshrl.u32 %v1446, 7
        %v1448 = vsub.s32 %v1445, %v1447
        %v1449 = vrot.slane %v1432, %v1448
        %v1451 = vunpack.c.l.s4 1966171168
        %v1452 = vunpack.c.0.s8 %v1451
        %v1453 = vlaneseq
        %v1454 = vshrl.u32 %v1453, 7
        %v1455 = vsub.s32 %v1452, %v1454
        %v1456 = vrot.slane %v1433, %v1455
        %v1458 = vunpack.c.l.s4 1966171168
        %v1459 = vunpack.c.0.s8 %v1458
        %v1460 = vlaneseq
        %v1461 = vshrl.u32 %v1460, 7
        %v1462 = vsub.s32 %v1459, %v1461
        %v1463 = vrot.slane %v1434, %v1462
        %v1465 = vunpack.c.l.s4 1966171168
        %v1466 = vunpack.c.0.s8 %v1465
        %v1467 = vlaneseq
        %v1468 = vshrl.u32 %v1467, 7
        %v1469 = vsub.s32 %v1466, %v1468
        %v1470 = vrot.slane %v1196, %v1469
        %v1472 = vunpack.c.l.s4 1966171168
        %v1473 = vunpack.c.0.s8 %v1472
        %v1474 = vlaneseq
        %v1475 = vshrl.u32 %v1474, 7
        %v1476 = vsub.s32 %v1473, %v1475
        %v1477 = vrot.slane %v1435, %v1476
        %v1478 = vcombine.low %v1442, %v1456
        %v1479 = vcombine.high %v1442, %v1456
        %v1480 = vcombine.low %v1449, %v1463
        %v1481 = vcombine.high %v1470, %v1470
        %v1483 = vunpack.c.l.s4 1966171168
        %v1484 = vunpack.c.0.s8 %v1483
        %v1485 = vlaneseq
        %v1486 = vshrl.u32 %v1485, 7
        %v1487 = vsub.s32 %v1484, %v1486
        %v1488 = vrot.slane %v1478, %v1487
        %v1490 = vunpack.c.l.s4 1966171168
        %v1491 = vunpack.c.0.s8 %v1490
        %v1492 = vlaneseq
        %v1493 = vshrl.u32 %v1492, 7
        %v1494 = vsub.s32 %v1491, %v1493
        %v1495 = vrot.slane %v1480, %v1494
        %v1497 = vunpack.c.l.s4 1966171168
        %v1498 = vunpack.c.0.s8 %v1497
        %v1499 = vlaneseq
        %v1500 = vshrl.u32 %v1499, 7
        %v1501 = vsub.s32 %v1498, %v1500
        %v1502 = vrot.slane %v1479, %v1501
        %v1504 = vunpack.c.l.s4 1966171168
        %v1505 = vunpack.c.0.s8 %v1504
        %v1506 = vlaneseq
        %v1507 = vshrl.u32 %v1506, 7
        %v1508 = vsub.s32 %v1505, %v1507
        %v1509 = vrot.slane %v1470, %v1508
        %v1511 = vunpack.c.l.s4 1966171168
        %v1512 = vunpack.c.0.s8 %v1511
        %v1513 = vlaneseq
        %v1514 = vshrl.u32 %v1513, 7
        %v1515 = vsub.s32 %v1512, %v1514
        %v1516 = vrot.slane %v1477, %v1515
        %v1518 = vunpack.c.l.s4 1966171168
        %v1519 = vunpack.c.0.s8 %v1518
        %v1520 = vlaneseq
        %v1521 = vshrl.u32 %v1520, 7
        %v1522 = vsub.s32 %v1519, %v1521
        %v1523 = vrot.slane %v1481, %v1522
        %v1524 = vcombine.low %v1488, %v1509
        %v1525 = vcombine.high %v1488, %v1509
        %v1526 = vcombine.low %v1495, %v1516
        %v1527 = vcombine.low %v1502, %v1523
        %v1528 = vcombine.high %v1502, %v1523
        %v1624 = vunpack.c.l.b16 %v702
        %v1625 = vunpack.c.h.b16 %v702
        %v1626 = vunpack.c.l.b16 %v703
        %v1627 = vunpack.c.h.b16 %v703
        %v1628 = vunpack.c.l.b16 %v704
        %v1629 = vunpack.c.h.b16 %v704
        %v1630 = vunpack.c.l.b16 %v705
        %v1631 = vunpack.c.h.b16 %v705
        %v1632 = vunpack.c.l.b16 %v706
        %v1633 = vunpack.c.h.b16 %v706
        %v1634 = vunpack.c.l.b16 %v707
        %v1635 = vunpack.c.h.b16 %v707
        %v1636 = vunpack.c.l.b16 %v708
        %v1637 = vunpack.c.h.b16 %v708
        %v1638 = vunpack.c.l.b16 %v709
        %v1639 = vunpack.c.h.b16 %v709
        %v1640 = vunpack.c.l.b16 %v710
        %v1641 = vunpack.c.h.b16 %v710
        %v1642 = vunpack.c.l.b16 %v711
        %v1643 = vunpack.c.h.b16 %v711
        %v1644 = vunpack.c.l.b16 %v712
        %v1645 = vunpack.c.h.b16 %v712
        %v1646 = vunpack.c.l.b16 %v713
        %v1647 = vunpack.c.h.b16 %v713
        %v1648 = vunpack.c.l.b16 %v714
        %v1649 = vunpack.c.h.b16 %v714
        %v1650 = vunpack.c.l.b16 %v715
        %v1651 = vunpack.c.h.b16 %v715
        %v1652 = vunpack.c.l.b16 %v716
        %v1653 = vunpack.c.h.b16 %v716
        %v1654 = vunpack.c.l.b16 %v717
        %v1655 = vunpack.c.h.b16 %v717
        %v1656 = vunpack.c.l.b16 %v718
        %v1657 = vunpack.c.h.b16 %v718
        %v1658 = vunpack.c.l.b16 %v719
        %v1659 = vunpack.c.h.b16 %v719
        %v1660 = vunpack.c.l.b16 %v720
        %v1661 = vunpack.c.h.b16 %v720
        %v1662 = vunpack.c.l.b16 %v721
        %v1663 = vunpack.c.h.b16 %v721
        %v1664 = vunpack.c.l.b16 %v722
        %v1665 = vunpack.c.h.b16 %v722
        %v1666 = vunpack.c.l.b16 %v723
        %v1667 = vunpack.c.h.b16 %v723
        %v1668 = vunpack.c.l.b16 %v724
        %v1669 = vunpack.c.h.b16 %v724
        %v1670 = vunpack.c.l.b16 %v725
        %v1671 = vunpack.c.h.b16 %v725
        %v1672 = vunpack.c.l.b16 %v726
        %v1673 = vunpack.c.h.b16 %v726
        %v1674 = vunpack.c.l.b16 %v727
        %v1675 = vunpack.c.h.b16 %v727
        %v1676 = vunpack.c.l.b16 %v728
        %v1677 = vunpack.c.h.b16 %v728
        %v1678 = vunpack.c.l.b16 %v729
        %v1679 = vunpack.c.h.b16 %v729
        %v1680 = vunpack.c.l.b16 %v730
        %v1681 = vunpack.c.h.b16 %v730
        %v1682 = vunpack.c.l.b16 %v731
        %v1683 = vunpack.c.h.b16 %v731
        %v1684 = vunpack.c.l.b16 %v732
        %v1685 = vunpack.c.h.b16 %v732
        %v1686 = vunpack.c.l.b16 %v733
        %v1687 = vunpack.c.h.b16 %v733
        %v1688 = vunpack.c.l.b16 %v734
        %v1689 = vunpack.c.h.b16 %v734
        %v1690 = vunpack.c.l.b16 %v735
        %v1691 = vunpack.c.h.b16 %v735
        %v1692 = vunpack.c.l.b16 %v736
        %v1693 = vunpack.c.h.b16 %v736
        %v1694 = vunpack.c.l.b16 %v737
        %v1695 = vunpack.c.h.b16 %v737
        %v1696 = vunpack.c.l.b16 %v738
        %v1697 = vunpack.c.h.b16 %v738
        %v1698 = vunpack.c.l.b16 %v739
        %v1699 = vunpack.c.h.b16 %v739
        %v1700 = vunpack.c.l.b16 %v740
        %v1701 = vunpack.c.h.b16 %v740
        %v1702 = vunpack.c.l.b16 %v741
        %v1703 = vunpack.c.h.b16 %v741
        %v1704 = vunpack.c.l.b16 %v742
        %v1705 = vunpack.c.h.b16 %v742
        %v1706 = vunpack.c.l.b16 %v743
        %v1707 = vunpack.c.h.b16 %v743
        %v1708 = vunpack.c.l.b16 %v744
        %v1709 = vunpack.c.h.b16 %v744
        %v1710 = vunpack.c.l.b16 %v745
        %v1711 = vunpack.c.h.b16 %v745
        %v1712 = vunpack.c.l.b16 %v746
        %v1713 = vunpack.c.h.b16 %v746
        %v1714 = vunpack.c.l.b16 %v747
        %v1715 = vunpack.c.h.b16 %v747
        %v1716 = vunpack.c.l.b16 %v748
        %v1717 = vunpack.c.h.b16 %v748
        %v1718 = vunpack.c.l.b16 %v749
        %v1719 = vunpack.c.h.b16 %v749
        %v1720 = vunpack.c.l.b16 %v750
        %v1721 = vunpack.c.h.b16 %v750
        %v1722 = vunpack.c.l.b16 %v751
        %v1723 = vunpack.c.h.b16 %v751
        %v1724 = vunpack.c.l.b16 %v752
        %v1725 = vunpack.c.h.b16 %v752
        %v1726 = vunpack.c.l.b16 %v753
        %v1727 = vunpack.c.h.b16 %v753
        %v1728 = vunpack.c.l.b16 %v754
        %v1729 = vunpack.c.h.b16 %v754
        %v1730 = vunpack.c.l.b16 %v755
        %v1731 = vunpack.c.h.b16 %v755
        %v1732 = vunpack.c.l.b16 %v756
        %v1733 = vunpack.c.h.b16 %v756
        %v1734 = vunpack.c.l.b16 %v757
        %v1735 = vunpack.c.h.b16 %v757
        %v1736 = vunpack.c.l.b16 %v758
        %v1737 = vunpack.c.h.b16 %v758
        %v1738 = vunpack.c.l.b16 %v759
        %v1739 = vunpack.c.h.b16 %v759
        %v1740 = vunpack.c.l.b16 %v760
        %v1741 = vunpack.c.h.b16 %v760
        %v1742 = vunpack.c.l.b16 %v761
        %v1743 = vunpack.c.h.b16 %v761
        %v1744 = vunpack.c.l.b16 %v762
        %v1745 = vunpack.c.h.b16 %v762
        %v1746 = vunpack.c.l.b16 %v763
        %v1747 = vunpack.c.h.b16 %v763
        %v1748 = vunpack.c.l.b16 %v764
        %v1749 = vunpack.c.h.b16 %v764
        %v1750 = vunpack.c.l.b16 %v765
        %v1751 = vunpack.c.h.b16 %v765
        %v1752 = vunpack.c.l.b16 %v766
        %v1753 = vunpack.c.h.b16 %v766
        %v1754 = vunpack.c.l.b16 %v767
        %v1755 = vunpack.c.h.b16 %v767
        %v1756 = vunpack.c.l.b16 %v768
        %v1757 = vunpack.c.h.b16 %v768
        %v1758 = vunpack.c.l.b16 %v769
        %v1759 = vunpack.c.h.b16 %v769
        %v1760 = vunpack.c.l.b16 %v770
        %v1761 = vunpack.c.h.b16 %v770
        %v1762 = vunpack.c.l.b16 %v771
        %v1763 = vunpack.c.h.b16 %v771
        %v1764 = vunpack.c.l.b16 %v772
        %v1765 = vunpack.c.h.b16 %v772
        %v1766 = vunpack.c.l.b16 %v773
        %v1767 = vunpack.c.h.b16 %v773
        %v1768 = vunpack.c.l.b16 %v774
        %v1769 = vunpack.c.h.b16 %v774
        %v1770 = vunpack.c.l.b16 %v775
        %v1771 = vunpack.c.h.b16 %v775
        %v1772 = vunpack.c.l.b16 %v776
        %v1773 = vunpack.c.h.b16 %v776
        %v1774 = vunpack.c.l.b16 %v777
        %v1775 = vunpack.c.h.b16 %v777
        %v1776 = vunpack.c.l.b16 %v778
        %v1777 = vunpack.c.h.b16 %v778
        %v1778 = vunpack.c.l.b16 %v779
        %v1779 = vunpack.c.h.b16 %v779
        %v1780 = vunpack.c.l.b16 %v780
        %v1781 = vunpack.c.h.b16 %v780
        %v1782 = vunpack.c.l.b16 %v781
        %v1783 = vunpack.c.h.b16 %v781
        %v1784 = vpack.c.b16 %v1626, %v1624
        %v1785 = vpack.c.b16 %v1627, %v1625
        %v1786 = vpack.c.b16 %v1630, %v1628
        %v1787 = vpack.c.b16 %v1631, %v1629
        %v1788 = vpack.c.b16 %v1634, %v1632
        %v1789 = vpack.c.b16 %v1635, %v1633
        %v1790 = vpack.c.b16 %v1638, %v1636
        %v1791 = vpack.c.b16 %v1639, %v1637
        %v1792 = vpack.c.b16 %v1642, %v1640
        %v1793 = vpack.c.b16 %v1643, %v1641
        %v1794 = vpack.c.b16 %v1646, %v1644
        %v1795 = vpack.c.b16 %v1647, %v1645
        %v1796 = vpack.c.b16 %v1650, %v1648
        %v1797 = vpack.c.b16 %v1651, %v1649
        %v1798 = vpack.c.b16 %v1654, %v1652
        %v1799 = vpack.c.b16 %v1655, %v1653
        %v1800 = vpack.c.b16 %v1658, %v1656
        %v1801 = vpack.c.b16 %v1659, %v1657
        %v1802 = vpack.c.b16 %v1662, %v1660
        %v1803 = vpack.c.b16 %v1663, %v1661
        %v1804 = vpack.c.b16 %v1666, %v1664
        %v1805 = vpack.c.b16 %v1667, %v1665
        %v1806 = vpack.c.b16 %v1670, %v1668
        %v1807 = vpack.c.b16 %v1671, %v1669
        %v1808 = vpack.c.b16 %v1674, %v1672
        %v1809 = vpack.c.b16 %v1675, %v1673
        %v1810 = vpack.c.b16 %v1678, %v1676
        %v1811 = vpack.c.b16 %v1679, %v1677
        %v1812 = vpack.c.b16 %v1682, %v1680
        %v1813 = vpack.c.b16 %v1683, %v1681
        %v1814 = vpack.c.b16 %v1686, %v1684
        %v1815 = vpack.c.b16 %v1687, %v1685
        %v1816 = vpack.c.b16 %v1690, %v1688
        %v1817 = vpack.c.b16 %v1691, %v1689
        %v1818 = vpack.c.b16 %v1694, %v1692
        %v1819 = vpack.c.b16 %v1695, %v1693
        %v1820 = vpack.c.b16 %v1698, %v1696
        %v1821 = vpack.c.b16 %v1699, %v1697
        %v1822 = vpack.c.b16 %v1702, %v1700
        %v1823 = vpack.c.b16 %v1703, %v1701
        %v1824 = vpack.c.b16 %v1706, %v1704
        %v1825 = vpack.c.b16 %v1707, %v1705
        %v1826 = vpack.c.b16 %v1710, %v1708
        %v1827 = vpack.c.b16 %v1711, %v1709
        %v1828 = vpack.c.b16 %v1714, %v1712
        %v1829 = vpack.c.b16 %v1715, %v1713
        %v1830 = vpack.c.b16 %v1718, %v1716
        %v1831 = vpack.c.b16 %v1719, %v1717
        %v1832 = vpack.c.b16 %v1722, %v1720
        %v1833 = vpack.c.b16 %v1723, %v1721
        %v1834 = vpack.c.b16 %v1726, %v1724
        %v1835 = vpack.c.b16 %v1727, %v1725
        %v1836 = vpack.c.b16 %v1730, %v1728
        %v1837 = vpack.c.b16 %v1731, %v1729
        %v1838 = vpack.c.b16 %v1734, %v1732
        %v1839 = vpack.c.b16 %v1735, %v1733
        %v1840 = vpack.c.b16 %v1738, %v1736
        %v1841 = vpack.c.b16 %v1739, %v1737
        %v1842 = vpack.c.b16 %v1742, %v1740
        %v1843 = vpack.c.b16 %v1743, %v1741
        %v1844 = vpack.c.b16 %v1746, %v1744
        %v1845 = vpack.c.b16 %v1747, %v1745
        %v1846 = vpack.c.b16 %v1750, %v1748
        %v1847 = vpack.c.b16 %v1751, %v1749
        %v1848 = vpack.c.b16 %v1754, %v1752
        %v1849 = vpack.c.b16 %v1755, %v1753
        %v1850 = vpack.c.b16 %v1758, %v1756
        %v1851 = vpack.c.b16 %v1759, %v1757
        %v1852 = vpack.c.b16 %v1762, %v1760
        %v1853 = vpack.c.b16 %v1763, %v1761
        %v1854 = vpack.c.b16 %v1766, %v1764
        %v1855 = vpack.c.b16 %v1767, %v1765
        %v1856 = vpack.c.b16 %v1770, %v1768
        %v1857 = vpack.c.b16 %v1771, %v1769
        %v1858 = vpack.c.b16 %v1774, %v1772
        %v1859 = vpack.c.b16 %v1775, %v1773
        %v1860 = vpack.c.b16 %v1778, %v1776
        %v1861 = vpack.c.b16 %v1779, %v1777
        %v1862 = vpack.c.b16 %v1782, %v1780
        %v1863 = vpack.c.b16 %v1783, %v1781
        %1944 = vmatprep.subr.bf16.mxu0 %v1785
        %1945 = vmatpush1.bf16.msra.mxu0 %v1784
        %1946 = vmatprep.subr.bf16.mxu0 %v1787
        %1947 = vmatpush1.bf16.msra.mxu0 %v1786
        %1948 = vmatprep.subr.bf16.mxu0 %v1789
        %1949 = vmatpush1.bf16.msra.mxu0 %v1788
        %1950 = vmatprep.subr.bf16.mxu0 %v1791
        %1951 = vmatpush1.bf16.msra.mxu0 %v1790
        %1952 = vmatprep.subr.bf16.mxu0 %v1793
        %1953 = vmatpush1.bf16.msra.mxu0 %v1792
        %1954 = vmatprep.subr.bf16.mxu0 %v1795
        %1955 = vmatpush1.bf16.msra.mxu0 %v1794
        %1956 = vmatprep.subr.bf16.mxu0 %v1797
        %1957 = vmatpush1.bf16.msra.mxu0 %v1796
        %1958 = vmatprep.subr.bf16.mxu0 %v1799
        %1959 = vmatpush1.bf16.msra.mxu0 %v1798
        %1960 = vmatprep.subr.bf16.mxu0 %v1801
        %1961 = vmatpush1.bf16.msra.mxu0 %v1800
        %1962 = vmatprep.subr.bf16.mxu0 %v1803
        %1963 = vmatpush1.bf16.msra.mxu0 %v1802
        %1964 = vmatprep.subr.bf16.mxu0 %v1805
        %1965 = vmatpush1.bf16.msra.mxu0 %v1804
        %1966 = vmatprep.subr.bf16.mxu0 %v1807
        %1967 = vmatpush1.bf16.msra.mxu0 %v1806
        %1968 = vmatprep.subr.bf16.mxu0 %v1809
        %1969 = vmatpush1.bf16.msra.mxu0 %v1808
        %1970 = vmatprep.subr.bf16.mxu0 %v1811
        %1971 = vmatpush1.bf16.msra.mxu0 %v1810
        %1972 = vmatprep.subr.bf16.mxu0 %v1813
        %1973 = vmatpush1.bf16.msra.mxu0 %v1812
        %1974 = vmatprep.subr.bf16.mxu0 %v1815
        %1975 = vmatpush1.bf16.msra.mxu0 %v1814
        %1976 = vmatprep.mubr.bf16.mxu0 %v1312
        %1977 = vmatmul.mubr.bf16.gmra.mrb[0].mxu0 %v1309
        %v1978 = vpop.f32.mrb[0].mxu0
        %v1979 = vadd.f32 0.0, %v1978
        %v1980 = vpop.f32.mrb[0].mxu0
        %v1981 = vadd.f32 0.0, %v1980
        %v1982 = vpop.f32.mrb[0].mxu0
        %v1983 = vadd.f32 0.0, %v1982
        %v1984 = vpop.f32.mrb[0].mxu0
        %v1985 = vadd.f32 0.0, %v1984
        %1986 = vmatprep.mubr.bf16.mxu0 %v1429
        %1987 = vmatmul.mubr.bf16.gmra.mrb[0].mxu0 %v1426
        %v1988 = vpop.f32.mrb[0].mxu0
        %v1989 = vadd.f32 0.0, %v1988
        %v1990 = vpop.f32.mrb[0].mxu0
        %v1991 = vadd.f32 0.0, %v1990
        %v1992 = vpop.f32.mrb[0].mxu0
        %v1993 = vadd.f32 0.0, %v1992
        %v1994 = vpop.f32.mrb[0].mxu0
        %v1995 = vadd.f32 0.0, %v1994
        %1996 = vmatprep.mubr.bf16.mxu0 %v1527
        %1997 = vmatmul.mubr.bf16.gmra.mrb[0].mxu0 %v1524
        %v1998 = vpop.f32.mrb[0].mxu0
        %v1999 = vadd.f32 0.0, %v1998
        %v2000 = vpop.f32.mrb[0].mxu0
        %v2001 = vadd.f32 0.0, %v2000
        %v2002 = vpop.f32.mrb[0].mxu0
        %v2003 = vadd.f32 0.0, %v2002
        %v2004 = vpop.f32.mrb[0].mxu0
        %v2005 = vadd.f32 0.0, %v2004
        %2006 = vdwg.mxu0
        %2007 = vmatprep.subr.bf16.mxu0 %v1817
        %2008 = vmatpush1.bf16.msra.mxu0 %v1816
        %2009 = vmatprep.subr.bf16.mxu0 %v1819
        %2010 = vmatpush1.bf16.msra.mxu0 %v1818
        %2011 = vmatprep.subr.bf16.mxu0 %v1821
        %2012 = vmatpush1.bf16.msra.mxu0 %v1820
        %2013 = vmatprep.subr.bf16.mxu0 %v1823
        %2014 = vmatpush1.bf16.msra.mxu0 %v1822
        %2015 = vmatprep.subr.bf16.mxu0 %v1825
        %2016 = vmatpush1.bf16.msra.mxu0 %v1824
        %2017 = vmatprep.subr.bf16.mxu0 %v1827
        %2018 = vmatpush1.bf16.msra.mxu0 %v1826
        %2019 = vmatprep.subr.bf16.mxu0 %v1829
        %2020 = vmatpush1.bf16.msra.mxu0 %v1828
        %2021 = vmatprep.subr.bf16.mxu0 %v1831
        %2022 = vmatpush1.bf16.msra.mxu0 %v1830
        %2023 = vmatprep.subr.bf16.mxu0 %v1833
        %2024 = vmatpush1.bf16.msra.mxu0 %v1832
        %2025 = vmatprep.subr.bf16.mxu0 %v1835
        %2026 = vmatpush1.bf16.msra.mxu0 %v1834
        %2027 = vmatprep.subr.bf16.mxu0 %v1837
        %2028 = vmatpush1.bf16.msra.mxu0 %v1836
        %2029 = vmatprep.subr.bf16.mxu0 %v1839
        %2030 = vmatpush1.bf16.msra.mxu0 %v1838
        %2031 = vmatprep.subr.bf16.mxu0 %v1841
        %2032 = vmatpush1.bf16.msra.mxu0 %v1840
        %2033 = vmatprep.subr.bf16.mxu0 %v1843
        %2034 = vmatpush1.bf16.msra.mxu0 %v1842
        %2035 = vmatprep.subr.bf16.mxu0 %v1845
        %2036 = vmatpush1.bf16.msra.mxu0 %v1844
        %2037 = vmatprep.subr.bf16.mxu0 %v1847
        %2038 = vmatpush1.bf16.msra.mxu0 %v1846
        %2039 = vmatprep.mubr.bf16.mxu0 %v1313
        %2040 = vmatmul.mubr.bf16.gmra.mrb[0].mxu0 %v1310
        %v2041 = vpop.f32.mrb[0].mxu0
        %v2042 = vadd.f32 %v1979, %v2041
        %v2043 = vpop.f32.mrb[0].mxu0
        %v2044 = vadd.f32 %v1981, %v2043
        %v2045 = vpop.f32.mrb[0].mxu0
        %v2046 = vadd.f32 %v1983, %v2045
        %v2047 = vpop.f32.mrb[0].mxu0
        %v2048 = vadd.f32 %v1985, %v2047
        %2049 = vmatprep.mubr.bf16.mxu0 %v1430
        %2050 = vmatmul.mubr.bf16.gmra.mrb[0].mxu0 %v1427
        %v2051 = vpop.f32.mrb[0].mxu0
        %v2052 = vadd.f32 %v1989, %v2051
        %v2053 = vpop.f32.mrb[0].mxu0
        %v2054 = vadd.f32 %v1991, %v2053
        %v2055 = vpop.f32.mrb[0].mxu0
        %v2056 = vadd.f32 %v1993, %v2055
        %v2057 = vpop.f32.mrb[0].mxu0
        %v2058 = vadd.f32 %v1995, %v2057
        %2059 = vmatprep.mubr.bf16.mxu0 %v1528
        %2060 = vmatmul.mubr.bf16.gmra.mrb[0].mxu0 %v1525
        %v2061 = vpop.f32.mrb[0].mxu0
        %v2062 = vadd.f32 %v1999, %v2061
        %v2063 = vpop.f32.mrb[0].mxu0
        %v2064 = vadd.f32 %v2001, %v2063
        %v2065 = vpop.f32.mrb[0].mxu0
        %v2066 = vadd.f32 %v2003, %v2065
        %v2067 = vpop.f32.mrb[0].mxu0
        %v2068 = vadd.f32 %v2005, %v2067
        %2069 = vdwg.mxu0
        %2070 = vmatprep.subr.bf16.mxu0 %v1849
        %2071 = vmatpush1.bf16.msra.mxu0 %v1848
        %2072 = vmatprep.subr.bf16.mxu0 %v1851
        %2073 = vmatpush1.bf16.msra.mxu0 %v1850
        %2074 = vmatprep.subr.bf16.mxu0 %v1853
        %2075 = vmatpush1.bf16.msra.mxu0 %v1852
        %2076 = vmatprep.subr.bf16.mxu0 %v1855
        %2077 = vmatpush1.bf16.msra.mxu0 %v1854
        %2078 = vmatprep.subr.bf16.mxu0 %v1857
        %2079 = vmatpush1.bf16.msra.mxu0 %v1856
        %2080 = vmatprep.subr.bf16.mxu0 %v1859
        %2081 = vmatpush1.bf16.msra.mxu0 %v1858
        %2082 = vmatprep.subr.bf16.mxu0 %v1861
        %2083 = vmatpush1.bf16.msra.mxu0 %v1860
        %2084 = vmatprep.subr.bf16.mxu0 %v1863
        %2085 = vmatpush1.bf16.msra.mxu0 %v1862
        %2086 = vmatprep.subr.bf16.mxu0 0
        %2087 = vmatpush1.bf16.msra.mxu0 0
        %2088 = vmatprep.subr.bf16.mxu0 0
        %2089 = vmatpush1.bf16.msra.mxu0 0
        %2090 = vmatprep.subr.bf16.mxu0 0
        %2091 = vmatpush1.bf16.msra.mxu0 0
        %2092 = vmatprep.subr.bf16.mxu0 0
        %2093 = vmatpush1.bf16.msra.mxu0 0
        %2094 = vmatprep.subr.bf16.mxu0 0
        %2095 = vmatpush1.bf16.msra.mxu0 0
        %2096 = vmatprep.subr.bf16.mxu0 0
        %2097 = vmatpush1.bf16.msra.mxu0 0
        %2098 = vmatprep.subr.bf16.mxu0 0
        %2099 = vmatpush1.bf16.msra.mxu0 0
        %2100 = vmatprep.subr.bf16.mxu0 0
        %2101 = vmatpush1.bf16.msra.mxu0 0
        %2102 = vmatprep.mubr.bf16.mxu0 0
        %2103 = vmatmul.mubr.bf16.gmra.mrb[0].mxu0 %v1311
        %v2104 = vpop.f32.mrb[0].mxu0
        %v2105 = vadd.f32 %v2042, %v2104
        %v2106 = vpop.f32.mrb[0].mxu0
        %v2107 = vadd.f32 %v2044, %v2106
        %v2108 = vpop.f32.mrb[0].mxu0
        %v2109 = vadd.f32 %v2046, %v2108
        %v2110 = vpop.f32.mrb[0].mxu0
        %v2111 = vadd.f32 %v2048, %v2110
        %2112 = vmatprep.mubr.bf16.mxu0 0
        %2113 = vmatmul.mubr.bf16.gmra.mrb[0].mxu0 %v1428
        %v2114 = vpop.f32.mrb[0].mxu0
        %v2115 = vadd.f32 %v2052, %v2114
        %v2116 = vpop.f32.mrb[0].mxu0
        %v2117 = vadd.f32 %v2054, %v2116
        %v2118 = vpop.f32.mrb[0].mxu0
        %v2119 = vadd.f32 %v2056, %v2118
        %v2120 = vpop.f32.mrb[0].mxu0
        %v2121 = vadd.f32 %v2058, %v2120
        %2122 = vmatprep.mubr.bf16.mxu0 0
        %2123 = vmatmul.mubr.bf16.gmra.mrb[0].mxu0 %v1526
        %v2124 = vpop.f32.mrb[0].mxu0
        %v2125 = vadd.f32 %v2062, %v2124
        %v2126 = vpop.f32.mrb[0].mxu0
        %v2127 = vadd.f32 %v2064, %v2126
        %v2128 = vpop.f32.mrb[0].mxu0
        %v2129 = vadd.f32 %v2066, %v2128
        %v2130 = vpop.f32.mrb[0].mxu0
        %v2131 = vadd.f32 %v2068, %v2130
        %2132 = vdwg.mxu0
        %v2145 = vcombine.low %v2105, %v2107
        %v2146 = vcombine.high %v2105, %v2107
        %v2148 = vunpack.c.l.s4 1966171168
        %v2149 = vunpack.c.0.s8 %v2148
        %v2150 = vlaneseq
        %v2151 = vshrl.u32 %v2150, 7
        %v2152 = vsub.s32 %v2149, %v2151
        %v2153 = vrot.slane %v2145, %v2152
        %v2155 = vunpack.c.l.s4 1966171168
        %v2156 = vunpack.c.0.s8 %v2155
        %v2157 = vlaneseq
        %v2158 = vshrl.u32 %v2157, 7
        %v2159 = vsub.s32 %v2156, %v2158
        %v2160 = vrot.slane %v2146, %v2159
        %v2161 = vcombine.high %v2153, %v2153
        %v2162 = vcombine.high %v2160, %v2160
        %v2164 = vunpack.c.l.s4 1966171168
        %v2165 = vunpack.c.0.s8 %v2164
        %v2166 = vlaneseq
        %v2167 = vshrl.u32 %v2166, 7
        %v2168 = vsub.s32 %v2165, %v2167
        %v2169 = vrot.slane %v2153, %v2168
        %v2171 = vunpack.c.l.s4 1966171168
        %v2172 = vunpack.c.0.s8 %v2171
        %v2173 = vlaneseq
        %v2174 = vshrl.u32 %v2173, 7
        %v2175 = vsub.s32 %v2172, %v2174
        %v2176 = vrot.slane %v2160, %v2175
        %v2178 = vunpack.c.l.s4 1966171168
        %v2179 = vunpack.c.0.s8 %v2178
        %v2180 = vlaneseq
        %v2181 = vshrl.u32 %v2180, 7
        %v2182 = vsub.s32 %v2179, %v2181
        %v2183 = vrot.slane %v2161, %v2182
        %v2185 = vunpack.c.l.s4 1966171168
        %v2186 = vunpack.c.0.s8 %v2185
        %v2187 = vlaneseq
        %v2188 = vshrl.u32 %v2187, 7
        %v2189 = vsub.s32 %v2186, %v2188
        %v2190 = vrot.slane %v2162, %v2189
        %v2191 = vcombine.high %v2169, %v2169
        %v2192 = vcombine.high %v2176, %v2176
        %v2193 = vcombine.high %v2183, %v2183
        %v2194 = vcombine.high %v2190, %v2190
        %v2195 = vcombine.low %v2109, %v2111
        %v2196 = vcombine.high %v2109, %v2111
        %v2198 = vunpack.c.l.s4 1966171168
        %v2199 = vunpack.c.0.s8 %v2198
        %v2200 = vlaneseq
        %v2201 = vshrl.u32 %v2200, 7
        %v2202 = vsub.s32 %v2199, %v2201
        %v2203 = vrot.slane %v2195, %v2202
        %v2205 = vunpack.c.l.s4 1966171168
        %v2206 = vunpack.c.0.s8 %v2205
        %v2207 = vlaneseq
        %v2208 = vshrl.u32 %v2207, 7
        %v2209 = vsub.s32 %v2206, %v2208
        %v2210 = vrot.slane %v2196, %v2209
        %v2211 = vcombine.high %v2203, %v2203
        %v2212 = vcombine.high %v2210, %v2210
        %v2214 = vunpack.c.l.s4 1966171168
        %v2215 = vunpack.c.0.s8 %v2214
        %v2216 = vlaneseq
        %v2217 = vshrl.u32 %v2216, 7
        %v2218 = vsub.s32 %v2215, %v2217
        %v2219 = vrot.slane %v2203, %v2218
        %v2221 = vunpack.c.l.s4 1966171168
        %v2222 = vunpack.c.0.s8 %v2221
        %v2223 = vlaneseq
        %v2224 = vshrl.u32 %v2223, 7
        %v2225 = vsub.s32 %v2222, %v2224
        %v2226 = vrot.slane %v2210, %v2225
        %v2228 = vunpack.c.l.s4 1966171168
        %v2229 = vunpack.c.0.s8 %v2228
        %v2230 = vlaneseq
        %v2231 = vshrl.u32 %v2230, 7
        %v2232 = vsub.s32 %v2229, %v2231
        %v2233 = vrot.slane %v2211, %v2232
        %v2235 = vunpack.c.l.s4 1966171168
        %v2236 = vunpack.c.0.s8 %v2235
        %v2237 = vlaneseq
        %v2238 = vshrl.u32 %v2237, 7
        %v2239 = vsub.s32 %v2236, %v2238
        %v2240 = vrot.slane %v2212, %v2239
        %v2241 = vcombine.high %v2219, %v2219
        %v2242 = vcombine.high %v2226, %v2226
        %v2243 = vcombine.high %v2233, %v2233
        %v2244 = vcombine.high %v2240, %v2240
        %v2245 = vcombine.low %v2115, %v2117
        %v2246 = vcombine.high %v2115, %v2117
        %v2248 = vunpack.c.l.s4 1966171168
        %v2249 = vunpack.c.0.s8 %v2248
        %v2250 = vlaneseq
        %v2251 = vshrl.u32 %v2250, 7
        %v2252 = vsub.s32 %v2249, %v2251
        %v2253 = vrot.slane %v2245, %v2252
        %v2255 = vunpack.c.l.s4 1966171168
        %v2256 = vunpack.c.0.s8 %v2255
        %v2257 = vlaneseq
        %v2258 = vshrl.u32 %v2257, 7
        %v2259 = vsub.s32 %v2256, %v2258
        %v2260 = vrot.slane %v2246, %v2259
        %v2261 = vcombine.high %v2253, %v2253
        %v2262 = vcombine.high %v2260, %v2260
        %v2264 = vunpack.c.l.s4 1966171168
        %v2265 = vunpack.c.0.s8 %v2264
        %v2266 = vlaneseq
        %v2267 = vshrl.u32 %v2266, 7
        %v2268 = vsub.s32 %v2265, %v2267
        %v2269 = vrot.slane %v2253, %v2268
        %v2271 = vunpack.c.l.s4 1966171168
        %v2272 = vunpack.c.0.s8 %v2271
        %v2273 = vlaneseq
        %v2274 = vshrl.u32 %v2273, 7
        %v2275 = vsub.s32 %v2272, %v2274
        %v2276 = vrot.slane %v2260, %v2275
        %v2278 = vunpack.c.l.s4 1966171168
        %v2279 = vunpack.c.0.s8 %v2278
        %v2280 = vlaneseq
        %v2281 = vshrl.u32 %v2280, 7
        %v2282 = vsub.s32 %v2279, %v2281
        %v2283 = vrot.slane %v2261, %v2282
        %v2285 = vunpack.c.l.s4 1966171168
        %v2286 = vunpack.c.0.s8 %v2285
        %v2287 = vlaneseq
        %v2288 = vshrl.u32 %v2287, 7
        %v2289 = vsub.s32 %v2286, %v2288
        %v2290 = vrot.slane %v2262, %v2289
        %v2291 = vcombine.high %v2269, %v2269
        %v2292 = vcombine.high %v2276, %v2276
        %v2293 = vcombine.high %v2283, %v2283
        %v2294 = vcombine.high %v2290, %v2290
        %v2295 = vcombine.low %v2119, %v2121
        %v2296 = vcombine.high %v2119, %v2121
        %v2298 = vunpack.c.l.s4 1966171168
        %v2299 = vunpack.c.0.s8 %v2298
        %v2300 = vlaneseq
        %v2301 = vshrl.u32 %v2300, 7
        %v2302 = vsub.s32 %v2299, %v2301
        %v2303 = vrot.slane %v2295, %v2302
        %v2305 = vunpack.c.l.s4 1966171168
        %v2306 = vunpack.c.0.s8 %v2305
        %v2307 = vlaneseq
        %v2308 = vshrl.u32 %v2307, 7
        %v2309 = vsub.s32 %v2306, %v2308
        %v2310 = vrot.slane %v2296, %v2309
        %v2311 = vcombine.high %v2303, %v2303
        %v2312 = vcombine.high %v2310, %v2310
        %v2314 = vunpack.c.l.s4 1966171168
        %v2315 = vunpack.c.0.s8 %v2314
        %v2316 = vlaneseq
        %v2317 = vshrl.u32 %v2316, 7
        %v2318 = vsub.s32 %v2315, %v2317
        %v2319 = vrot.slane %v2303, %v2318
        %v2321 = vunpack.c.l.s4 1966171168
        %v2322 = vunpack.c.0.s8 %v2321
        %v2323 = vlaneseq
        %v2324 = vshrl.u32 %v2323, 7
        %v2325 = vsub.s32 %v2322, %v2324
        %v2326 = vrot.slane %v2310, %v2325
        %v2328 = vunpack.c.l.s4 1966171168
        %v2329 = vunpack.c.0.s8 %v2328
        %v2330 = vlaneseq
        %v2331 = vshrl.u32 %v2330, 7
        %v2332 = vsub.s32 %v2329, %v2331
        %v2333 = vrot.slane %v2311, %v2332
        %v2335 = vunpack.c.l.s4 1966171168
        %v2336 = vunpack.c.0.s8 %v2335
        %v2337 = vlaneseq
        %v2338 = vshrl.u32 %v2337, 7
        %v2339 = vsub.s32 %v2336, %v2338
        %v2340 = vrot.slane %v2312, %v2339
        %v2341 = vcombine.high %v2319, %v2319
        %v2342 = vcombine.high %v2326, %v2326
        %v2343 = vcombine.high %v2333, %v2333
        %v2344 = vcombine.high %v2340, %v2340
        %v2345 = vcombine.low %v2125, %v2127
        %v2346 = vcombine.high %v2125, %v2127
        %v2348 = vunpack.c.l.s4 1966171168
        %v2349 = vunpack.c.0.s8 %v2348
        %v2350 = vlaneseq
        %v2351 = vshrl.u32 %v2350, 7
        %v2352 = vsub.s32 %v2349, %v2351
        %v2353 = vrot.slane %v2345, %v2352
        %v2355 = vunpack.c.l.s4 1966171168
        %v2356 = vunpack.c.0.s8 %v2355
        %v2357 = vlaneseq
        %v2358 = vshrl.u32 %v2357, 7
        %v2359 = vsub.s32 %v2356, %v2358
        %v2360 = vrot.slane %v2346, %v2359
        %v2361 = vcombine.high %v2353, %v2353
        %v2362 = vcombine.high %v2360, %v2360
        %v2364 = vunpack.c.l.s4 1966171168
        %v2365 = vunpack.c.0.s8 %v2364
        %v2366 = vlaneseq
        %v2367 = vshrl.u32 %v2366, 7
        %v2368 = vsub.s32 %v2365, %v2367
        %v2369 = vrot.slane %v2353, %v2368
        %v2371 = vunpack.c.l.s4 1966171168
        %v2372 = vunpack.c.0.s8 %v2371
        %v2373 = vlaneseq
        %v2374 = vshrl.u32 %v2373, 7
        %v2375 = vsub.s32 %v2372, %v2374
        %v2376 = vrot.slane %v2360, %v2375
        %v2378 = vunpack.c.l.s4 1966171168
        %v2379 = vunpack.c.0.s8 %v2378
        %v2380 = vlaneseq
        %v2381 = vshrl.u32 %v2380, 7
        %v2382 = vsub.s32 %v2379, %v2381
        %v2383 = vrot.slane %v2361, %v2382
        %v2385 = vunpack.c.l.s4 1966171168
        %v2386 = vunpack.c.0.s8 %v2385
        %v2387 = vlaneseq
        %v2388 = vshrl.u32 %v2387, 7
        %v2389 = vsub.s32 %v2386, %v2388
        %v2390 = vrot.slane %v2362, %v2389
        %v2391 = vcombine.high %v2369, %v2369
        %v2392 = vcombine.high %v2376, %v2376
        %v2393 = vcombine.high %v2383, %v2383
        %v2394 = vcombine.high %v2390, %v2390
        %v2395 = vcombine.low %v2129, %v2131
        %v2397 = vunpack.c.l.s4 1966171168
        %v2398 = vunpack.c.0.s8 %v2397
        %v2399 = vlaneseq
        %v2400 = vshrl.u32 %v2399, 7
        %v2401 = vsub.s32 %v2398, %v2400
        %v2402 = vrot.slane %v2395, %v2401
        %v2403 = vcombine.high %v2402, %v2402
        %v2405 = vunpack.c.l.s4 1966171168
        %v2406 = vunpack.c.0.s8 %v2405
        %v2407 = vlaneseq
        %v2408 = vshrl.u32 %v2407, 7
        %v2409 = vsub.s32 %v2406, %v2408
        %v2410 = vrot.slane %v2402, %v2409
        %v2412 = vunpack.c.l.s4 1966171168
        %v2413 = vunpack.c.0.s8 %v2412
        %v2414 = vlaneseq
        %v2415 = vshrl.u32 %v2414, 7
        %v2416 = vsub.s32 %v2413, %v2415
        %v2417 = vrot.slane %v2403, %v2416
        %v2418 = vcombine.low %v2169, %v2183
        %v2419 = vcombine.low %v2191, %v2193
        %v2420 = vcombine.low %v2176, %v2190
        %v2421 = vcombine.low %v2192, %v2194
        %v2423 = vunpack.c.l.s4 1966171168
        %v2424 = vunpack.c.0.s8 %v2423
        %v2425 = vlaneseq
        %v2426 = vshrl.u32 %v2425, 7
        %v2427 = vsub.s32 %v2424, %v2426
        %v2428 = vrot.slane %v2418, %v2427
        %v2430 = vunpack.c.l.s4 1966171168
        %v2431 = vunpack.c.0.s8 %v2430
        %v2432 = vlaneseq
        %v2433 = vshrl.u32 %v2432, 7
        %v2434 = vsub.s32 %v2431, %v2433
        %v2435 = vrot.slane %v2419, %v2434
        %v2437 = vunpack.c.l.s4 1966171168
        %v2438 = vunpack.c.0.s8 %v2437
        %v2439 = vlaneseq
        %v2440 = vshrl.u32 %v2439, 7
        %v2441 = vsub.s32 %v2438, %v2440
        %v2442 = vrot.slane %v2420, %v2441
        %v2444 = vunpack.c.l.s4 1966171168
        %v2445 = vunpack.c.0.s8 %v2444
        %v2446 = vlaneseq
        %v2447 = vshrl.u32 %v2446, 7
        %v2448 = vsub.s32 %v2445, %v2447
        %v2449 = vrot.slane %v2421, %v2448
        %v2450 = vcombine.low %v2428, %v2435
        %v2451 = vcombine.high %v2428, %v2435
        %v2452 = vcombine.low %v2442, %v2449
        %v2453 = vcombine.high %v2442, %v2449
        %v2455 = vunpack.c.l.s4 1966171168
        %v2456 = vunpack.c.0.s8 %v2455
        %v2457 = vlaneseq
        %v2458 = vshrl.u32 %v2457, 7
        %v2459 = vsub.s32 %v2456, %v2458
        %v2460 = vrot.slane %v2450, %v2459
        %v2462 = vunpack.c.l.s4 1966171168
        %v2463 = vunpack.c.0.s8 %v2462
        %v2464 = vlaneseq
        %v2465 = vshrl.u32 %v2464, 7
        %v2466 = vsub.s32 %v2463, %v2465
        %v2467 = vrot.slane %v2451, %v2466
        %v2469 = vunpack.c.l.s4 1966171168
        %v2470 = vunpack.c.0.s8 %v2469
        %v2471 = vlaneseq
        %v2472 = vshrl.u32 %v2471, 7
        %v2473 = vsub.s32 %v2470, %v2472
        %v2474 = vrot.slane %v2452, %v2473
        %v2476 = vunpack.c.l.s4 1966171168
        %v2477 = vunpack.c.0.s8 %v2476
        %v2478 = vlaneseq
        %v2479 = vshrl.u32 %v2478, 7
        %v2480 = vsub.s32 %v2477, %v2479
        %v2481 = vrot.slane %v2453, %v2480
        %v2482 = vcombine.low %v2460, %v2474
        %v2483 = vcombine.low %v2467, %v2481
        %v2484 = vcombine.low %v2219, %v2233
        %v2485 = vcombine.low %v2241, %v2243
        %v2486 = vcombine.low %v2226, %v2240
        %v2487 = vcombine.low %v2242, %v2244
        %v2489 = vunpack.c.l.s4 1966171168
        %v2490 = vunpack.c.0.s8 %v2489
        %v2491 = vlaneseq
        %v2492 = vshrl.u32 %v2491, 7
        %v2493 = vsub.s32 %v2490, %v2492
        %v2494 = vrot.slane %v2484, %v2493
        %v2496 = vunpack.c.l.s4 1966171168
        %v2497 = vunpack.c.0.s8 %v2496
        %v2498 = vlaneseq
        %v2499 = vshrl.u32 %v2498, 7
        %v2500 = vsub.s32 %v2497, %v2499
        %v2501 = vrot.slane %v2485, %v2500
        %v2503 = vunpack.c.l.s4 1966171168
        %v2504 = vunpack.c.0.s8 %v2503
        %v2505 = vlaneseq
        %v2506 = vshrl.u32 %v2505, 7
        %v2507 = vsub.s32 %v2504, %v2506
        %v2508 = vrot.slane %v2486, %v2507
        %v2510 = vunpack.c.l.s4 1966171168
        %v2511 = vunpack.c.0.s8 %v2510
        %v2512 = vlaneseq
        %v2513 = vshrl.u32 %v2512, 7
        %v2514 = vsub.s32 %v2511, %v2513
        %v2515 = vrot.slane %v2487, %v2514
        %v2516 = vcombine.low %v2494, %v2501
        %v2517 = vcombine.high %v2494, %v2501
        %v2518 = vcombine.low %v2508, %v2515
        %v2519 = vcombine.high %v2508, %v2515
        %v2521 = vunpack.c.l.s4 1966171168
        %v2522 = vunpack.c.0.s8 %v2521
        %v2523 = vlaneseq
        %v2524 = vshrl.u32 %v2523, 7
        %v2525 = vsub.s32 %v2522, %v2524
        %v2526 = vrot.slane %v2516, %v2525
        %v2528 = vunpack.c.l.s4 1966171168
        %v2529 = vunpack.c.0.s8 %v2528
        %v2530 = vlaneseq
        %v2531 = vshrl.u32 %v2530, 7
        %v2532 = vsub.s32 %v2529, %v2531
        %v2533 = vrot.slane %v2517, %v2532
        %v2535 = vunpack.c.l.s4 1966171168
        %v2536 = vunpack.c.0.s8 %v2535
        %v2537 = vlaneseq
        %v2538 = vshrl.u32 %v2537, 7
        %v2539 = vsub.s32 %v2536, %v2538
        %v2540 = vrot.slane %v2518, %v2539
        %v2542 = vunpack.c.l.s4 1966171168
        %v2543 = vunpack.c.0.s8 %v2542
        %v2544 = vlaneseq
        %v2545 = vshrl.u32 %v2544, 7
        %v2546 = vsub.s32 %v2543, %v2545
        %v2547 = vrot.slane %v2519, %v2546
        %v2548 = vcombine.low %v2526, %v2540
        %v2549 = vcombine.low %v2533, %v2547
        %v2550 = vcombine.low %v2269, %v2283
        %v2551 = vcombine.low %v2291, %v2293
        %v2553 = vunpack.c.l.s4 1966171168
        %v2554 = vunpack.c.0.s8 %v2553
        %v2555 = vlaneseq
        %v2556 = vshrl.u32 %v2555, 7
        %v2557 = vsub.s32 %v2554, %v2556
        %v2558 = vrot.slane %v2550, %v2557
        %v2560 = vunpack.c.l.s4 1966171168
        %v2561 = vunpack.c.0.s8 %v2560
        %v2562 = vlaneseq
        %v2563 = vshrl.u32 %v2562, 7
        %v2564 = vsub.s32 %v2561, %v2563
        %v2565 = vrot.slane %v2551, %v2564
        %v2567 = vunpack.c.l.s4 1966171168
        %v2568 = vunpack.c.0.s8 %v2567
        %v2569 = vlaneseq
        %v2570 = vshrl.u32 %v2569, 7
        %v2571 = vsub.s32 %v2568, %v2570
        %v2572 = vrot.slane %v2276, %v2571
        %v2573 = vcombine.low %v2558, %v2565
        %v2574 = vcombine.high %v2558, %v2565
        %v2575 = vcombine.high %v2572, %v2572
        %v2577 = vunpack.c.l.s4 1966171168
        %v2578 = vunpack.c.0.s8 %v2577
        %v2579 = vlaneseq
        %v2580 = vshrl.u32 %v2579, 7
        %v2581 = vsub.s32 %v2578, %v2580
        %v2582 = vrot.slane %v2573, %v2581
        %v2584 = vunpack.c.l.s4 1966171168
        %v2585 = vunpack.c.0.s8 %v2584
        %v2586 = vlaneseq
        %v2587 = vshrl.u32 %v2586, 7
        %v2588 = vsub.s32 %v2585, %v2587
        %v2589 = vrot.slane %v2574, %v2588
        %v2591 = vunpack.c.l.s4 1966171168
        %v2592 = vunpack.c.0.s8 %v2591
        %v2593 = vlaneseq
        %v2594 = vshrl.u32 %v2593, 7
        %v2595 = vsub.s32 %v2592, %v2594
        %v2596 = vrot.slane %v2572, %v2595
        %v2598 = vunpack.c.l.s4 1966171168
        %v2599 = vunpack.c.0.s8 %v2598
        %v2600 = vlaneseq
        %v2601 = vshrl.u32 %v2600, 7
        %v2602 = vsub.s32 %v2599, %v2601
        %v2603 = vrot.slane %v2575, %v2602
        %v2604 = vcombine.low %v2582, %v2596
        %v2605 = vcombine.low %v2589, %v2603
        %v2606 = vcombine.low %v2290, %v2292
        %v2607 = vcombine.low %v2294, %v2319
        %v2608 = vcombine.low %v2333, %v2341
        %v2609 = vcombine.low %v2343, %v2326
        %v2611 = vunpack.c.l.s4 1966171168
        %v2612 = vunpack.c.0.s8 %v2611
        %v2613 = vlaneseq
        %v2614 = vshrl.u32 %v2613, 7
        %v2615 = vsub.s32 %v2612, %v2614
        %v2616 = vrot.slane %v2606, %v2615
        %v2618 = vunpack.c.l.s4 1966171168
        %v2619 = vunpack.c.0.s8 %v2618
        %v2620 = vlaneseq
        %v2621 = vshrl.u32 %v2620, 7
        %v2622 = vsub.s32 %v2619, %v2621
        %v2623 = vrot.slane %v2607, %v2622
        %v2625 = vunpack.c.l.s4 1966171168
        %v2626 = vunpack.c.0.s8 %v2625
        %v2627 = vlaneseq
        %v2628 = vshrl.u32 %v2627, 7
        %v2629 = vsub.s32 %v2626, %v2628
        %v2630 = vrot.slane %v2608, %v2629
        %v2632 = vunpack.c.l.s4 1966171168
        %v2633 = vunpack.c.0.s8 %v2632
        %v2634 = vlaneseq
        %v2635 = vshrl.u32 %v2634, 7
        %v2636 = vsub.s32 %v2633, %v2635
        %v2637 = vrot.slane %v2609, %v2636
        %v2638 = vcombine.low %v2616, %v2623
        %v2639 = vcombine.high %v2616, %v2623
        %v2640 = vcombine.low %v2630, %v2637
        %v2641 = vcombine.high %v2630, %v2637
        %v2643 = vunpack.c.l.s4 1966171168
        %v2644 = vunpack.c.0.s8 %v2643
        %v2645 = vlaneseq
        %v2646 = vshrl.u32 %v2645, 7
        %v2647 = vsub.s32 %v2644, %v2646
        %v2648 = vrot.slane %v2638, %v2647
        %v2650 = vunpack.c.l.s4 1966171168
        %v2651 = vunpack.c.0.s8 %v2650
        %v2652 = vlaneseq
        %v2653 = vshrl.u32 %v2652, 7
        %v2654 = vsub.s32 %v2651, %v2653
        %v2655 = vrot.slane %v2639, %v2654
        %v2657 = vunpack.c.l.s4 1966171168
        %v2658 = vunpack.c.0.s8 %v2657
        %v2659 = vlaneseq
        %v2660 = vshrl.u32 %v2659, 7
        %v2661 = vsub.s32 %v2658, %v2660
        %v2662 = vrot.slane %v2640, %v2661
        %v2664 = vunpack.c.l.s4 1966171168
        %v2665 = vunpack.c.0.s8 %v2664
        %v2666 = vlaneseq
        %v2667 = vshrl.u32 %v2666, 7
        %v2668 = vsub.s32 %v2665, %v2667
        %v2669 = vrot.slane %v2641, %v2668
        %v2670 = vcombine.low %v2648, %v2662
        %v2671 = vcombine.low %v2655, %v2669
        %v2672 = vcombine.low %v2340, %v2342
        %v2673 = vcombine.low %v2344, %v2369
        %v2674 = vcombine.low %v2383, %v2391
        %v2675 = vcombine.low %v2393, %v2376
        %v2677 = vunpack.c.l.s4 1966171168
        %v2678 = vunpack.c.0.s8 %v2677
        %v2679 = vlaneseq
        %v2680 = vshrl.u32 %v2679, 7
        %v2681 = vsub.s32 %v2678, %v2680
        %v2682 = vrot.slane %v2672, %v2681
        %v2684 = vunpack.c.l.s4 1966171168
        %v2685 = vunpack.c.0.s8 %v2684
        %v2686 = vlaneseq
        %v2687 = vshrl.u32 %v2686, 7
        %v2688 = vsub.s32 %v2685, %v2687
        %v2689 = vrot.slane %v2673, %v2688
        %v2691 = vunpack.c.l.s4 1966171168
        %v2692 = vunpack.c.0.s8 %v2691
        %v2693 = vlaneseq
        %v2694 = vshrl.u32 %v2693, 7
        %v2695 = vsub.s32 %v2692, %v2694
        %v2696 = vrot.slane %v2674, %v2695
        %v2698 = vunpack.c.l.s4 1966171168
        %v2699 = vunpack.c.0.s8 %v2698
        %v2700 = vlaneseq
        %v2701 = vshrl.u32 %v2700, 7
        %v2702 = vsub.s32 %v2699, %v2701
        %v2703 = vrot.slane %v2675, %v2702
        %v2704 = vcombine.low %v2682, %v2689
        %v2705 = vcombine.high %v2682, %v2689
        %v2706 = vcombine.low %v2696, %v2703
        %v2707 = vcombine.high %v2696, %v2703
        %v2709 = vunpack.c.l.s4 1966171168
        %v2710 = vunpack.c.0.s8 %v2709
        %v2711 = vlaneseq
        %v2712 = vshrl.u32 %v2711, 7
        %v2713 = vsub.s32 %v2710, %v2712
        %v2714 = vrot.slane %v2704, %v2713
        %v2716 = vunpack.c.l.s4 1966171168
        %v2717 = vunpack.c.0.s8 %v2716
        %v2718 = vlaneseq
        %v2719 = vshrl.u32 %v2718, 7
        %v2720 = vsub.s32 %v2717, %v2719
        %v2721 = vrot.slane %v2705, %v2720
        %v2723 = vunpack.c.l.s4 1966171168
        %v2724 = vunpack.c.0.s8 %v2723
        %v2725 = vlaneseq
        %v2726 = vshrl.u32 %v2725, 7
        %v2727 = vsub.s32 %v2724, %v2726
        %v2728 = vrot.slane %v2706, %v2727
        %v2730 = vunpack.c.l.s4 1966171168
        %v2731 = vunpack.c.0.s8 %v2730
        %v2732 = vlaneseq
        %v2733 = vshrl.u32 %v2732, 7
        %v2734 = vsub.s32 %v2731, %v2733
        %v2735 = vrot.slane %v2707, %v2734
        %v2736 = vcombine.low %v2714, %v2728
        %v2737 = vcombine.low %v2721, %v2735
        %v2738 = vcombine.low %v2390, %v2392
        %v2739 = vcombine.low %v2394, %v2410
        %v2741 = vunpack.c.l.s4 1966171168
        %v2742 = vunpack.c.0.s8 %v2741
        %v2743 = vlaneseq
        %v2744 = vshrl.u32 %v2743, 7
        %v2745 = vsub.s32 %v2742, %v2744
        %v2746 = vrot.slane %v2738, %v2745
        %v2748 = vunpack.c.l.s4 1966171168
        %v2749 = vunpack.c.0.s8 %v2748
        %v2750 = vlaneseq
        %v2751 = vshrl.u32 %v2750, 7
        %v2752 = vsub.s32 %v2749, %v2751
        %v2753 = vrot.slane %v2739, %v2752
        %v2755 = vunpack.c.l.s4 1966171168
        %v2756 = vunpack.c.0.s8 %v2755
        %v2757 = vlaneseq
        %v2758 = vshrl.u32 %v2757, 7
        %v2759 = vsub.s32 %v2756, %v2758
        %v2760 = vrot.slane %v2417, %v2759
        %v2761 = vcombine.low %v2746, %v2753
        %v2762 = vcombine.high %v2746, %v2753
        %v2763 = vcombine.high %v2760, %v2760
        %v2765 = vunpack.c.l.s4 1966171168
        %v2766 = vunpack.c.0.s8 %v2765
        %v2767 = vlaneseq
        %v2768 = vshrl.u32 %v2767, 7
        %v2769 = vsub.s32 %v2766, %v2768
        %v2770 = vrot.slane %v2761, %v2769
        %v2772 = vunpack.c.l.s4 1966171168
        %v2773 = vunpack.c.0.s8 %v2772
        %v2774 = vlaneseq
        %v2775 = vshrl.u32 %v2774, 7
        %v2776 = vsub.s32 %v2773, %v2775
        %v2777 = vrot.slane %v2762, %v2776
        %v2779 = vunpack.c.l.s4 1966171168
        %v2780 = vunpack.c.0.s8 %v2779
        %v2781 = vlaneseq
        %v2782 = vshrl.u32 %v2781, 7
        %v2783 = vsub.s32 %v2780, %v2782
        %v2784 = vrot.slane %v2760, %v2783
        %v2786 = vunpack.c.l.s4 1966171168
        %v2787 = vunpack.c.0.s8 %v2786
        %v2788 = vlaneseq
        %v2789 = vshrl.u32 %v2788, 7
        %v2790 = vsub.s32 %v2787, %v2789
        %v2791 = vrot.slane %v2763, %v2790
        %v2792 = vcombine.low %v2770, %v2784
        %v2793 = vcombine.low %v2777, %v2791
        %v2806 = vadd.f32 %v672, %v2482
        %v2807 = vadd.f32 %v673, %v2483
        %v2808 = vadd.f32 %v674, %v2548
        %v2809 = vadd.f32 %v675, %v2549
        %v2810 = vadd.f32 %v676, %v2604
        %v2811 = vadd.f32 %v677, %v2605
        %v2812 = vadd.f32 %v678, %v2670
        %v2813 = vadd.f32 %v679, %v2671
        %v2814 = vadd.f32 %v680, %v2736
        %v2815 = vadd.f32 %v681, %v2737
        %v2816 = vadd.f32 %v682, %v2792
        %v2817 = vadd.f32 %v683, %v2793
        %2818 = vst [vmem:[#allocation2] sm:$0xff] %v2806
        %2819 = vst [vmem:[#allocation2 + $0x8] sm:$0xff] %v2807
        %2820 = vst [vmem:[#allocation2 + $0x10] sm:$0xff] %v2808
        %2821 = vst [vmem:[#allocation2 + $0x18] sm:$0xff] %v2809
        %2822 = vst [vmem:[#allocation2 + $0x20] sm:$0x1f] %v2810
        %2823 = vst [vmem:[#allocation2 + $0x28] sm:$0x1f] %v2811
        %2824 = vst [vmem:[#allocation2 + $0x30] sm:$0xff] %v2812
        %2825 = vst [vmem:[#allocation2 + $0x38] sm:$0xff] %v2813
        %2826 = vst [vmem:[#allocation2 + $0x40] sm:$0xff] %v2814
        %2827 = vst [vmem:[#allocation2 + $0x48] sm:$0xff] %v2815
        %2828 = vst [vmem:[#allocation2 + $0x50] sm:$0x1f] %v2816
        %2829 = vst [vmem:[#allocation2 + $0x58] sm:$0x1f] %v2817
        %v2830 = vld [vmem:[#allocation3] sm:$0xff]
        %v2831 = vld [vmem:[#allocation3 + $0x8] sm:$0xff]
        %v2832 = vld [vmem:[#allocation3 + $0x10] sm:$0x1f]
        %v2833 = vld [vmem:[#allocation3 + $0x18] sm:$0xff]
        %v2834 = vld [vmem:[#allocation3 + $0x20] sm:$0xff]
        %v2835 = vld [vmem:[#allocation3 + $0x28] sm:$0x1f]
        %v2836 = vld [vmem:[%s581] sm:$0xff]
        %v2837 = vld [vmem:[%s581 + $0x8] sm:$0xff]
        %v2838 = vld [vmem:[%s581 + $0x10] sm:$0xf]
        %v2839 = vld [vmem:[%s581 + $0x14] sm:$0xff]
        %v2840 = vld [vmem:[%s581 + $0x1c] sm:$0xff]
        %v2841 = vld [vmem:[%s581 + $0x24] sm:$0xf]
        %v2842 = vld [vmem:[%s581 + $0x28] sm:$0x77]
        %v2843 = vld [vmem:[%s581 + $0x30] sm:$0x77]
        %v2844 = vld [vmem:[%s581 + $0x38] sm:$0x7]
        %v2845 = vld [vmem:[%s581 + $0x3c] sm:$0xff]
        %v2846 = vld [vmem:[%s581 + $0x44] sm:$0xff]
        %v2847 = vld [vmem:[%s581 + $0x4c] sm:$0xf]
        %v2848 = vld [vmem:[%s581 + $0x50] sm:$0xff]
        %v2849 = vld [vmem:[%s581 + $0x58] sm:$0xff]
        %v2850 = vld [vmem:[%s581 + $0x60] sm:$0xf]
        %v2851 = vld [vmem:[%s581 + $0x64] sm:$0x77]
        %v2852 = vld [vmem:[%s581 + $0x6c] sm:$0x77]
        %v2853 = vld [vmem:[%s581 + $0x74] sm:$0x7]
        %v2854 = vld [vmem:[%s647] sm:$0xf]
        %v2855 = vld [vmem:[%s647 + $0x4] sm:$0xf]
        %v2856 = vld [vmem:[%s647 + $0x8] sm:$0xf]
        %v2857 = vld [vmem:[%s647 + $0xc] sm:$0xf]
        %v2858 = vld [vmem:[%s647 + $0x10] sm:$0xf]
        %v2859 = vld [vmem:[%s647 + $0x14] sm:$0xf]
        %v2860 = vld [vmem:[%s647 + $0x18] sm:$0xf]
        %v2861 = vld [vmem:[%s647 + $0x1c] sm:$0xf]
        %v2862 = vld [vmem:[%s647 + $0x20] sm:$0xf]
        %v2863 = vld [vmem:[%s647 + $0x24] sm:$0xf]
        %v2864 = vld [vmem:[%s647 + $0x28] sm:$0xf]
        %v2865 = vld [vmem:[%s647 + $0x2c] sm:$0xf]
        %v2866 = vld [vmem:[%s647 + $0x30] sm:$0xf]
        %v2867 = vld [vmem:[%s647 + $0x34] sm:$0xf]
        %v2868 = vld [vmem:[%s647 + $0x38] sm:$0xf]
        %v2869 = vld [vmem:[%s647 + $0x3c] sm:$0xf]
        %v2870 = vld [vmem:[%s647 + $0x40] sm:$0xf]
        %v2871 = vld [vmem:[%s647 + $0x44] sm:$0xf]
        %v2872 = vld [vmem:[%s647 + $0x48] sm:$0xf]
        %v2873 = vld [vmem:[%s647 + $0x4c] sm:$0xf]
        %v2874 = vld [vmem:[%s647 + $0x50] sm:$0xf]
        %v2875 = vld [vmem:[%s647 + $0x54] sm:$0xf]
        %v2876 = vld [vmem:[%s647 + $0x58] sm:$0xf]
        %v2877 = vld [vmem:[%s647 + $0x5c] sm:$0xf]
        %v2878 = vld [vmem:[%s647 + $0x60] sm:$0xf]
        %v2879 = vld [vmem:[%s647 + $0x64] sm:$0xf]
        %v2880 = vld [vmem:[%s647 + $0x68] sm:$0xf]
        %v2881 = vld [vmem:[%s647 + $0x6c] sm:$0xf]
        %v2882 = vld [vmem:[%s647 + $0x70] sm:$0xf]
        %v2883 = vld [vmem:[%s647 + $0x74] sm:$0xf]
        %v2884 = vld [vmem:[%s647 + $0x78] sm:$0xf]
        %v2885 = vld [vmem:[%s647 + $0x7c] sm:$0xf]
        %v2886 = vld [vmem:[%s647 + $0x80] sm:$0xf]
        %v2887 = vld [vmem:[%s647 + $0x84] sm:$0xf]
        %v2888 = vld [vmem:[%s647 + $0x88] sm:$0xf]
        %v2889 = vld [vmem:[%s647 + $0x8c] sm:$0xf]
        %v2890 = vld [vmem:[%s647 + $0x90] sm:$0xf]
        %v2891 = vld [vmem:[%s647 + $0x94] sm:$0xf]
        %v2892 = vld [vmem:[%s647 + $0x98] sm:$0xf]
        %v2893 = vld [vmem:[%s647 + $0x9c] sm:$0xf]
        %v2894 = vld [vmem:[%s647 + $0xa0] sm:$0xf]
        %v2895 = vld [vmem:[%s647 + $0xa4] sm:$0xf]
        %v2896 = vld [vmem:[%s647 + $0xa8] sm:$0xf]
        %v2897 = vld [vmem:[%s647 + $0xac] sm:$0xf]
        %v2898 = vld [vmem:[%s647 + $0xb0] sm:$0xf]
        %v2899 = vld [vmem:[%s647 + $0xb4] sm:$0xf]
        %v2900 = vld [vmem:[%s647 + $0xb8] sm:$0xf]
        %v2901 = vld [vmem:[%s647 + $0xbc] sm:$0xf]
        %v2902 = vld [vmem:[%s647 + $0xc0] sm:$0xf]
        %v2903 = vld [vmem:[%s647 + $0xc4] sm:$0xf]
        %v2904 = vld [vmem:[%s647 + $0xc8] sm:$0xf]
        %v2905 = vld [vmem:[%s647 + $0xcc] sm:$0xf]
        %v2906 = vld [vmem:[%s647 + $0xd0] sm:$0xf]
        %v2907 = vld [vmem:[%s647 + $0xd4] sm:$0xf]
        %v2908 = vld [vmem:[%s647 + $0xd8] sm:$0xf]
        %v2909 = vld [vmem:[%s647 + $0xdc] sm:$0xf]
        %v2910 = vld [vmem:[%s647 + $0xe0] sm:$0xf]
        %v2911 = vld [vmem:[%s647 + $0xe4] sm:$0xf]
        %v2912 = vld [vmem:[%s647 + $0xe8] sm:$0xf]
        %v2913 = vld [vmem:[%s647 + $0xec] sm:$0xf]
        %v2914 = vld [vmem:[%s647 + $0xf0] sm:$0xf]
        %v2915 = vld [vmem:[%s647 + $0xf4] sm:$0xf]
        %v2916 = vld [vmem:[%s647 + $0xf8] sm:$0xf]
        %v2917 = vld [vmem:[%s647 + $0xfc] sm:$0xf]
        %v2918 = vld [vmem:[%s647 + $0x100] sm:$0xf]
        %v2919 = vld [vmem:[%s647 + $0x104] sm:$0xf]
        %v2920 = vld [vmem:[%s647 + $0x108] sm:$0xf]
        %v2921 = vld [vmem:[%s647 + $0x10c] sm:$0xf]
        %v2922 = vld [vmem:[%s647 + $0x110] sm:$0xf]
        %v2923 = vld [vmem:[%s647 + $0x114] sm:$0xf]
        %v2924 = vld [vmem:[%s647 + $0x118] sm:$0xf]
        %v2925 = vld [vmem:[%s647 + $0x11c] sm:$0xf]
        %v2926 = vld [vmem:[%s647 + $0x120] sm:$0xf]
        %v2927 = vld [vmem:[%s647 + $0x124] sm:$0xf]
        %v2928 = vld [vmem:[%s647 + $0x128] sm:$0xf]
        %v2929 = vld [vmem:[%s647 + $0x12c] sm:$0xf]
        %v2930 = vld [vmem:[%s647 + $0x130] sm:$0xf]
        %v2931 = vld [vmem:[%s647 + $0x134] sm:$0xf]
        %v2932 = vld [vmem:[%s647 + $0x138] sm:$0xf]
        %v2933 = vld [vmem:[%s647 + $0x13c] sm:$0xf]
        %v2953 = vunpack.c.l.s4 1966171168
        %v2954 = vunpack.c.0.s8 %v2953
        %v2955 = vlaneseq
        %v2956 = vshrl.u32 %v2955, 7
        %v2957 = vsub.s32 %v2954, %v2956
        %v2958 = vrot.slane %v2836, %v2957
        %v2960 = vunpack.c.l.s4 1966171168
        %v2961 = vunpack.c.0.s8 %v2960
        %v2962 = vlaneseq
        %v2963 = vshrl.u32 %v2962, 7
        %v2964 = vsub.s32 %v2961, %v2963
        %v2965 = vrot.slane %v2837, %v2964
        %v2967 = vunpack.c.l.s4 1966171168
        %v2968 = vunpack.c.0.s8 %v2967
        %v2969 = vlaneseq
        %v2970 = vshrl.u32 %v2969, 7
        %v2971 = vsub.s32 %v2968, %v2970
        %v2972 = vrot.slane %v2838, %v2971
        %v2973 = vcombine.low %v2958, %v2965
        %v2974 = vcombine.high %v2958, %v2965
        %v2975 = vcombine.high %v2972, %v2972
        %v2977 = vunpack.c.l.s4 1966171168
        %v2978 = vunpack.c.0.s8 %v2977
        %v2979 = vlaneseq
        %v2980 = vshrl.u32 %v2979, 7
        %v2981 = vsub.s32 %v2978, %v2980
        %v2982 = vrot.slane %v2973, %v2981
        %v2984 = vunpack.c.l.s4 1966171168
        %v2985 = vunpack.c.0.s8 %v2984
        %v2986 = vlaneseq
        %v2987 = vshrl.u32 %v2986, 7
        %v2988 = vsub.s32 %v2985, %v2987
        %v2989 = vrot.slane %v2974, %v2988
        %v2991 = vunpack.c.l.s4 1966171168
        %v2992 = vunpack.c.0.s8 %v2991
        %v2993 = vlaneseq
        %v2994 = vshrl.u32 %v2993, 7
        %v2995 = vsub.s32 %v2992, %v2994
        %v2996 = vrot.slane %v2972, %v2995
        %v2998 = vunpack.c.l.s4 1966171168
        %v2999 = vunpack.c.0.s8 %v2998
        %v3000 = vlaneseq
        %v3001 = vshrl.u32 %v3000, 7
        %v3002 = vsub.s32 %v2999, %v3001
        %v3003 = vrot.slane %v2975, %v3002
        %v3004 = vcombine.low %v2982, %v2996
        %v3005 = vcombine.high %v2982, %v2996
        %v3006 = vcombine.low %v2989, %v3003
        %v3007 = vcombine.high %v2989, %v3003
        %v3009 = vunpack.c.l.s4 1966171168
        %v3010 = vunpack.c.0.s8 %v3009
        %v3011 = vlaneseq
        %v3012 = vshrl.u32 %v3011, 7
        %v3013 = vsub.s32 %v3010, %v3012
        %v3014 = vrot.slane %v2839, %v3013
        %v3016 = vunpack.c.l.s4 1966171168
        %v3017 = vunpack.c.0.s8 %v3016
        %v3018 = vlaneseq
        %v3019 = vshrl.u32 %v3018, 7
        %v3020 = vsub.s32 %v3017, %v3019
        %v3021 = vrot.slane %v2840, %v3020
        %v3023 = vunpack.c.l.s4 1966171168
        %v3024 = vunpack.c.0.s8 %v3023
        %v3025 = vlaneseq
        %v3026 = vshrl.u32 %v3025, 7
        %v3027 = vsub.s32 %v3024, %v3026
        %v3028 = vrot.slane %v2841, %v3027
        %v3029 = vcombine.low %v3014, %v3021
        %v3030 = vcombine.high %v3014, %v3021
        %v3031 = vcombine.high %v3028, %v3028
        %v3033 = vunpack.c.l.s4 1966171168
        %v3034 = vunpack.c.0.s8 %v3033
        %v3035 = vlaneseq
        %v3036 = vshrl.u32 %v3035, 7
        %v3037 = vsub.s32 %v3034, %v3036
        %v3038 = vrot.slane %v3029, %v3037
        %v3040 = vunpack.c.l.s4 1966171168
        %v3041 = vunpack.c.0.s8 %v3040
        %v3042 = vlaneseq
        %v3043 = vshrl.u32 %v3042, 7
        %v3044 = vsub.s32 %v3041, %v3043
        %v3045 = vrot.slane %v3030, %v3044
        %v3047 = vunpack.c.l.s4 1966171168
        %v3048 = vunpack.c.0.s8 %v3047
        %v3049 = vlaneseq
        %v3050 = vshrl.u32 %v3049, 7
        %v3051 = vsub.s32 %v3048, %v3050
        %v3052 = vrot.slane %v3028, %v3051
        %v3054 = vunpack.c.l.s4 1966171168
        %v3055 = vunpack.c.0.s8 %v3054
        %v3056 = vlaneseq
        %v3057 = vshrl.u32 %v3056, 7
        %v3058 = vsub.s32 %v3055, %v3057
        %v3059 = vrot.slane %v3031, %v3058
        %v3060 = vcombine.low %v3038, %v3052
        %v3061 = vcombine.high %v3038, %v3052
        %v3062 = vcombine.low %v3045, %v3059
        %v3063 = vcombine.high %v3045, %v3059
        %v3065 = vunpack.c.l.s4 1966171168
        %v3066 = vunpack.c.0.s8 %v3065
        %v3067 = vlaneseq
        %v3068 = vshrl.u32 %v3067, 7
        %v3069 = vsub.s32 %v3066, %v3068
        %v3070 = vrot.slane %v2842, %v3069
        %v3072 = vunpack.c.l.s4 1966171168
        %v3073 = vunpack.c.0.s8 %v3072
        %v3074 = vlaneseq
        %v3075 = vshrl.u32 %v3074, 7
        %v3076 = vsub.s32 %v3073, %v3075
        %v3077 = vrot.slane %v2843, %v3076
        %v3079 = vunpack.c.l.s4 1966171168
        %v3080 = vunpack.c.0.s8 %v3079
        %v3081 = vlaneseq
        %v3082 = vshrl.u32 %v3081, 7
        %v3083 = vsub.s32 %v3080, %v3082
        %v3084 = vrot.slane %v2844, %v3083
        %v3085 = vcombine.low %v3070, %v3077
        %v3086 = vcombine.high %v3070, %v3077
        %v3087 = vcombine.high %v3084, %v3084
        %v3089 = vunpack.c.l.s4 1966171168
        %v3090 = vunpack.c.0.s8 %v3089
        %v3091 = vlaneseq
        %v3092 = vshrl.u32 %v3091, 7
        %v3093 = vsub.s32 %v3090, %v3092
        %v3094 = vrot.slane %v3085, %v3093
        %v3096 = vunpack.c.l.s4 1966171168
        %v3097 = vunpack.c.0.s8 %v3096
        %v3098 = vlaneseq
        %v3099 = vshrl.u32 %v3098, 7
        %v3100 = vsub.s32 %v3097, %v3099
        %v3101 = vrot.slane %v3086, %v3100
        %v3103 = vunpack.c.l.s4 1966171168
        %v3104 = vunpack.c.0.s8 %v3103
        %v3105 = vlaneseq
        %v3106 = vshrl.u32 %v3105, 7
        %v3107 = vsub.s32 %v3104, %v3106
        %v3108 = vrot.slane %v3084, %v3107
        %v3110 = vunpack.c.l.s4 1966171168
        %v3111 = vunpack.c.0.s8 %v3110
        %v3112 = vlaneseq
        %v3113 = vshrl.u32 %v3112, 7
        %v3114 = vsub.s32 %v3111, %v3113
        %v3115 = vrot.slane %v3087, %v3114
        %v3116 = vcombine.low %v3094, %v3108
        %v3117 = vcombine.high %v3094, %v3108
        %v3118 = vcombine.low %v3101, %v3115
        %v3120 = vunpack.c.l.s4 1966171168
        %v3121 = vunpack.c.0.s8 %v3120
        %v3122 = vlaneseq
        %v3123 = vshrl.u32 %v3122, 7
        %v3124 = vsub.s32 %v3121, %v3123
        %v3125 = vrot.slane %v2845, %v3124
        %v3127 = vunpack.c.l.s4 1966171168
        %v3128 = vunpack.c.0.s8 %v3127
        %v3129 = vlaneseq
        %v3130 = vshrl.u32 %v3129, 7
        %v3131 = vsub.s32 %v3128, %v3130
        %v3132 = vrot.slane %v2846, %v3131
        %v3134 = vunpack.c.l.s4 1966171168
        %v3135 = vunpack.c.0.s8 %v3134
        %v3136 = vlaneseq
        %v3137 = vshrl.u32 %v3136, 7
        %v3138 = vsub.s32 %v3135, %v3137
        %v3139 = vrot.slane %v2847, %v3138
        %v3140 = vcombine.low %v3125, %v3132
        %v3141 = vcombine.high %v3125, %v3132
        %v3142 = vcombine.high %v3139, %v3139
        %v3144 = vunpack.c.l.s4 1966171168
        %v3145 = vunpack.c.0.s8 %v3144
        %v3146 = vlaneseq
        %v3147 = vshrl.u32 %v3146, 7
        %v3148 = vsub.s32 %v3145, %v3147
        %v3149 = vrot.slane %v3140, %v3148
        %v3151 = vunpack.c.l.s4 1966171168
        %v3152 = vunpack.c.0.s8 %v3151
        %v3153 = vlaneseq
        %v3154 = vshrl.u32 %v3153, 7
        %v3155 = vsub.s32 %v3152, %v3154
        %v3156 = vrot.slane %v3141, %v3155
        %v3158 = vunpack.c.l.s4 1966171168
        %v3159 = vunpack.c.0.s8 %v3158
        %v3160 = vlaneseq
        %v3161 = vshrl.u32 %v3160, 7
        %v3162 = vsub.s32 %v3159, %v3161
        %v3163 = vrot.slane %v3139, %v3162
        %v3165 = vunpack.c.l.s4 1966171168
        %v3166 = vunpack.c.0.s8 %v3165
        %v3167 = vlaneseq
        %v3168 = vshrl.u32 %v3167, 7
        %v3169 = vsub.s32 %v3166, %v3168
        %v3170 = vrot.slane %v3142, %v3169
        %v3171 = vcombine.low %v3149, %v3163
        %v3172 = vcombine.high %v3149, %v3163
        %v3173 = vcombine.low %v3156, %v3170
        %v3174 = vcombine.high %v3156, %v3170
        %v3176 = vunpack.c.l.s4 1966171168
        %v3177 = vunpack.c.0.s8 %v3176
        %v3178 = vlaneseq
        %v3179 = vshrl.u32 %v3178, 7
        %v3180 = vsub.s32 %v3177, %v3179
        %v3181 = vrot.slane %v2848, %v3180
        %v3183 = vunpack.c.l.s4 1966171168
        %v3184 = vunpack.c.0.s8 %v3183
        %v3185 = vlaneseq
        %v3186 = vshrl.u32 %v3185, 7
        %v3187 = vsub.s32 %v3184, %v3186
        %v3188 = vrot.slane %v2849, %v3187
        %v3190 = vunpack.c.l.s4 1966171168
        %v3191 = vunpack.c.0.s8 %v3190
        %v3192 = vlaneseq
        %v3193 = vshrl.u32 %v3192, 7
        %v3194 = vsub.s32 %v3191, %v3193
        %v3195 = vrot.slane %v2850, %v3194
        %v3196 = vcombine.low %v3181, %v3188
        %v3197 = vcombine.high %v3181, %v3188
        %v3198 = vcombine.high %v3195, %v3195
        %v3200 = vunpack.c.l.s4 1966171168
        %v3201 = vunpack.c.0.s8 %v3200
        %v3202 = vlaneseq
        %v3203 = vshrl.u32 %v3202, 7
        %v3204 = vsub.s32 %v3201, %v3203
        %v3205 = vrot.slane %v3196, %v3204
        %v3207 = vunpack.c.l.s4 1966171168
        %v3208 = vunpack.c.0.s8 %v3207
        %v3209 = vlaneseq
        %v3210 = vshrl.u32 %v3209, 7
        %v3211 = vsub.s32 %v3208, %v3210
        %v3212 = vrot.slane %v3197, %v3211
        %v3214 = vunpack.c.l.s4 1966171168
        %v3215 = vunpack.c.0.s8 %v3214
        %v3216 = vlaneseq
        %v3217 = vshrl.u32 %v3216, 7
        %v3218 = vsub.s32 %v3215, %v3217
        %v3219 = vrot.slane %v3195, %v3218
        %v3221 = vunpack.c.l.s4 1966171168
        %v3222 = vunpack.c.0.s8 %v3221
        %v3223 = vlaneseq
        %v3224 = vshrl.u32 %v3223, 7
        %v3225 = vsub.s32 %v3222, %v3224
        %v3226 = vrot.slane %v3198, %v3225
        %v3227 = vcombine.low %v3205, %v3219
        %v3228 = vcombine.high %v3205, %v3219
        %v3229 = vcombine.low %v3212, %v3226
        %v3230 = vcombine.high %v3212, %v3226
        %v3232 = vunpack.c.l.s4 1966171168
        %v3233 = vunpack.c.0.s8 %v3232
        %v3234 = vlaneseq
        %v3235 = vshrl.u32 %v3234, 7
        %v3236 = vsub.s32 %v3233, %v3235
        %v3237 = vrot.slane %v2851, %v3236
        %v3239 = vunpack.c.l.s4 1966171168
        %v3240 = vunpack.c.0.s8 %v3239
        %v3241 = vlaneseq
        %v3242 = vshrl.u32 %v3241, 7
        %v3243 = vsub.s32 %v3240, %v3242
        %v3244 = vrot.slane %v2852, %v3243
        %v3246 = vunpack.c.l.s4 1966171168
        %v3247 = vunpack.c.0.s8 %v3246
        %v3248 = vlaneseq
        %v3249 = vshrl.u32 %v3248, 7
        %v3250 = vsub.s32 %v3247, %v3249
        %v3251 = vrot.slane %v2853, %v3250
        %v3252 = vcombine.low %v3237, %v3244
        %v3253 = vcombine.high %v3237, %v3244
        %v3254 = vcombine.high %v3251, %v3251
        %v3256 = vunpack.c.l.s4 1966171168
        %v3257 = vunpack.c.0.s8 %v3256
        %v3258 = vlaneseq
        %v3259 = vshrl.u32 %v3258, 7
        %v3260 = vsub.s32 %v3257, %v3259
        %v3261 = vrot.slane %v3252, %v3260
        %v3263 = vunpack.c.l.s4 1966171168
        %v3264 = vunpack.c.0.s8 %v3263
        %v3265 = vlaneseq
        %v3266 = vshrl.u32 %v3265, 7
        %v3267 = vsub.s32 %v3264, %v3266
        %v3268 = vrot.slane %v3253, %v3267
        %v3270 = vunpack.c.l.s4 1966171168
        %v3271 = vunpack.c.0.s8 %v3270
        %v3272 = vlaneseq
        %v3273 = vshrl.u32 %v3272, 7
        %v3274 = vsub.s32 %v3271, %v3273
        %v3275 = vrot.slane %v3251, %v3274
        %v3277 = vunpack.c.l.s4 1966171168
        %v3278 = vunpack.c.0.s8 %v3277
        %v3279 = vlaneseq
        %v3280 = vshrl.u32 %v3279, 7
        %v3281 = vsub.s32 %v3278, %v3280
        %v3282 = vrot.slane %v3254, %v3281
        %v3283 = vcombine.low %v3261, %v3275
        %v3284 = vcombine.high %v3261, %v3275
        %v3285 = vcombine.low %v3268, %v3282
        %v3286 = vunpack.i.l.s16 %v3004
        %v3287 = vunpack.i.h.s16 %v3004
        %v3288 = vunpack.i.l.s16 %v3006
        %v3289 = vunpack.i.h.s16 %v3006
        %v3290 = vunpack.i.l.s16 %v3005
        %v3291 = vunpack.i.h.s16 %v3005
        %v3292 = vunpack.i.l.s16 %v3007
        %v3293 = vunpack.i.h.s16 %v3007
        %v3294 = vunpack.i.l.s16 %v3060
        %v3295 = vunpack.i.h.s16 %v3060
        %v3296 = vunpack.i.l.s16 %v3062
        %v3297 = vunpack.i.h.s16 %v3062
        %v3298 = vunpack.i.l.s16 %v3061
        %v3299 = vunpack.i.h.s16 %v3061
        %v3300 = vunpack.i.l.s16 %v3063
        %v3301 = vunpack.i.h.s16 %v3063
        %v3302 = vunpack.i.l.s16 %v3116
        %v3303 = vunpack.i.h.s16 %v3116
        %v3304 = vunpack.i.l.s16 %v3118
        %v3305 = vunpack.i.h.s16 %v3118
        %v3306 = vunpack.i.l.s16 %v3117
        %v3307 = vunpack.i.l.s16 %v3171
        %v3308 = vunpack.i.h.s16 %v3171
        %v3309 = vunpack.i.l.s16 %v3173
        %v3310 = vunpack.i.h.s16 %v3173
        %v3311 = vunpack.i.l.s16 %v3172
        %v3312 = vunpack.i.h.s16 %v3172
        %v3313 = vunpack.i.l.s16 %v3174
        %v3314 = vunpack.i.h.s16 %v3174
        %v3315 = vunpack.i.l.s16 %v3227
        %v3316 = vunpack.i.h.s16 %v3227
        %v3317 = vunpack.i.l.s16 %v3229
        %v3318 = vunpack.i.h.s16 %v3229
        %v3319 = vunpack.i.l.s16 %v3228
        %v3320 = vunpack.i.h.s16 %v3228
        %v3321 = vunpack.i.l.s16 %v3230
        %v3322 = vunpack.i.h.s16 %v3230
        %v3323 = vunpack.i.l.s16 %v3283
        %v3324 = vunpack.i.h.s16 %v3283
        %v3325 = vunpack.i.l.s16 %v3285
        %v3326 = vunpack.i.h.s16 %v3285
        %v3327 = vunpack.i.l.s16 %v3284
        %v3328 = vpack.i.b16 %v3287, %v3286
        %v3329 = vpack.i.b16 %v3289, %v3288
        %v3330 = vpack.i.b16 %v3291, %v3290
        %v3331 = vpack.i.b16 %v3293, %v3292
        %v3332 = vpack.i.b16 %v3295, %v3294
        %v3333 = vpack.i.b16 %v3297, %v3296
        %v3334 = vpack.i.b16 %v3299, %v3298
        %v3335 = vpack.i.b16 %v3301, %v3300
        %v3336 = vpack.i.b16 %v3303, %v3302
        %v3337 = vpack.i.b16 %v3305, %v3304
        %v3338 = vpack.i.b16 %v3307, %v3306
        %v3339 = vpack.i.b16 %v3309, %v3308
        %v3340 = vpack.i.b16 %v3311, %v3310
        %v3341 = vpack.i.b16 %v3313, %v3312
        %v3342 = vpack.i.b16 %v3315, %v3314
        %v3343 = vpack.i.b16 %v3317, %v3316
        %v3344 = vpack.i.b16 %v3319, %v3318
        %v3345 = vpack.i.b16 %v3321, %v3320
        %v3346 = vpack.i.b16 %v3323, %v3322
        %v3347 = vpack.i.b16 %v3325, %v3324
        %v3348 = vpack.i.b16 %v3327, %v3326
        %v3349 = vcombine.low %v3328, %v3329
        %v3350 = vcombine.high %v3328, %v3329
        %v3351 = vcombine.low %v3330, %v3331
        %v3352 = vcombine.high %v3330, %v3331
        %v3353 = vcombine.low %v3332, %v3333
        %v3354 = vcombine.high %v3332, %v3333
        %v3355 = vcombine.low %v3334, %v3335
        %v3356 = vcombine.high %v3334, %v3335
        %v3358 = vunpack.c.l.s4 1966171168
        %v3359 = vunpack.c.0.s8 %v3358
        %v3360 = vlaneseq
        %v3361 = vshrl.u32 %v3360, 7
        %v3362 = vsub.s32 %v3359, %v3361
        %v3363 = vrot.slane %v3349, %v3362
        %v3365 = vunpack.c.l.s4 1966171168
        %v3366 = vunpack.c.0.s8 %v3365
        %v3367 = vlaneseq
        %v3368 = vshrl.u32 %v3367, 7
        %v3369 = vsub.s32 %v3366, %v3368
        %v3370 = vrot.slane %v3350, %v3369
        %v3372 = vunpack.c.l.s4 1966171168
        %v3373 = vunpack.c.0.s8 %v3372
        %v3374 = vlaneseq
        %v3375 = vshrl.u32 %v3374, 7
        %v3376 = vsub.s32 %v3373, %v3375
        %v3377 = vrot.slane %v3351, %v3376
        %v3379 = vunpack.c.l.s4 1966171168
        %v3380 = vunpack.c.0.s8 %v3379
        %v3381 = vlaneseq
        %v3382 = vshrl.u32 %v3381, 7
        %v3383 = vsub.s32 %v3380, %v3382
        %v3384 = vrot.slane %v3352, %v3383
        %v3386 = vunpack.c.l.s4 1966171168
        %v3387 = vunpack.c.0.s8 %v3386
        %v3388 = vlaneseq
        %v3389 = vshrl.u32 %v3388, 7
        %v3390 = vsub.s32 %v3387, %v3389
        %v3391 = vrot.slane %v3353, %v3390
        %v3393 = vunpack.c.l.s4 1966171168
        %v3394 = vunpack.c.0.s8 %v3393
        %v3395 = vlaneseq
        %v3396 = vshrl.u32 %v3395, 7
        %v3397 = vsub.s32 %v3394, %v3396
        %v3398 = vrot.slane %v3354, %v3397
        %v3400 = vunpack.c.l.s4 1966171168
        %v3401 = vunpack.c.0.s8 %v3400
        %v3402 = vlaneseq
        %v3403 = vshrl.u32 %v3402, 7
        %v3404 = vsub.s32 %v3401, %v3403
        %v3405 = vrot.slane %v3355, %v3404
        %v3407 = vunpack.c.l.s4 1966171168
        %v3408 = vunpack.c.0.s8 %v3407
        %v3409 = vlaneseq
        %v3410 = vshrl.u32 %v3409, 7
        %v3411 = vsub.s32 %v3408, %v3410
        %v3412 = vrot.slane %v3356, %v3411
        %v3413 = vcombine.low %v3363, %v3377
        %v3414 = vcombine.high %v3363, %v3377
        %v3415 = vcombine.low %v3370, %v3384
        %v3416 = vcombine.low %v3391, %v3405
        %v3417 = vcombine.high %v3391, %v3405
        %v3418 = vcombine.low %v3398, %v3412
        %v3420 = vunpack.c.l.s4 1966171168
        %v3421 = vunpack.c.0.s8 %v3420
        %v3422 = vlaneseq
        %v3423 = vshrl.u32 %v3422, 7
        %v3424 = vsub.s32 %v3421, %v3423
        %v3425 = vrot.slane %v3413, %v3424
        %v3427 = vunpack.c.l.s4 1966171168
        %v3428 = vunpack.c.0.s8 %v3427
        %v3429 = vlaneseq
        %v3430 = vshrl.u32 %v3429, 7
        %v3431 = vsub.s32 %v3428, %v3430
        %v3432 = vrot.slane %v3415, %v3431
        %v3434 = vunpack.c.l.s4 1966171168
        %v3435 = vunpack.c.0.s8 %v3434
        %v3436 = vlaneseq
        %v3437 = vshrl.u32 %v3436, 7
        %v3438 = vsub.s32 %v3435, %v3437
        %v3439 = vrot.slane %v3414, %v3438
        %v3441 = vunpack.c.l.s4 1966171168
        %v3442 = vunpack.c.0.s8 %v3441
        %v3443 = vlaneseq
        %v3444 = vshrl.u32 %v3443, 7
        %v3445 = vsub.s32 %v3442, %v3444
        %v3446 = vrot.slane %v3416, %v3445
        %v3448 = vunpack.c.l.s4 1966171168
        %v3449 = vunpack.c.0.s8 %v3448
        %v3450 = vlaneseq
        %v3451 = vshrl.u32 %v3450, 7
        %v3452 = vsub.s32 %v3449, %v3451
        %v3453 = vrot.slane %v3418, %v3452
        %v3455 = vunpack.c.l.s4 1966171168
        %v3456 = vunpack.c.0.s8 %v3455
        %v3457 = vlaneseq
        %v3458 = vshrl.u32 %v3457, 7
        %v3459 = vsub.s32 %v3456, %v3458
        %v3460 = vrot.slane %v3417, %v3459
        %v3461 = vcombine.low %v3425, %v3446
        %v3462 = vcombine.high %v3425, %v3446
        %v3463 = vcombine.low %v3432, %v3453
        %v3464 = vcombine.low %v3439, %v3460
        %v3465 = vcombine.high %v3439, %v3460
        %v3466 = vcombine.low %v3336, %v3337
        %v3467 = vcombine.high %v3336, %v3337
        %v3468 = vcombine.low %v3338, %v3339
        %v3469 = vcombine.high %v3338, %v3339
        %v3470 = vcombine.low %v3340, %v3341
        %v3471 = vcombine.high %v3340, %v3341
        %v3472 = vcombine.low %v3342, %v3343
        %v3473 = vcombine.high %v3342, %v3343
        %v3475 = vunpack.c.l.s4 1966171168
        %v3476 = vunpack.c.0.s8 %v3475
        %v3477 = vlaneseq
        %v3478 = vshrl.u32 %v3477, 7
        %v3479 = vsub.s32 %v3476, %v3478
        %v3480 = vrot.slane %v3466, %v3479
        %v3482 = vunpack.c.l.s4 1966171168
        %v3483 = vunpack.c.0.s8 %v3482
        %v3484 = vlaneseq
        %v3485 = vshrl.u32 %v3484, 7
        %v3486 = vsub.s32 %v3483, %v3485
        %v3487 = vrot.slane %v3467, %v3486
        %v3489 = vunpack.c.l.s4 1966171168
        %v3490 = vunpack.c.0.s8 %v3489
        %v3491 = vlaneseq
        %v3492 = vshrl.u32 %v3491, 7
        %v3493 = vsub.s32 %v3490, %v3492
        %v3494 = vrot.slane %v3468, %v3493
        %v3496 = vunpack.c.l.s4 1966171168
        %v3497 = vunpack.c.0.s8 %v3496
        %v3498 = vlaneseq
        %v3499 = vshrl.u32 %v3498, 7
        %v3500 = vsub.s32 %v3497, %v3499
        %v3501 = vrot.slane %v3469, %v3500
        %v3503 = vunpack.c.l.s4 1966171168
        %v3504 = vunpack.c.0.s8 %v3503
        %v3505 = vlaneseq
        %v3506 = vshrl.u32 %v3505, 7
        %v3507 = vsub.s32 %v3504, %v3506
        %v3508 = vrot.slane %v3470, %v3507
        %v3510 = vunpack.c.l.s4 1966171168
        %v3511 = vunpack.c.0.s8 %v3510
        %v3512 = vlaneseq
        %v3513 = vshrl.u32 %v3512, 7
        %v3514 = vsub.s32 %v3511, %v3513
        %v3515 = vrot.slane %v3471, %v3514
        %v3517 = vunpack.c.l.s4 1966171168
        %v3518 = vunpack.c.0.s8 %v3517
        %v3519 = vlaneseq
        %v3520 = vshrl.u32 %v3519, 7
        %v3521 = vsub.s32 %v3518, %v3520
        %v3522 = vrot.slane %v3472, %v3521
        %v3524 = vunpack.c.l.s4 1966171168
        %v3525 = vunpack.c.0.s8 %v3524
        %v3526 = vlaneseq
        %v3527 = vshrl.u32 %v3526, 7
        %v3528 = vsub.s32 %v3525, %v3527
        %v3529 = vrot.slane %v3473, %v3528
        %v3530 = vcombine.low %v3480, %v3494
        %v3531 = vcombine.high %v3480, %v3494
        %v3532 = vcombine.low %v3487, %v3501
        %v3533 = vcombine.low %v3508, %v3522
        %v3534 = vcombine.high %v3508, %v3522
        %v3535 = vcombine.low %v3515, %v3529
        %v3537 = vunpack.c.l.s4 1966171168
        %v3538 = vunpack.c.0.s8 %v3537
        %v3539 = vlaneseq
        %v3540 = vshrl.u32 %v3539, 7
        %v3541 = vsub.s32 %v3538, %v3540
        %v3542 = vrot.slane %v3530, %v3541
        %v3544 = vunpack.c.l.s4 1966171168
        %v3545 = vunpack.c.0.s8 %v3544
        %v3546 = vlaneseq
        %v3547 = vshrl.u32 %v3546, 7
        %v3548 = vsub.s32 %v3545, %v3547
        %v3549 = vrot.slane %v3532, %v3548
        %v3551 = vunpack.c.l.s4 1966171168
        %v3552 = vunpack.c.0.s8 %v3551
        %v3553 = vlaneseq
        %v3554 = vshrl.u32 %v3553, 7
        %v3555 = vsub.s32 %v3552, %v3554
        %v3556 = vrot.slane %v3531, %v3555
        %v3558 = vunpack.c.l.s4 1966171168
        %v3559 = vunpack.c.0.s8 %v3558
        %v3560 = vlaneseq
        %v3561 = vshrl.u32 %v3560, 7
        %v3562 = vsub.s32 %v3559, %v3561
        %v3563 = vrot.slane %v3533, %v3562
        %v3565 = vunpack.c.l.s4 1966171168
        %v3566 = vunpack.c.0.s8 %v3565
        %v3567 = vlaneseq
        %v3568 = vshrl.u32 %v3567, 7
        %v3569 = vsub.s32 %v3566, %v3568
        %v3570 = vrot.slane %v3535, %v3569
        %v3572 = vunpack.c.l.s4 1966171168
        %v3573 = vunpack.c.0.s8 %v3572
        %v3574 = vlaneseq
        %v3575 = vshrl.u32 %v3574, 7
        %v3576 = vsub.s32 %v3573, %v3575
        %v3577 = vrot.slane %v3534, %v3576
        %v3578 = vcombine.low %v3542, %v3563
        %v3579 = vcombine.high %v3542, %v3563
        %v3580 = vcombine.low %v3549, %v3570
        %v3581 = vcombine.low %v3556, %v3577
        %v3582 = vcombine.high %v3556, %v3577
        %v3583 = vcombine.low %v3344, %v3345
        %v3584 = vcombine.high %v3344, %v3345
        %v3585 = vcombine.low %v3346, %v3347
        %v3586 = vcombine.high %v3346, %v3347
        %v3587 = vcombine.high %v3348, %v3348
        %v3589 = vunpack.c.l.s4 1966171168
        %v3590 = vunpack.c.0.s8 %v3589
        %v3591 = vlaneseq
        %v3592 = vshrl.u32 %v3591, 7
        %v3593 = vsub.s32 %v3590, %v3592
        %v3594 = vrot.slane %v3583, %v3593
        %v3596 = vunpack.c.l.s4 1966171168
        %v3597 = vunpack.c.0.s8 %v3596
        %v3598 = vlaneseq
        %v3599 = vshrl.u32 %v3598, 7
        %v3600 = vsub.s32 %v3597, %v3599
        %v3601 = vrot.slane %v3584, %v3600
        %v3603 = vunpack.c.l.s4 1966171168
        %v3604 = vunpack.c.0.s8 %v3603
        %v3605 = vlaneseq
        %v3606 = vshrl.u32 %v3605, 7
        %v3607 = vsub.s32 %v3604, %v3606
        %v3608 = vrot.slane %v3585, %v3607
        %v3610 = vunpack.c.l.s4 1966171168
        %v3611 = vunpack.c.0.s8 %v3610
        %v3612 = vlaneseq
        %v3613 = vshrl.u32 %v3612, 7
        %v3614 = vsub.s32 %v3611, %v3613
        %v3615 = vrot.slane %v3586, %v3614
        %v3617 = vunpack.c.l.s4 1966171168
        %v3618 = vunpack.c.0.s8 %v3617
        %v3619 = vlaneseq
        %v3620 = vshrl.u32 %v3619, 7
        %v3621 = vsub.s32 %v3618, %v3620
        %v3622 = vrot.slane %v3348, %v3621
        %v3624 = vunpack.c.l.s4 1966171168
        %v3625 = vunpack.c.0.s8 %v3624
        %v3626 = vlaneseq
        %v3627 = vshrl.u32 %v3626, 7
        %v3628 = vsub.s32 %v3625, %v3627
        %v3629 = vrot.slane %v3587, %v3628
        %v3630 = vcombine.low %v3594, %v3608
        %v3631 = vcombine.high %v3594, %v3608
        %v3632 = vcombine.low %v3601, %v3615
        %v3633 = vcombine.high %v3622, %v3622
        %v3635 = vunpack.c.l.s4 1966171168
        %v3636 = vunpack.c.0.s8 %v3635
        %v3637 = vlaneseq
        %v3638 = vshrl.u32 %v3637, 7
        %v3639 = vsub.s32 %v3636, %v3638
        %v3640 = vrot.slane %v3630, %v3639
        %v3642 = vunpack.c.l.s4 1966171168
        %v3643 = vunpack.c.0.s8 %v3642
        %v3644 = vlaneseq
        %v3645 = vshrl.u32 %v3644, 7
        %v3646 = vsub.s32 %v3643, %v3645
        %v3647 = vrot.slane %v3632, %v3646
        %v3649 = vunpack.c.l.s4 1966171168
        %v3650 = vunpack.c.0.s8 %v3649
        %v3651 = vlaneseq
        %v3652 = vshrl.u32 %v3651, 7
        %v3653 = vsub.s32 %v3650, %v3652
        %v3654 = vrot.slane %v3631, %v3653
        %v3656 = vunpack.c.l.s4 1966171168
        %v3657 = vunpack.c.0.s8 %v3656
        %v3658 = vlaneseq
        %v3659 = vshrl.u32 %v3658, 7
        %v3660 = vsub.s32 %v3657, %v3659
        %v3661 = vrot.slane %v3622, %v3660
        %v3663 = vunpack.c.l.s4 1966171168
        %v3664 = vunpack.c.0.s8 %v3663
        %v3665 = vlaneseq
        %v3666 = vshrl.u32 %v3665, 7
        %v3667 = vsub.s32 %v3664, %v3666
        %v3668 = vrot.slane %v3629, %v3667
        %v3670 = vunpack.c.l.s4 1966171168
        %v3671 = vunpack.c.0.s8 %v3670
        %v3672 = vlaneseq
        %v3673 = vshrl.u32 %v3672, 7
        %v3674 = vsub.s32 %v3671, %v3673
        %v3675 = vrot.slane %v3633, %v3674
        %v3676 = vcombine.low %v3640, %v3661
        %v3677 = vcombine.high %v3640, %v3661
        %v3678 = vcombine.low %v3647, %v3668
        %v3679 = vcombine.low %v3654, %v3675
        %v3680 = vcombine.high %v3654, %v3675
        %v3776 = vunpack.c.l.b16 %v2854
        %v3777 = vunpack.c.l.b16 %v2855
        %v3778 = vunpack.c.l.b16 %v2856
        %v3779 = vunpack.c.l.b16 %v2857
        %v3780 = vunpack.c.l.b16 %v2858
        %v3781 = vunpack.c.l.b16 %v2859
        %v3782 = vunpack.c.l.b16 %v2860
        %v3783 = vunpack.c.l.b16 %v2861
        %v3784 = vunpack.c.l.b16 %v2862
        %v3785 = vunpack.c.l.b16 %v2863
        %v3786 = vunpack.c.l.b16 %v2864
        %v3787 = vunpack.c.l.b16 %v2865
        %v3788 = vunpack.c.l.b16 %v2866
        %v3789 = vunpack.c.l.b16 %v2867
        %v3790 = vunpack.c.l.b16 %v2868
        %v3791 = vunpack.c.l.b16 %v2869
        %v3792 = vunpack.c.l.b16 %v2870
        %v3793 = vunpack.c.l.b16 %v2871
        %v3794 = vunpack.c.l.b16 %v2872
        %v3795 = vunpack.c.l.b16 %v2873
        %v3796 = vunpack.c.l.b16 %v2874
        %v3797 = vunpack.c.l.b16 %v2875
        %v3798 = vunpack.c.l.b16 %v2876
        %v3799 = vunpack.c.l.b16 %v2877
        %v3800 = vunpack.c.l.b16 %v2878
        %v3801 = vunpack.c.l.b16 %v2879
        %v3802 = vunpack.c.l.b16 %v2880
        %v3803 = vunpack.c.l.b16 %v2881
        %v3804 = vunpack.c.l.b16 %v2882
        %v3805 = vunpack.c.l.b16 %v2883
        %v3806 = vunpack.c.l.b16 %v2884
        %v3807 = vunpack.c.l.b16 %v2885
        %v3808 = vunpack.c.l.b16 %v2886
        %v3809 = vunpack.c.l.b16 %v2887
        %v3810 = vunpack.c.l.b16 %v2888
        %v3811 = vunpack.c.l.b16 %v2889
        %v3812 = vunpack.c.l.b16 %v2890
        %v3813 = vunpack.c.l.b16 %v2891
        %v3814 = vunpack.c.l.b16 %v2892
        %v3815 = vunpack.c.l.b16 %v2893
        %v3816 = vunpack.c.l.b16 %v2894
        %v3817 = vunpack.c.l.b16 %v2895
        %v3818 = vunpack.c.l.b16 %v2896
        %v3819 = vunpack.c.l.b16 %v2897
        %v3820 = vunpack.c.l.b16 %v2898
        %v3821 = vunpack.c.l.b16 %v2899
        %v3822 = vunpack.c.l.b16 %v2900
        %v3823 = vunpack.c.l.b16 %v2901
        %v3824 = vunpack.c.l.b16 %v2902
        %v3825 = vunpack.c.l.b16 %v2903
        %v3826 = vunpack.c.l.b16 %v2904
        %v3827 = vunpack.c.l.b16 %v2905
        %v3828 = vunpack.c.l.b16 %v2906
        %v3829 = vunpack.c.l.b16 %v2907
        %v3830 = vunpack.c.l.b16 %v2908
        %v3831 = vunpack.c.l.b16 %v2909
        %v3832 = vunpack.c.l.b16 %v2910
        %v3833 = vunpack.c.l.b16 %v2911
        %v3834 = vunpack.c.l.b16 %v2912
        %v3835 = vunpack.c.l.b16 %v2913
        %v3836 = vunpack.c.l.b16 %v2914
        %v3837 = vunpack.c.l.b16 %v2915
        %v3838 = vunpack.c.l.b16 %v2916
        %v3839 = vunpack.c.l.b16 %v2917
        %v3840 = vunpack.c.l.b16 %v2918
        %v3841 = vunpack.c.l.b16 %v2919
        %v3842 = vunpack.c.l.b16 %v2920
        %v3843 = vunpack.c.l.b16 %v2921
        %v3844 = vunpack.c.l.b16 %v2922
        %v3845 = vunpack.c.l.b16 %v2923
        %v3846 = vunpack.c.l.b16 %v2924
        %v3847 = vunpack.c.l.b16 %v2925
        %v3848 = vunpack.c.l.b16 %v2926
        %v3849 = vunpack.c.l.b16 %v2927
        %v3850 = vunpack.c.l.b16 %v2928
        %v3851 = vunpack.c.l.b16 %v2929
        %v3852 = vunpack.c.l.b16 %v2930
        %v3853 = vunpack.c.l.b16 %v2931
        %v3854 = vunpack.c.l.b16 %v2932
        %v3855 = vunpack.c.l.b16 %v2933
        %v3856 = vpack.c.b16 %v3777, %v3776
        %v3857 = vpack.c.b16 %v3779, %v3778
        %v3858 = vpack.c.b16 %v3781, %v3780
        %v3859 = vpack.c.b16 %v3783, %v3782
        %v3860 = vpack.c.b16 %v3785, %v3784
        %v3861 = vpack.c.b16 %v3787, %v3786
        %v3862 = vpack.c.b16 %v3789, %v3788
        %v3863 = vpack.c.b16 %v3791, %v3790
        %v3864 = vpack.c.b16 %v3793, %v3792
        %v3865 = vpack.c.b16 %v3795, %v3794
        %v3866 = vpack.c.b16 %v3797, %v3796
        %v3867 = vpack.c.b16 %v3799, %v3798
        %v3868 = vpack.c.b16 %v3801, %v3800
        %v3869 = vpack.c.b16 %v3803, %v3802
        %v3870 = vpack.c.b16 %v3805, %v3804
        %v3871 = vpack.c.b16 %v3807, %v3806
        %v3872 = vpack.c.b16 %v3809, %v3808
        %v3873 = vpack.c.b16 %v3811, %v3810
        %v3874 = vpack.c.b16 %v3813, %v3812
        %v3875 = vpack.c.b16 %v3815, %v3814
        %v3876 = vpack.c.b16 %v3817, %v3816
        %v3877 = vpack.c.b16 %v3819, %v3818
        %v3878 = vpack.c.b16 %v3821, %v3820
        %v3879 = vpack.c.b16 %v3823, %v3822
        %v3880 = vpack.c.b16 %v3825, %v3824
        %v3881 = vpack.c.b16 %v3827, %v3826
        %v3882 = vpack.c.b16 %v3829, %v3828
        %v3883 = vpack.c.b16 %v3831, %v3830
        %v3884 = vpack.c.b16 %v3833, %v3832
        %v3885 = vpack.c.b16 %v3835, %v3834
        %v3886 = vpack.c.b16 %v3837, %v3836
        %v3887 = vpack.c.b16 %v3839, %v3838
        %v3888 = vpack.c.b16 %v3841, %v3840
        %v3889 = vpack.c.b16 %v3843, %v3842
        %v3890 = vpack.c.b16 %v3845, %v3844
        %v3891 = vpack.c.b16 %v3847, %v3846
        %v3892 = vpack.c.b16 %v3849, %v3848
        %v3893 = vpack.c.b16 %v3851, %v3850
        %v3894 = vpack.c.b16 %v3853, %v3852
        %v3895 = vpack.c.b16 %v3855, %v3854
        %3936 = vmatprep.subr.bf16.mxu0 0
        %3937 = vmatpush1.bf16.msra.mxu0 %v3856
        %3938 = vmatprep.subr.bf16.mxu0 0
        %3939 = vmatpush1.bf16.msra.mxu0 %v3857
        %3940 = vmatprep.subr.bf16.mxu0 0
        %3941 = vmatpush1.bf16.msra.mxu0 %v3858
        %3942 = vmatprep.subr.bf16.mxu0 0
        %3943 = vmatpush1.bf16.msra.mxu0 %v3859
        %3944 = vmatprep.subr.bf16.mxu0 0
        %3945 = vmatpush1.bf16.msra.mxu0 %v3860
        %3946 = vmatprep.subr.bf16.mxu0 0
        %3947 = vmatpush1.bf16.msra.mxu0 %v3861
        %3948 = vmatprep.subr.bf16.mxu0 0
        %3949 = vmatpush1.bf16.msra.mxu0 %v3862
        %3950 = vmatprep.subr.bf16.mxu0 0
        %3951 = vmatpush1.bf16.msra.mxu0 %v3863
        %3952 = vmatprep.subr.bf16.mxu0 0
        %3953 = vmatpush1.bf16.msra.mxu0 %v3864
        %3954 = vmatprep.subr.bf16.mxu0 0
        %3955 = vmatpush1.bf16.msra.mxu0 %v3865
        %3956 = vmatprep.subr.bf16.mxu0 0
        %3957 = vmatpush1.bf16.msra.mxu0 %v3866
        %3958 = vmatprep.subr.bf16.mxu0 0
        %3959 = vmatpush1.bf16.msra.mxu0 %v3867
        %3960 = vmatprep.subr.bf16.mxu0 0
        %3961 = vmatpush1.bf16.msra.mxu0 %v3868
        %3962 = vmatprep.subr.bf16.mxu0 0
        %3963 = vmatpush1.bf16.msra.mxu0 %v3869
        %3964 = vmatprep.subr.bf16.mxu0 0
        %3965 = vmatpush1.bf16.msra.mxu0 %v3870
        %3966 = vmatprep.subr.bf16.mxu0 0
        %3967 = vmatpush1.bf16.msra.mxu0 %v3871
        %3968 = vmatprep.mubr.bf16.mxu0 %v3464
        %3969 = vmatmul.mubr.bf16.gmra.mrb[0].mxu0 %v3461
        %v3970 = vpop.f32.mrb[0].mxu0
        %v3971 = vadd.f32 0.0, %v3970
        %v3972 = vpop.f32.mrb[0].mxu0
        %v3973 = vpop.f32.mrb[0].mxu0
        %v3974 = vadd.f32 0.0, %v3973
        %v3975 = vpop.f32.mrb[0].mxu0
        %3976 = vmatprep.mubr.bf16.mxu0 %v3581
        %3977 = vmatmul.mubr.bf16.gmra.mrb[0].mxu0 %v3578
        %v3978 = vpop.f32.mrb[0].mxu0
        %v3979 = vadd.f32 0.0, %v3978
        %v3980 = vpop.f32.mrb[0].mxu0
        %v3981 = vpop.f32.mrb[0].mxu0
        %v3982 = vadd.f32 0.0, %v3981
        %v3983 = vpop.f32.mrb[0].mxu0
        %3984 = vmatprep.mubr.bf16.mxu0 %v3679
        %3985 = vmatmul.mubr.bf16.gmra.mrb[0].mxu0 %v3676
        %v3986 = vpop.f32.mrb[0].mxu0
        %v3987 = vadd.f32 0.0, %v3986
        %v3988 = vpop.f32.mrb[0].mxu0
        %v3989 = vpop.f32.mrb[0].mxu0
        %v3990 = vadd.f32 0.0, %v3989
        %v3991 = vpop.f32.mrb[0].mxu0
        %3992 = vdwg.mxu0
        %3993 = vmatprep.subr.bf16.mxu0 0
        %3994 = vmatpush1.bf16.msra.mxu0 %v3872
        %3995 = vmatprep.subr.bf16.mxu0 0
        %3996 = vmatpush1.bf16.msra.mxu0 %v3873
        %3997 = vmatprep.subr.bf16.mxu0 0
        %3998 = vmatpush1.bf16.msra.mxu0 %v3874
        %3999 = vmatprep.subr.bf16.mxu0 0
        %4000 = vmatpush1.bf16.msra.mxu0 %v3875
        %4001 = vmatprep.subr.bf16.mxu0 0
        %4002 = vmatpush1.bf16.msra.mxu0 %v3876
        %4003 = vmatprep.subr.bf16.mxu0 0
        %4004 = vmatpush1.bf16.msra.mxu0 %v3877
        %4005 = vmatprep.subr.bf16.mxu0 0
        %4006 = vmatpush1.bf16.msra.mxu0 %v3878
        %4007 = vmatprep.subr.bf16.mxu0 0
        %4008 = vmatpush1.bf16.msra.mxu0 %v3879
        %4009 = vmatprep.subr.bf16.mxu0 0
        %4010 = vmatpush1.bf16.msra.mxu0 %v3880
        %4011 = vmatprep.subr.bf16.mxu0 0
        %4012 = vmatpush1.bf16.msra.mxu0 %v3881
        %4013 = vmatprep.subr.bf16.mxu0 0
        %4014 = vmatpush1.bf16.msra.mxu0 %v3882
        %4015 = vmatprep.subr.bf16.mxu0 0
        %4016 = vmatpush1.bf16.msra.mxu0 %v3883
        %4017 = vmatprep.subr.bf16.mxu0 0
        %4018 = vmatpush1.bf16.msra.mxu0 %v3884
        %4019 = vmatprep.subr.bf16.mxu0 0
        %4020 = vmatpush1.bf16.msra.mxu0 %v3885
        %4021 = vmatprep.subr.bf16.mxu0 0
        %4022 = vmatpush1.bf16.msra.mxu0 %v3886
        %4023 = vmatprep.subr.bf16.mxu0 0
        %4024 = vmatpush1.bf16.msra.mxu0 %v3887
        %4025 = vmatprep.mubr.bf16.mxu0 %v3465
        %4026 = vmatmul.mubr.bf16.gmra.mrb[0].mxu0 %v3462
        %v4027 = vpop.f32.mrb[0].mxu0
        %v4028 = vadd.f32 %v3971, %v4027
        %v4029 = vpop.f32.mrb[0].mxu0
        %v4030 = vpop.f32.mrb[0].mxu0
        %v4031 = vadd.f32 %v3974, %v4030
        %v4032 = vpop.f32.mrb[0].mxu0
        %4033 = vmatprep.mubr.bf16.mxu0 %v3582
        %4034 = vmatmul.mubr.bf16.gmra.mrb[0].mxu0 %v3579
        %v4035 = vpop.f32.mrb[0].mxu0
        %v4036 = vadd.f32 %v3979, %v4035
        %v4037 = vpop.f32.mrb[0].mxu0
        %v4038 = vpop.f32.mrb[0].mxu0
        %v4039 = vadd.f32 %v3982, %v4038
        %v4040 = vpop.f32.mrb[0].mxu0
        %4041 = vmatprep.mubr.bf16.mxu0 %v3680
        %4042 = vmatmul.mubr.bf16.gmra.mrb[0].mxu0 %v3677
        %v4043 = vpop.f32.mrb[0].mxu0
        %v4044 = vadd.f32 %v3987, %v4043
        %v4045 = vpop.f32.mrb[0].mxu0
        %v4046 = vpop.f32.mrb[0].mxu0
        %v4047 = vadd.f32 %v3990, %v4046
        %v4048 = vpop.f32.mrb[0].mxu0
        %4049 = vdwg.mxu0
        %4050 = vmatprep.subr.bf16.mxu0 0
        %4051 = vmatpush1.bf16.msra.mxu0 %v3888
        %4052 = vmatprep.subr.bf16.mxu0 0
        %4053 = vmatpush1.bf16.msra.mxu0 %v3889
        %4054 = vmatprep.subr.bf16.mxu0 0
        %4055 = vmatpush1.bf16.msra.mxu0 %v3890
        %4056 = vmatprep.subr.bf16.mxu0 0
        %4057 = vmatpush1.bf16.msra.mxu0 %v3891
        %4058 = vmatprep.subr.bf16.mxu0 0
        %4059 = vmatpush1.bf16.msra.mxu0 %v3892
        %4060 = vmatprep.subr.bf16.mxu0 0
        %4061 = vmatpush1.bf16.msra.mxu0 %v3893
        %4062 = vmatprep.subr.bf16.mxu0 0
        %4063 = vmatpush1.bf16.msra.mxu0 %v3894
        %4064 = vmatprep.subr.bf16.mxu0 0
        %4065 = vmatpush1.bf16.msra.mxu0 %v3895
        %4066 = vmatprep.subr.bf16.mxu0 0
        %4067 = vmatpush1.bf16.msra.mxu0 0
        %4068 = vmatprep.subr.bf16.mxu0 0
        %4069 = vmatpush1.bf16.msra.mxu0 0
        %4070 = vmatprep.subr.bf16.mxu0 0
        %4071 = vmatpush1.bf16.msra.mxu0 0
        %4072 = vmatprep.subr.bf16.mxu0 0
        %4073 = vmatpush1.bf16.msra.mxu0 0
        %4074 = vmatprep.subr.bf16.mxu0 0
        %4075 = vmatpush1.bf16.msra.mxu0 0
        %4076 = vmatprep.subr.bf16.mxu0 0
        %4077 = vmatpush1.bf16.msra.mxu0 0
        %4078 = vmatprep.subr.bf16.mxu0 0
        %4079 = vmatpush1.bf16.msra.mxu0 0
        %4080 = vmatprep.subr.bf16.mxu0 0
        %4081 = vmatpush1.bf16.msra.mxu0 0
        %4082 = vmatprep.mubr.bf16.mxu0 0
        %4083 = vmatmul.mubr.bf16.gmra.mrb[0].mxu0 %v3463
        %v4084 = vpop.f32.mrb[0].mxu0
        %v4085 = vadd.f32 %v4028, %v4084
        %v4086 = vpop.f32.mrb[0].mxu0
        %v4087 = vpop.f32.mrb[0].mxu0
        %v4088 = vadd.f32 %v4031, %v4087
        %v4089 = vpop.f32.mrb[0].mxu0
        %4090 = vmatprep.mubr.bf16.mxu0 0
        %4091 = vmatmul.mubr.bf16.gmra.mrb[0].mxu0 %v3580
        %v4092 = vpop.f32.mrb[0].mxu0
        %v4093 = vadd.f32 %v4036, %v4092
        %v4094 = vpop.f32.mrb[0].mxu0
        %v4095 = vpop.f32.mrb[0].mxu0
        %v4096 = vadd.f32 %v4039, %v4095
        %v4097 = vpop.f32.mrb[0].mxu0
        %4098 = vmatprep.mubr.bf16.mxu0 0
        %4099 = vmatmul.mubr.bf16.gmra.mrb[0].mxu0 %v3678
        %v4100 = vpop.f32.mrb[0].mxu0
        %v4101 = vadd.f32 %v4044, %v4100
        %v4102 = vpop.f32.mrb[0].mxu0
        %v4103 = vpop.f32.mrb[0].mxu0
        %v4104 = vadd.f32 %v4047, %v4103
        %v4105 = vpop.f32.mrb[0].mxu0
        %4106 = vdwg.mxu0
        %v4113 = vcombine.high %v4085, %v4085
        %v4115 = vunpack.c.l.s4 1966171168
        %v4116 = vunpack.c.0.s8 %v4115
        %v4117 = vlaneseq
        %v4118 = vshrl.u32 %v4117, 7
        %v4119 = vsub.s32 %v4116, %v4118
        %v4120 = vrot.slane %v4085, %v4119
        %v4122 = vunpack.c.l.s4 1966171168
        %v4123 = vunpack.c.0.s8 %v4122
        %v4124 = vlaneseq
        %v4125 = vshrl.u32 %v4124, 7
        %v4126 = vsub.s32 %v4123, %v4125
        %v4127 = vrot.slane %v4113, %v4126
        %v4128 = vcombine.high %v4120, %v4120
        %v4129 = vcombine.high %v4127, %v4127
        %v4131 = vunpack.c.l.s4 1966171168
        %v4132 = vunpack.c.0.s8 %v4131
        %v4133 = vlaneseq
        %v4134 = vshrl.u32 %v4133, 7
        %v4135 = vsub.s32 %v4132, %v4134
        %v4136 = vrot.slane %v4120, %v4135
        %v4138 = vunpack.c.l.s4 1966171168
        %v4139 = vunpack.c.0.s8 %v4138
        %v4140 = vlaneseq
        %v4141 = vshrl.u32 %v4140, 7
        %v4142 = vsub.s32 %v4139, %v4141
        %v4143 = vrot.slane %v4127, %v4142
        %v4145 = vunpack.c.l.s4 1966171168
        %v4146 = vunpack.c.0.s8 %v4145
        %v4147 = vlaneseq
        %v4148 = vshrl.u32 %v4147, 7
        %v4149 = vsub.s32 %v4146, %v4148
        %v4150 = vrot.slane %v4128, %v4149
        %v4152 = vunpack.c.l.s4 1966171168
        %v4153 = vunpack.c.0.s8 %v4152
        %v4154 = vlaneseq
        %v4155 = vshrl.u32 %v4154, 7
        %v4156 = vsub.s32 %v4153, %v4155
        %v4157 = vrot.slane %v4129, %v4156
        %v4158 = vcombine.high %v4136, %v4136
        %v4159 = vcombine.high %v4143, %v4143
        %v4160 = vcombine.high %v4150, %v4150
        %v4161 = vcombine.high %v4157, %v4157
        %v4162 = vcombine.high %v4088, %v4088
        %v4164 = vunpack.c.l.s4 1966171168
        %v4165 = vunpack.c.0.s8 %v4164
        %v4166 = vlaneseq
        %v4167 = vshrl.u32 %v4166, 7
        %v4168 = vsub.s32 %v4165, %v4167
        %v4169 = vrot.slane %v4088, %v4168
        %v4171 = vunpack.c.l.s4 1966171168
        %v4172 = vunpack.c.0.s8 %v4171
        %v4173 = vlaneseq
        %v4174 = vshrl.u32 %v4173, 7
        %v4175 = vsub.s32 %v4172, %v4174
        %v4176 = vrot.slane %v4162, %v4175
        %v4177 = vcombine.high %v4169, %v4169
        %v4178 = vcombine.high %v4176, %v4176
        %v4180 = vunpack.c.l.s4 1966171168
        %v4181 = vunpack.c.0.s8 %v4180
        %v4182 = vlaneseq
        %v4183 = vshrl.u32 %v4182, 7
        %v4184 = vsub.s32 %v4181, %v4183
        %v4185 = vrot.slane %v4169, %v4184
        %v4187 = vunpack.c.l.s4 1966171168
        %v4188 = vunpack.c.0.s8 %v4187
        %v4189 = vlaneseq
        %v4190 = vshrl.u32 %v4189, 7
        %v4191 = vsub.s32 %v4188, %v4190
        %v4192 = vrot.slane %v4176, %v4191
        %v4194 = vunpack.c.l.s4 1966171168
        %v4195 = vunpack.c.0.s8 %v4194
        %v4196 = vlaneseq
        %v4197 = vshrl.u32 %v4196, 7
        %v4198 = vsub.s32 %v4195, %v4197
        %v4199 = vrot.slane %v4177, %v4198
        %v4201 = vunpack.c.l.s4 1966171168
        %v4202 = vunpack.c.0.s8 %v4201
        %v4203 = vlaneseq
        %v4204 = vshrl.u32 %v4203, 7
        %v4205 = vsub.s32 %v4202, %v4204
        %v4206 = vrot.slane %v4178, %v4205
        %v4207 = vcombine.high %v4185, %v4185
        %v4208 = vcombine.high %v4192, %v4192
        %v4209 = vcombine.high %v4199, %v4199
        %v4210 = vcombine.high %v4206, %v4206
        %v4211 = vcombine.high %v4093, %v4093
        %v4213 = vunpack.c.l.s4 1966171168
        %v4214 = vunpack.c.0.s8 %v4213
        %v4215 = vlaneseq
        %v4216 = vshrl.u32 %v4215, 7
        %v4217 = vsub.s32 %v4214, %v4216
        %v4218 = vrot.slane %v4093, %v4217
        %v4220 = vunpack.c.l.s4 1966171168
        %v4221 = vunpack.c.0.s8 %v4220
        %v4222 = vlaneseq
        %v4223 = vshrl.u32 %v4222, 7
        %v4224 = vsub.s32 %v4221, %v4223
        %v4225 = vrot.slane %v4211, %v4224
        %v4226 = vcombine.high %v4218, %v4218
        %v4227 = vcombine.high %v4225, %v4225
        %v4229 = vunpack.c.l.s4 1966171168
        %v4230 = vunpack.c.0.s8 %v4229
        %v4231 = vlaneseq
        %v4232 = vshrl.u32 %v4231, 7
        %v4233 = vsub.s32 %v4230, %v4232
        %v4234 = vrot.slane %v4218, %v4233
        %v4236 = vunpack.c.l.s4 1966171168
        %v4237 = vunpack.c.0.s8 %v4236
        %v4238 = vlaneseq
        %v4239 = vshrl.u32 %v4238, 7
        %v4240 = vsub.s32 %v4237, %v4239
        %v4241 = vrot.slane %v4225, %v4240
        %v4243 = vunpack.c.l.s4 1966171168
        %v4244 = vunpack.c.0.s8 %v4243
        %v4245 = vlaneseq
        %v4246 = vshrl.u32 %v4245, 7
        %v4247 = vsub.s32 %v4244, %v4246
        %v4248 = vrot.slane %v4226, %v4247
        %v4250 = vunpack.c.l.s4 1966171168
        %v4251 = vunpack.c.0.s8 %v4250
        %v4252 = vlaneseq
        %v4253 = vshrl.u32 %v4252, 7
        %v4254 = vsub.s32 %v4251, %v4253
        %v4255 = vrot.slane %v4227, %v4254
        %v4256 = vcombine.high %v4234, %v4234
        %v4257 = vcombine.high %v4241, %v4241
        %v4258 = vcombine.high %v4248, %v4248
        %v4259 = vcombine.high %v4255, %v4255
        %v4260 = vcombine.high %v4096, %v4096
        %v4262 = vunpack.c.l.s4 1966171168
        %v4263 = vunpack.c.0.s8 %v4262
        %v4264 = vlaneseq
        %v4265 = vshrl.u32 %v4264, 7
        %v4266 = vsub.s32 %v4263, %v4265
        %v4267 = vrot.slane %v4096, %v4266
        %v4269 = vunpack.c.l.s4 1966171168
        %v4270 = vunpack.c.0.s8 %v4269
        %v4271 = vlaneseq
        %v4272 = vshrl.u32 %v4271, 7
        %v4273 = vsub.s32 %v4270, %v4272
        %v4274 = vrot.slane %v4260, %v4273
        %v4275 = vcombine.high %v4267, %v4267
        %v4276 = vcombine.high %v4274, %v4274
        %v4278 = vunpack.c.l.s4 1966171168
        %v4279 = vunpack.c.0.s8 %v4278
        %v4280 = vlaneseq
        %v4281 = vshrl.u32 %v4280, 7
        %v4282 = vsub.s32 %v4279, %v4281
        %v4283 = vrot.slane %v4267, %v4282
        %v4285 = vunpack.c.l.s4 1966171168
        %v4286 = vunpack.c.0.s8 %v4285
        %v4287 = vlaneseq
        %v4288 = vshrl.u32 %v4287, 7
        %v4289 = vsub.s32 %v4286, %v4288
        %v4290 = vrot.slane %v4274, %v4289
        %v4292 = vunpack.c.l.s4 1966171168
        %v4293 = vunpack.c.0.s8 %v4292
        %v4294 = vlaneseq
        %v4295 = vshrl.u32 %v4294, 7
        %v4296 = vsub.s32 %v4293, %v4295
        %v4297 = vrot.slane %v4275, %v4296
        %v4299 = vunpack.c.l.s4 1966171168
        %v4300 = vunpack.c.0.s8 %v4299
        %v4301 = vlaneseq
        %v4302 = vshrl.u32 %v4301, 7
        %v4303 = vsub.s32 %v4300, %v4302
        %v4304 = vrot.slane %v4276, %v4303
        %v4305 = vcombine.high %v4283, %v4283
        %v4306 = vcombine.high %v4290, %v4290
        %v4307 = vcombine.high %v4297, %v4297
        %v4308 = vcombine.high %v4304, %v4304
        %v4309 = vcombine.high %v4101, %v4101
        %v4311 = vunpack.c.l.s4 1966171168
        %v4312 = vunpack.c.0.s8 %v4311
        %v4313 = vlaneseq
        %v4314 = vshrl.u32 %v4313, 7
        %v4315 = vsub.s32 %v4312, %v4314
        %v4316 = vrot.slane %v4101, %v4315
        %v4318 = vunpack.c.l.s4 1966171168
        %v4319 = vunpack.c.0.s8 %v4318
        %v4320 = vlaneseq
        %v4321 = vshrl.u32 %v4320, 7
        %v4322 = vsub.s32 %v4319, %v4321
        %v4323 = vrot.slane %v4309, %v4322
        %v4324 = vcombine.high %v4316, %v4316
        %v4325 = vcombine.high %v4323, %v4323
        %v4327 = vunpack.c.l.s4 1966171168
        %v4328 = vunpack.c.0.s8 %v4327
        %v4329 = vlaneseq
        %v4330 = vshrl.u32 %v4329, 7
        %v4331 = vsub.s32 %v4328, %v4330
        %v4332 = vrot.slane %v4316, %v4331
        %v4334 = vunpack.c.l.s4 1966171168
        %v4335 = vunpack.c.0.s8 %v4334
        %v4336 = vlaneseq
        %v4337 = vshrl.u32 %v4336, 7
        %v4338 = vsub.s32 %v4335, %v4337
        %v4339 = vrot.slane %v4323, %v4338
        %v4341 = vunpack.c.l.s4 1966171168
        %v4342 = vunpack.c.0.s8 %v4341
        %v4343 = vlaneseq
        %v4344 = vshrl.u32 %v4343, 7
        %v4345 = vsub.s32 %v4342, %v4344
        %v4346 = vrot.slane %v4324, %v4345
        %v4348 = vunpack.c.l.s4 1966171168
        %v4349 = vunpack.c.0.s8 %v4348
        %v4350 = vlaneseq
        %v4351 = vshrl.u32 %v4350, 7
        %v4352 = vsub.s32 %v4349, %v4351
        %v4353 = vrot.slane %v4325, %v4352
        %v4354 = vcombine.high %v4332, %v4332
        %v4355 = vcombine.high %v4339, %v4339
        %v4356 = vcombine.high %v4346, %v4346
        %v4357 = vcombine.high %v4353, %v4353
        %v4359 = vunpack.c.l.s4 1966171168
        %v4360 = vunpack.c.0.s8 %v4359
        %v4361 = vlaneseq
        %v4362 = vshrl.u32 %v4361, 7
        %v4363 = vsub.s32 %v4360, %v4362
        %v4364 = vrot.slane %v4104, %v4363
        %v4365 = vcombine.high %v4364, %v4364
        %v4367 = vunpack.c.l.s4 1966171168
        %v4368 = vunpack.c.0.s8 %v4367
        %v4369 = vlaneseq
        %v4370 = vshrl.u32 %v4369, 7
        %v4371 = vsub.s32 %v4368, %v4370
        %v4372 = vrot.slane %v4364, %v4371
        %v4374 = vunpack.c.l.s4 1966171168
        %v4375 = vunpack.c.0.s8 %v4374
        %v4376 = vlaneseq
        %v4377 = vshrl.u32 %v4376, 7
        %v4378 = vsub.s32 %v4375, %v4377
        %v4379 = vrot.slane %v4365, %v4378
        %v4380 = vcombine.low %v4136, %v4150
        %v4381 = vcombine.low %v4158, %v4160
        %v4382 = vcombine.low %v4143, %v4157
        %v4383 = vcombine.low %v4159, %v4161
        %v4385 = vunpack.c.l.s4 1966171168
        %v4386 = vunpack.c.0.s8 %v4385
        %v4387 = vlaneseq
        %v4388 = vshrl.u32 %v4387, 7
        %v4389 = vsub.s32 %v4386, %v4388
        %v4390 = vrot.slane %v4380, %v4389
        %v4392 = vunpack.c.l.s4 1966171168
        %v4393 = vunpack.c.0.s8 %v4392
        %v4394 = vlaneseq
        %v4395 = vshrl.u32 %v4394, 7
        %v4396 = vsub.s32 %v4393, %v4395
        %v4397 = vrot.slane %v4381, %v4396
        %v4399 = vunpack.c.l.s4 1966171168
        %v4400 = vunpack.c.0.s8 %v4399
        %v4401 = vlaneseq
        %v4402 = vshrl.u32 %v4401, 7
        %v4403 = vsub.s32 %v4400, %v4402
        %v4404 = vrot.slane %v4382, %v4403
        %v4406 = vunpack.c.l.s4 1966171168
        %v4407 = vunpack.c.0.s8 %v4406
        %v4408 = vlaneseq
        %v4409 = vshrl.u32 %v4408, 7
        %v4410 = vsub.s32 %v4407, %v4409
        %v4411 = vrot.slane %v4383, %v4410
        %v4412 = vcombine.low %v4390, %v4397
        %v4413 = vcombine.low %v4404, %v4411
        %v4415 = vunpack.c.l.s4 1966171168
        %v4416 = vunpack.c.0.s8 %v4415
        %v4417 = vlaneseq
        %v4418 = vshrl.u32 %v4417, 7
        %v4419 = vsub.s32 %v4416, %v4418
        %v4420 = vrot.slane %v4412, %v4419
        %v4422 = vunpack.c.l.s4 1966171168
        %v4423 = vunpack.c.0.s8 %v4422
        %v4424 = vlaneseq
        %v4425 = vshrl.u32 %v4424, 7
        %v4426 = vsub.s32 %v4423, %v4425
        %v4427 = vrot.slane %v4413, %v4426
        %v4428 = vcombine.low %v4420, %v4427
        %v4429 = vcombine.low %v4185, %v4199
        %v4430 = vcombine.low %v4207, %v4209
        %v4431 = vcombine.low %v4192, %v4206
        %v4432 = vcombine.low %v4208, %v4210
        %v4434 = vunpack.c.l.s4 1966171168
        %v4435 = vunpack.c.0.s8 %v4434
        %v4436 = vlaneseq
        %v4437 = vshrl.u32 %v4436, 7
        %v4438 = vsub.s32 %v4435, %v4437
        %v4439 = vrot.slane %v4429, %v4438
        %v4441 = vunpack.c.l.s4 1966171168
        %v4442 = vunpack.c.0.s8 %v4441
        %v4443 = vlaneseq
        %v4444 = vshrl.u32 %v4443, 7
        %v4445 = vsub.s32 %v4442, %v4444
        %v4446 = vrot.slane %v4430, %v4445
        %v4448 = vunpack.c.l.s4 1966171168
        %v4449 = vunpack.c.0.s8 %v4448
        %v4450 = vlaneseq
        %v4451 = vshrl.u32 %v4450, 7
        %v4452 = vsub.s32 %v4449, %v4451
        %v4453 = vrot.slane %v4431, %v4452
        %v4455 = vunpack.c.l.s4 1966171168
        %v4456 = vunpack.c.0.s8 %v4455
        %v4457 = vlaneseq
        %v4458 = vshrl.u32 %v4457, 7
        %v4459 = vsub.s32 %v4456, %v4458
        %v4460 = vrot.slane %v4432, %v4459
        %v4461 = vcombine.low %v4439, %v4446
        %v4462 = vcombine.low %v4453, %v4460
        %v4464 = vunpack.c.l.s4 1966171168
        %v4465 = vunpack.c.0.s8 %v4464
        %v4466 = vlaneseq
        %v4467 = vshrl.u32 %v4466, 7
        %v4468 = vsub.s32 %v4465, %v4467
        %v4469 = vrot.slane %v4461, %v4468
        %v4471 = vunpack.c.l.s4 1966171168
        %v4472 = vunpack.c.0.s8 %v4471
        %v4473 = vlaneseq
        %v4474 = vshrl.u32 %v4473, 7
        %v4475 = vsub.s32 %v4472, %v4474
        %v4476 = vrot.slane %v4462, %v4475
        %v4477 = vcombine.low %v4469, %v4476
        %v4478 = vcombine.low %v4234, %v4248
        %v4479 = vcombine.low %v4256, %v4258
        %v4481 = vunpack.c.l.s4 1966171168
        %v4482 = vunpack.c.0.s8 %v4481
        %v4483 = vlaneseq
        %v4484 = vshrl.u32 %v4483, 7
        %v4485 = vsub.s32 %v4482, %v4484
        %v4486 = vrot.slane %v4478, %v4485
        %v4488 = vunpack.c.l.s4 1966171168
        %v4489 = vunpack.c.0.s8 %v4488
        %v4490 = vlaneseq
        %v4491 = vshrl.u32 %v4490, 7
        %v4492 = vsub.s32 %v4489, %v4491
        %v4493 = vrot.slane %v4479, %v4492
        %v4495 = vunpack.c.l.s4 1966171168
        %v4496 = vunpack.c.0.s8 %v4495
        %v4497 = vlaneseq
        %v4498 = vshrl.u32 %v4497, 7
        %v4499 = vsub.s32 %v4496, %v4498
        %v4500 = vrot.slane %v4241, %v4499
        %v4501 = vcombine.low %v4486, %v4493
        %v4503 = vunpack.c.l.s4 1966171168
        %v4504 = vunpack.c.0.s8 %v4503
        %v4505 = vlaneseq
        %v4506 = vshrl.u32 %v4505, 7
        %v4507 = vsub.s32 %v4504, %v4506
        %v4508 = vrot.slane %v4501, %v4507
        %v4510 = vunpack.c.l.s4 1966171168
        %v4511 = vunpack.c.0.s8 %v4510
        %v4512 = vlaneseq
        %v4513 = vshrl.u32 %v4512, 7
        %v4514 = vsub.s32 %v4511, %v4513
        %v4515 = vrot.slane %v4500, %v4514
        %v4516 = vcombine.low %v4508, %v4515
        %v4517 = vcombine.low %v4255, %v4257
        %v4518 = vcombine.low %v4259, %v4283
        %v4519 = vcombine.low %v4297, %v4305
        %v4520 = vcombine.low %v4307, %v4290
        %v4522 = vunpack.c.l.s4 1966171168
        %v4523 = vunpack.c.0.s8 %v4522
        %v4524 = vlaneseq
        %v4525 = vshrl.u32 %v4524, 7
        %v4526 = vsub.s32 %v4523, %v4525
        %v4527 = vrot.slane %v4517, %v4526
        %v4529 = vunpack.c.l.s4 1966171168
        %v4530 = vunpack.c.0.s8 %v4529
        %v4531 = vlaneseq
        %v4532 = vshrl.u32 %v4531, 7
        %v4533 = vsub.s32 %v4530, %v4532
        %v4534 = vrot.slane %v4518, %v4533
        %v4536 = vunpack.c.l.s4 1966171168
        %v4537 = vunpack.c.0.s8 %v4536
        %v4538 = vlaneseq
        %v4539 = vshrl.u32 %v4538, 7
        %v4540 = vsub.s32 %v4537, %v4539
        %v4541 = vrot.slane %v4519, %v4540
        %v4543 = vunpack.c.l.s4 1966171168
        %v4544 = vunpack.c.0.s8 %v4543
        %v4545 = vlaneseq
        %v4546 = vshrl.u32 %v4545, 7
        %v4547 = vsub.s32 %v4544, %v4546
        %v4548 = vrot.slane %v4520, %v4547
        %v4549 = vcombine.low %v4527, %v4534
        %v4550 = vcombine.low %v4541, %v4548
        %v4552 = vunpack.c.l.s4 1966171168
        %v4553 = vunpack.c.0.s8 %v4552
        %v4554 = vlaneseq
        %v4555 = vshrl.u32 %v4554, 7
        %v4556 = vsub.s32 %v4553, %v4555
        %v4557 = vrot.slane %v4549, %v4556
        %v4559 = vunpack.c.l.s4 1966171168
        %v4560 = vunpack.c.0.s8 %v4559
        %v4561 = vlaneseq
        %v4562 = vshrl.u32 %v4561, 7
        %v4563 = vsub.s32 %v4560, %v4562
        %v4564 = vrot.slane %v4550, %v4563
        %v4565 = vcombine.low %v4557, %v4564
        %v4566 = vcombine.low %v4304, %v4306
        %v4567 = vcombine.low %v4308, %v4332
        %v4568 = vcombine.low %v4346, %v4354
        %v4569 = vcombine.low %v4356, %v4339
        %v4571 = vunpack.c.l.s4 1966171168
        %v4572 = vunpack.c.0.s8 %v4571
        %v4573 = vlaneseq
        %v4574 = vshrl.u32 %v4573, 7
        %v4575 = vsub.s32 %v4572, %v4574
        %v4576 = vrot.slane %v4566, %v4575
        %v4578 = vunpack.c.l.s4 1966171168
        %v4579 = vunpack.c.0.s8 %v4578
        %v4580 = vlaneseq
        %v4581 = vshrl.u32 %v4580, 7
        %v4582 = vsub.s32 %v4579, %v4581
        %v4583 = vrot.slane %v4567, %v4582
        %v4585 = vunpack.c.l.s4 1966171168
        %v4586 = vunpack.c.0.s8 %v4585
        %v4587 = vlaneseq
        %v4588 = vshrl.u32 %v4587, 7
        %v4589 = vsub.s32 %v4586, %v4588
        %v4590 = vrot.slane %v4568, %v4589
        %v4592 = vunpack.c.l.s4 1966171168
        %v4593 = vunpack.c.0.s8 %v4592
        %v4594 = vlaneseq
        %v4595 = vshrl.u32 %v4594, 7
        %v4596 = vsub.s32 %v4593, %v4595
        %v4597 = vrot.slane %v4569, %v4596
        %v4598 = vcombine.low %v4576, %v4583
        %v4599 = vcombine.low %v4590, %v4597
        %v4601 = vunpack.c.l.s4 1966171168
        %v4602 = vunpack.c.0.s8 %v4601
        %v4603 = vlaneseq
        %v4604 = vshrl.u32 %v4603, 7
        %v4605 = vsub.s32 %v4602, %v4604
        %v4606 = vrot.slane %v4598, %v4605
        %v4608 = vunpack.c.l.s4 1966171168
        %v4609 = vunpack.c.0.s8 %v4608
        %v4610 = vlaneseq
        %v4611 = vshrl.u32 %v4610, 7
        %v4612 = vsub.s32 %v4609, %v4611
        %v4613 = vrot.slane %v4599, %v4612
        %v4614 = vcombine.low %v4606, %v4613
        %v4615 = vcombine.low %v4353, %v4355
        %v4616 = vcombine.low %v4357, %v4372
        %v4618 = vunpack.c.l.s4 1966171168
        %v4619 = vunpack.c.0.s8 %v4618
        %v4620 = vlaneseq
        %v4621 = vshrl.u32 %v4620, 7
        %v4622 = vsub.s32 %v4619, %v4621
        %v4623 = vrot.slane %v4615, %v4622
        %v4625 = vunpack.c.l.s4 1966171168
        %v4626 = vunpack.c.0.s8 %v4625
        %v4627 = vlaneseq
        %v4628 = vshrl.u32 %v4627, 7
        %v4629 = vsub.s32 %v4626, %v4628
        %v4630 = vrot.slane %v4616, %v4629
        %v4632 = vunpack.c.l.s4 1966171168
        %v4633 = vunpack.c.0.s8 %v4632
        %v4634 = vlaneseq
        %v4635 = vshrl.u32 %v4634, 7
        %v4636 = vsub.s32 %v4633, %v4635
        %v4637 = vrot.slane %v4379, %v4636
        %v4638 = vcombine.low %v4623, %v4630
        %v4640 = vunpack.c.l.s4 1966171168
        %v4641 = vunpack.c.0.s8 %v4640
        %v4642 = vlaneseq
        %v4643 = vshrl.u32 %v4642, 7
        %v4644 = vsub.s32 %v4641, %v4643
        %v4645 = vrot.slane %v4638, %v4644
        %v4647 = vunpack.c.l.s4 1966171168
        %v4648 = vunpack.c.0.s8 %v4647
        %v4649 = vlaneseq
        %v4650 = vshrl.u32 %v4649, 7
        %v4651 = vsub.s32 %v4648, %v4650
        %v4652 = vrot.slane %v4637, %v4651
        %v4653 = vcombine.low %v4645, %v4652
        %v4660 = vadd.f32 %v2830, %v4428
        %v4661 = vadd.f32 %v2831, %v4477
        %v4662 = vadd.f32 %v2832, %v4516
        %v4663 = vadd.f32 %v2833, %v4565
        %v4664 = vadd.f32 %v2834, %v4614
        %v4665 = vadd.f32 %v2835, %v4653
        %4666 = vst [vmem:[#allocation3] sm:$0xff] %v4660
        %4667 = vst [vmem:[#allocation3 + $0x8] sm:$0xff] %v4661
        %4668 = vst [vmem:[#allocation3 + $0x10] sm:$0x1f] %v4662
        %4669 = vst [vmem:[#allocation3 + $0x18] sm:$0xff] %v4663
        %4670 = vst [vmem:[#allocation3 + $0x20] sm:$0xff] %v4664
        %4671 = vst [vmem:[#allocation3 + $0x28] sm:$0x1f] %v4665
        %p4672 = scmp.eq.s32.totalorder %s26, 1
        // Predicated region
        $region133: #{two_stream_forward.1} parent=119 // pred_check
          %p4673 = pneg %p4672
        $region134: #{two_stream_forward.1} parent=119 // pred_check_branch
          %4675 = sbr.rel (%p4673) target = $region136
        $region135: #{two_stream_forward.1} parent=119 // pred_region
          %v4676 = vld [vmem:[#allocation2] sm:$0xff]
          %v4677 = vld [vmem:[#allocation2 + $0x8] sm:$0xff]
          %v4678 = vld [vmem:[#allocation2 + $0x10] sm:$0xff]
          %v4679 = vld [vmem:[#allocation2 + $0x18] sm:$0xff]
          %v4680 = vld [vmem:[#allocation2 + $0x20] sm:$0x1f]
          %v4681 = vld [vmem:[#allocation2 + $0x28] sm:$0x1f]
          %v4682 = vld [vmem:[#allocation2 + $0x30] sm:$0xff]
          %v4683 = vld [vmem:[#allocation2 + $0x38] sm:$0xff]
          %v4684 = vld [vmem:[#allocation2 + $0x40] sm:$0xff]
          %v4685 = vld [vmem:[#allocation2 + $0x48] sm:$0xff]
          %v4686 = vld [vmem:[#allocation2 + $0x50] sm:$0x1f]
          %v4687 = vld [vmem:[#allocation2 + $0x58] sm:$0x1f]
          %v4688 = vld [vmem:[%s4] sm:$0x3]
          %v4690 = vlaneseq
          %v4691 = vshrl.u32 %v4690, 7
          %v4692 = vsub.s32 0, %v4691
          %v4693 = vrot.slane %v4688, %v4692
          %v4695 = vadd.f32 %v4676, %v4693
          %v4696 = vadd.f32 %v4678, %v4693
          %v4697 = vadd.f32 %v4680, %v4693
          %v4698 = vadd.f32 %v4682, %v4693
          %v4699 = vadd.f32 %v4684, %v4693
          %v4700 = vadd.f32 %v4686, %v4693
          %v4701 = vld [vmem:[#allocation3] sm:$0xff]
          %v4702 = vld [vmem:[#allocation3 + $0x8] sm:$0xff]
          %v4703 = vld [vmem:[#allocation3 + $0x10] sm:$0x1f]
          %v4704 = vld [vmem:[#allocation3 + $0x18] sm:$0xff]
          %v4705 = vld [vmem:[#allocation3 + $0x20] sm:$0xff]
          %v4706 = vld [vmem:[#allocation3 + $0x28] sm:$0x1f]
          %v4707 = vadd.f32 %v4677, %v4701
          %v4708 = vadd.f32 %v4679, %v4702
          %v4709 = vadd.f32 %v4681, %v4703
          %v4710 = vadd.f32 %v4683, %v4704
          %v4711 = vadd.f32 %v4685, %v4705
          %v4712 = vadd.f32 %v4687, %v4706
          %v4713 = vrot.slane %v4688, 1
          %v4714 = vlaneseq
          %v4715 = vshrl.u32 %v4714, 7
          %v4716 = vsub.s32 0, %v4715
          %v4717 = vrot.slane %v4713, %v4716
          %v4719 = vadd.f32 %v4707, %v4717
          %v4720 = vadd.f32 %v4708, %v4717
          %v4721 = vadd.f32 %v4709, %v4717
          %v4722 = vadd.f32 %v4710, %v4717
          %v4723 = vadd.f32 %v4711, %v4717
          %v4724 = vadd.f32 %v4712, %v4717
          %v4725 = vld [vmem:[%s5] sm:$0xff]
          %v4726 = vld [vmem:[%s5 + $0x8] sm:$0xff]
          %v4727 = vld [vmem:[%s5 + $0x10] sm:$0x1f]
          %v4728 = vadd.f32 %v4719, %v4725
          %v4729 = vadd.f32 %v4720, %v4726
          %v4730 = vadd.f32 %v4721, %v4727
          %v4731 = vadd.f32 %v4722, %v4725
          %v4732 = vadd.f32 %v4723, %v4726
          %v4733 = vadd.f32 %v4724, %v4727
          %v4734 = vmax.f32 %v4695, 0.0
          %v4735 = vmax.f32 %v4696, 0.0
          %v4736 = vmax.f32 %v4697, 0.0
          %v4737 = vmax.f32 %v4698, 0.0
          %v4738 = vmax.f32 %v4699, 0.0
          %v4739 = vmax.f32 %v4700, 0.0
          %vm4740 = vcmask 1044480
          %v4741 = vsel %vm4740, %v4736, -inf
          %v4742 = vmax.f32 %v4734, %v4741
          %v4743 = vmax.f32 %v4742, %v4735
          %v4744 = vrot.slane %v4743, 4
          %v4745 = vmax.f32 %v4743, %v4744
          %v4746 = vrot.slane %v4745, 2
          %v4747 = vmax.f32 %v4745, %v4746
          %v4748 = vrot.slane %v4747, 1
          %v4749 = vmax.f32 %v4747, %v4748
          %v4750 = vsel %vm4740, %v4739, -inf
          %v4751 = vmax.f32 %v4737, %v4750
          %v4752 = vmax.f32 %v4751, %v4738
          %v4753 = vrot.slane %v4752, 4
          %v4754 = vmax.f32 %v4752, %v4753
          %v4755 = vrot.slane %v4754, 2
          %v4756 = vmax.f32 %v4754, %v4755
          %v4757 = vrot.slane %v4756, 1
          %v4758 = vmax.f32 %v4756, %v4757
          %v4759 = vmax.f32 %v4728, 0.0
          %v4760 = vmax.f32 %v4729, 0.0
          %v4761 = vmax.f32 %v4730, 0.0
          %v4762 = vmax.f32 %v4731, 0.0
          %v4763 = vmax.f32 %v4732, 0.0
          %v4764 = vmax.f32 %v4733, 0.0
          %v4765 = vsel %vm4740, %v4761, -inf
          %v4766 = vmax.f32 %v4759, %v4765
          %v4767 = vmax.f32 %v4766, %v4760
          %v4768 = vrot.slane %v4767, 4
          %v4769 = vmax.f32 %v4767, %v4768
          %v4770 = vrot.slane %v4769, 2
          %v4771 = vmax.f32 %v4769, %v4770
          %v4772 = vrot.slane %v4771, 1
          %v4773 = vmax.f32 %v4771, %v4772
          %v4774 = vsel %vm4740, %v4764, -inf
          %v4775 = vmax.f32 %v4762, %v4774
          %v4776 = vmax.f32 %v4775, %v4763
          %v4777 = vrot.slane %v4776, 4
          %v4778 = vmax.f32 %v4776, %v4777
          %v4779 = vrot.slane %v4778, 2
          %v4780 = vmax.f32 %v4778, %v4779
          %v4781 = vrot.slane %v4780, 1
          %v4782 = vmax.f32 %v4780, %v4781
          %v4783 = vld [vmem:[%s6] sm:$0xff]
          %v4784 = vld [vmem:[%s6 + $0x8] sm:$0xf]
          %v4785 = vld [vmem:[%s6 + $0xc] sm:$0xff]
          %v4786 = vld [vmem:[%s6 + $0x14] sm:$0xf]
          %v4787 = vld [vmem:[%s6 + $0x18] sm:$0xff]
          %v4788 = vld [vmem:[%s6 + $0x20] sm:$0xf]
          %v4789 = vld [vmem:[%s6 + $0x24] sm:$0x77]
          %v4790 = vld [vmem:[%s6 + $0x2c] sm:$0x7]
          %v4791 = vld [vmem:[%s6 + $0x30] sm:$0xff]
          %v4792 = vld [vmem:[%s6 + $0x38] sm:$0xf]
          %v4793 = vld [vmem:[%s6 + $0x3c] sm:$0xff]
          %v4794 = vld [vmem:[%s6 + $0x44] sm:$0xf]
          %v4795 = vld [vmem:[%s6 + $0x48] sm:$0xff]
          %v4796 = vld [vmem:[%s6 + $0x50] sm:$0xf]
          %v4797 = vld [vmem:[%s6 + $0x54] sm:$0x77]
          %v4798 = vld [vmem:[%s6 + $0x5c] sm:$0x7]
          %v4799 = vld [vmem:[%s7] sm:$0xf]
          %v4800 = vld [vmem:[%s7 + $0x4] sm:$0xf]
          %v4801 = vld [vmem:[%s7 + $0x8] sm:$0xf]
          %v4802 = vld [vmem:[%s7 + $0xc] sm:$0xf]
          %v4803 = vld [vmem:[%s7 + $0x10] sm:$0xf]
          %v4804 = vld [vmem:[%s7 + $0x14] sm:$0xf]
          %v4805 = vld [vmem:[%s7 + $0x18] sm:$0xf]
          %v4806 = vld [vmem:[%s7 + $0x1c] sm:$0xf]
          %v4807 = vld [vmem:[%s7 + $0x20] sm:$0xf]
          %v4808 = vld [vmem:[%s7 + $0x24] sm:$0xf]
          %v4809 = vld [vmem:[%s7 + $0x28] sm:$0xf]
          %v4810 = vld [vmem:[%s7 + $0x2c] sm:$0xf]
          %v4811 = vld [vmem:[%s7 + $0x30] sm:$0xf]
          %v4812 = vld [vmem:[%s7 + $0x34] sm:$0xf]
          %v4813 = vld [vmem:[%s7 + $0x38] sm:$0xf]
          %v4814 = vld [vmem:[%s7 + $0x3c] sm:$0xf]
          %v4815 = vld [vmem:[%s7 + $0x40] sm:$0xf]
          %v4816 = vld [vmem:[%s7 + $0x44] sm:$0xf]
          %v4817 = vld [vmem:[%s7 + $0x48] sm:$0xf]
          %v4818 = vld [vmem:[%s7 + $0x4c] sm:$0xf]
          %v4819 = vld [vmem:[%s7 + $0x50] sm:$0xf]
          %v4820 = vld [vmem:[%s7 + $0x54] sm:$0xf]
          %v4821 = vld [vmem:[%s7 + $0x58] sm:$0xf]
          %v4822 = vld [vmem:[%s7 + $0x5c] sm:$0xf]
          %v4823 = vld [vmem:[%s7 + $0x60] sm:$0xf]
          %v4824 = vld [vmem:[%s7 + $0x64] sm:$0xf]
          %v4825 = vld [vmem:[%s7 + $0x68] sm:$0xf]
          %v4826 = vld [vmem:[%s7 + $0x6c] sm:$0xf]
          %v4827 = vld [vmem:[%s7 + $0x70] sm:$0xf]
          %v4828 = vld [vmem:[%s7 + $0x74] sm:$0xf]
          %v4829 = vld [vmem:[%s7 + $0x78] sm:$0xf]
          %v4830 = vld [vmem:[%s7 + $0x7c] sm:$0xf]
          %v4831 = vld [vmem:[%s7 + $0x80] sm:$0xf]
          %v4832 = vld [vmem:[%s7 + $0x84] sm:$0xf]
          %v4833 = vld [vmem:[%s7 + $0x88] sm:$0xf]
          %v4834 = vld [vmem:[%s7 + $0x8c] sm:$0xf]
          %v4835 = vld [vmem:[%s7 + $0x90] sm:$0xf]
          %v4836 = vld [vmem:[%s7 + $0x94] sm:$0xf]
          %v4837 = vld [vmem:[%s7 + $0x98] sm:$0xf]
          %v4838 = vld [vmem:[%s7 + $0x9c] sm:$0xf]
          %v4839 = vld [vmem:[%s8] sm:$0x1]
          %v4841 = vlaneseq
          %v4842 = vshrl.u32 %v4841, 7
          %v4843 = vsub.s32 0, %v4842
          %v4844 = vrot.slane %v4839, %v4843
          %v4862 = vunpack.c.l.s4 1966171168
          %v4863 = vunpack.c.0.s8 %v4862
          %v4864 = vlaneseq
          %v4865 = vshrl.u32 %v4864, 7
          %v4866 = vsub.s32 %v4863, %v4865
          %v4867 = vrot.slane %v4783, %v4866
          %v4869 = vunpack.c.l.s4 1966171168
          %v4870 = vunpack.c.0.s8 %v4869
          %v4871 = vlaneseq
          %v4872 = vshrl.u32 %v4871, 7
          %v4873 = vsub.s32 %v4870, %v4872
          %v4874 = vrot.slane %v4784, %v4873
          %v4875 = vcombine.low %v4867, %v4874
          %v4876 = vcombine.high %v4867, %v4874
          %v4878 = vunpack.c.l.s4 1966171168
          %v4879 = vunpack.c.0.s8 %v4878
          %v4880 = vlaneseq
          %v4881 = vshrl.u32 %v4880, 7
          %v4882 = vsub.s32 %v4879, %v4881
          %v4883 = vrot.slane %v4875, %v4882
          %v4885 = vunpack.c.l.s4 1966171168
          %v4886 = vunpack.c.0.s8 %v4885
          %v4887 = vlaneseq
          %v4888 = vshrl.u32 %v4887, 7
          %v4889 = vsub.s32 %v4886, %v4888
          %v4890 = vrot.slane %v4876, %v4889
          %v4891 = vcombine.high %v4883, %v4883
          %v4892 = vcombine.high %v4890, %v4890
          %v4894 = vunpack.c.l.s4 1966171168
          %v4895 = vunpack.c.0.s8 %v4894
          %v4896 = vlaneseq
          %v4897 = vshrl.u32 %v4896, 7
          %v4898 = vsub.s32 %v4895, %v4897
          %v4899 = vrot.slane %v4785, %v4898
          %v4901 = vunpack.c.l.s4 1966171168
          %v4902 = vunpack.c.0.s8 %v4901
          %v4903 = vlaneseq
          %v4904 = vshrl.u32 %v4903, 7
          %v4905 = vsub.s32 %v4902, %v4904
          %v4906 = vrot.slane %v4786, %v4905
          %v4907 = vcombine.low %v4899, %v4906
          %v4908 = vcombine.high %v4899, %v4906
          %v4910 = vunpack.c.l.s4 1966171168
          %v4911 = vunpack.c.0.s8 %v4910
          %v4912 = vlaneseq
          %v4913 = vshrl.u32 %v4912, 7
          %v4914 = vsub.s32 %v4911, %v4913
          %v4915 = vrot.slane %v4907, %v4914
          %v4917 = vunpack.c.l.s4 1966171168
          %v4918 = vunpack.c.0.s8 %v4917
          %v4919 = vlaneseq
          %v4920 = vshrl.u32 %v4919, 7
          %v4921 = vsub.s32 %v4918, %v4920
          %v4922 = vrot.slane %v4908, %v4921
          %v4923 = vcombine.high %v4915, %v4915
          %v4924 = vcombine.high %v4922, %v4922
          %v4926 = vunpack.c.l.s4 1966171168
          %v4927 = vunpack.c.0.s8 %v4926
          %v4928 = vlaneseq
          %v4929 = vshrl.u32 %v4928, 7
          %v4930 = vsub.s32 %v4927, %v4929
          %v4931 = vrot.slane %v4787, %v4930
          %v4933 = vunpack.c.l.s4 1966171168
          %v4934 = vunpack.c.0.s8 %v4933
          %v4935 = vlaneseq
          %v4936 = vshrl.u32 %v4935, 7
          %v4937 = vsub.s32 %v4934, %v4936
          %v4938 = vrot.slane %v4788, %v4937
          %v4939 = vcombine.low %v4931, %v4938
          %v4940 = vcombine.high %v4931, %v4938
          %v4942 = vunpack.c.l.s4 1966171168
          %v4943 = vunpack.c.0.s8 %v4942
          %v4944 = vlaneseq
          %v4945 = vshrl.u32 %v4944, 7
          %v4946 = vsub.s32 %v4943, %v4945
          %v4947 = vrot.slane %v4939, %v4946
          %v4949 = vunpack.c.l.s4 1966171168
          %v4950 = vunpack.c.0.s8 %v4949
          %v4951 = vlaneseq
          %v4952 = vshrl.u32 %v4951, 7
          %v4953 = vsub.s32 %v4950, %v4952
          %v4954 = vrot.slane %v4940, %v4953
          %v4955 = vcombine.high %v4947, %v4947
          %v4956 = vcombine.high %v4954, %v4954
          %v4958 = vunpack.c.l.s4 1966171168
          %v4959 = vunpack.c.0.s8 %v4958
          %v4960 = vlaneseq
          %v4961 = vshrl.u32 %v4960, 7
          %v4962 = vsub.s32 %v4959, %v4961
          %v4963 = vrot.slane %v4789, %v4962
          %v4965 = vunpack.c.l.s4 1966171168
          %v4966 = vunpack.c.0.s8 %v4965
          %v4967 = vlaneseq
          %v4968 = vshrl.u32 %v4967, 7
          %v4969 = vsub.s32 %v4966, %v4968
          %v4970 = vrot.slane %v4790, %v4969
          %v4971 = vcombine.low %v4963, %v4970
          %v4972 = vcombine.high %v4963, %v4970
          %v4974 = vunpack.c.l.s4 1966171168
          %v4975 = vunpack.c.0.s8 %v4974
          %v4976 = vlaneseq
          %v4977 = vshrl.u32 %v4976, 7
          %v4978 = vsub.s32 %v4975, %v4977
          %v4979 = vrot.slane %v4971, %v4978
          %v4981 = vunpack.c.l.s4 1966171168
          %v4982 = vunpack.c.0.s8 %v4981
          %v4983 = vlaneseq
          %v4984 = vshrl.u32 %v4983, 7
          %v4985 = vsub.s32 %v4982, %v4984
          %v4986 = vrot.slane %v4972, %v4985
          %v4987 = vcombine.high %v4979, %v4979
          %v4989 = vunpack.c.l.s4 1966171168
          %v4990 = vunpack.c.0.s8 %v4989
          %v4991 = vlaneseq
          %v4992 = vshrl.u32 %v4991, 7
          %v4993 = vsub.s32 %v4990, %v4992
          %v4994 = vrot.slane %v4791, %v4993
          %v4996 = vunpack.c.l.s4 1966171168
          %v4997 = vunpack.c.0.s8 %v4996
          %v4998 = vlaneseq
          %v4999 = vshrl.u32 %v4998, 7
          %v5000 = vsub.s32 %v4997, %v4999
          %v5001 = vrot.slane %v4792, %v5000
          %v5002 = vcombine.low %v4994, %v5001
          %v5003 = vcombine.high %v4994, %v5001
          %v5005 = vunpack.c.l.s4 1966171168
          %v5006 = vunpack.c.0.s8 %v5005
          %v5007 = vlaneseq
          %v5008 = vshrl.u32 %v5007, 7
          %v5009 = vsub.s32 %v5006, %v5008
          %v5010 = vrot.slane %v5002, %v5009
          %v5012 = vunpack.c.l.s4 1966171168
          %v5013 = vunpack.c.0.s8 %v5012
          %v5014 = vlaneseq
          %v5015 = vshrl.u32 %v5014, 7
          %v5016 = vsub.s32 %v5013, %v5015
          %v5017 = vrot.slane %v5003, %v5016
          %v5018 = vcombine.high %v5010, %v5010
          %v5019 = vcombine.high %v5017, %v5017
          %v5021 = vunpack.c.l.s4 1966171168
          %v5022 = vunpack.c.0.s8 %v5021
          %v5023 = vlaneseq
          %v5024 = vshrl.u32 %v5023, 7
          %v5025 = vsub.s32 %v5022, %v5024
          %v5026 = vrot.slane %v4793, %v5025
          %v5028 = vunpack.c.l.s4 1966171168
          %v5029 = vunpack.c.0.s8 %v5028
          %v5030 = vlaneseq
          %v5031 = vshrl.u32 %v5030, 7
          %v5032 = vsub.s32 %v5029, %v5031
          %v5033 = vrot.slane %v4794, %v5032
          %v5034 = vcombine.low %v5026, %v5033
          %v5035 = vcombine.high %v5026, %v5033
          %v5037 = vunpack.c.l.s4 1966171168
          %v5038 = vunpack.c.0.s8 %v5037
          %v5039 = vlaneseq
          %v5040 = vshrl.u32 %v5039, 7
          %v5041 = vsub.s32 %v5038, %v5040
          %v5042 = vrot.slane %v5034, %v5041
          %v5044 = vunpack.c.l.s4 1966171168
          %v5045 = vunpack.c.0.s8 %v5044
          %v5046 = vlaneseq
          %v5047 = vshrl.u32 %v5046, 7
          %v5048 = vsub.s32 %v5045, %v5047
          %v5049 = vrot.slane %v5035, %v5048
          %v5050 = vcombine.high %v5042, %v5042
          %v5051 = vcombine.high %v5049, %v5049
          %v5053 = vunpack.c.l.s4 1966171168
          %v5054 = vunpack.c.0.s8 %v5053
          %v5055 = vlaneseq
          %v5056 = vshrl.u32 %v5055, 7
          %v5057 = vsub.s32 %v5054, %v5056
          %v5058 = vrot.slane %v4795, %v5057
          %v5060 = vunpack.c.l.s4 1966171168
          %v5061 = vunpack.c.0.s8 %v5060
          %v5062 = vlaneseq
          %v5063 = vshrl.u32 %v5062, 7
          %v5064 = vsub.s32 %v5061, %v5063
          %v5065 = vrot.slane %v4796, %v5064
          %v5066 = vcombine.low %v5058, %v5065
          %v5067 = vcombine.high %v5058, %v5065
          %v5069 = vunpack.c.l.s4 1966171168
          %v5070 = vunpack.c.0.s8 %v5069
          %v5071 = vlaneseq
          %v5072 = vshrl.u32 %v5071, 7
          %v5073 = vsub.s32 %v5070, %v5072
          %v5074 = vrot.slane %v5066, %v5073
          %v5076 = vunpack.c.l.s4 1966171168
          %v5077 = vunpack.c.0.s8 %v5076
          %v5078 = vlaneseq
          %v5079 = vshrl.u32 %v5078, 7
          %v5080 = vsub.s32 %v5077, %v5079
          %v5081 = vrot.slane %v5067, %v5080
          %v5082 = vcombine.high %v5074, %v5074
          %v5083 = vcombine.high %v5081, %v5081
          %v5085 = vunpack.c.l.s4 1966171168
          %v5086 = vunpack.c.0.s8 %v5085
          %v5087 = vlaneseq
          %v5088 = vshrl.u32 %v5087, 7
          %v5089 = vsub.s32 %v5086, %v5088
          %v5090 = vrot.slane %v4797, %v5089
          %v5092 = vunpack.c.l.s4 1966171168
          %v5093 = vunpack.c.0.s8 %v5092
          %v5094 = vlaneseq
          %v5095 = vshrl.u32 %v5094, 7
          %v5096 = vsub.s32 %v5093, %v5095
          %v5097 = vrot.slane %v4798, %v5096
          %v5098 = vcombine.low %v5090, %v5097
          %v5099 = vcombine.high %v5090, %v5097
          %v5101 = vunpack.c.l.s4 1966171168
          %v5102 = vunpack.c.0.s8 %v5101
          %v5103 = vlaneseq
          %v5104 = vshrl.u32 %v5103, 7
          %v5105 = vsub.s32 %v5102, %v5104
          %v5106 = vrot.slane %v5098, %v5105
          %v5108 = vunpack.c.l.s4 1966171168
          %v5109 = vunpack.c.0.s8 %v5108
          %v5110 = vlaneseq
          %v5111 = vshrl.u32 %v5110, 7
          %v5112 = vsub.s32 %v5109, %v5111
          %v5113 = vrot.slane %v5099, %v5112
          %v5114 = vcombine.high %v5106, %v5106
          %v5115 = vunpack.i.l.s16 %v4883
          %v5116 = vunpack.i.h.s16 %v4883
          %v5117 = vunpack.i.l.s16 %v4890
          %v5118 = vunpack.i.h.s16 %v4890
          %v5119 = vunpack.i.l.s16 %v4891
          %v5120 = vunpack.i.h.s16 %v4891
          %v5121 = vunpack.i.l.s16 %v4892
          %v5122 = vunpack.i.h.s16 %v4892
          %v5123 = vunpack.i.l.s16 %v4915
          %v5124 = vunpack.i.h.s16 %v4915
          %v5125 = vunpack.i.l.s16 %v4922
          %v5126 = vunpack.i.h.s16 %v4922
          %v5127 = vunpack.i.l.s16 %v4923
          %v5128 = vunpack.i.h.s16 %v4923
          %v5129 = vunpack.i.l.s16 %v4924
          %v5130 = vunpack.i.h.s16 %v4924
          %v5131 = vunpack.i.l.s16 %v4947
          %v5132 = vunpack.i.h.s16 %v4947
          %v5133 = vunpack.i.l.s16 %v4954
          %v5134 = vunpack.i.h.s16 %v4954
          %v5135 = vunpack.i.l.s16 %v4955
          %v5136 = vunpack.i.h.s16 %v4955
          %v5137 = vunpack.i.l.s16 %v4956
          %v5138 = vunpack.i.h.s16 %v4956
          %v5139 = vunpack.i.l.s16 %v4979
          %v5140 = vunpack.i.h.s16 %v4979
          %v5141 = vunpack.i.l.s16 %v4986
          %v5142 = vunpack.i.h.s16 %v4986
          %v5143 = vunpack.i.l.s16 %v4987
          %v5144 = vunpack.i.l.s16 %v5010
          %v5145 = vunpack.i.h.s16 %v5010
          %v5146 = vunpack.i.l.s16 %v5017
          %v5147 = vunpack.i.h.s16 %v5017
          %v5148 = vunpack.i.l.s16 %v5018
          %v5149 = vunpack.i.h.s16 %v5018
          %v5150 = vunpack.i.l.s16 %v5019
          %v5151 = vunpack.i.h.s16 %v5019
          %v5152 = vunpack.i.l.s16 %v5042
          %v5153 = vunpack.i.h.s16 %v5042
          %v5154 = vunpack.i.l.s16 %v5049
          %v5155 = vunpack.i.h.s16 %v5049
          %v5156 = vunpack.i.l.s16 %v5050
          %v5157 = vunpack.i.h.s16 %v5050
          %v5158 = vunpack.i.l.s16 %v5051
          %v5159 = vunpack.i.h.s16 %v5051
          %v5160 = vunpack.i.l.s16 %v5074
          %v5161 = vunpack.i.h.s16 %v5074
          %v5162 = vunpack.i.l.s16 %v5081
          %v5163 = vunpack.i.h.s16 %v5081
          %v5164 = vunpack.i.l.s16 %v5082
          %v5165 = vunpack.i.h.s16 %v5082
          %v5166 = vunpack.i.l.s16 %v5083
          %v5167 = vunpack.i.h.s16 %v5083
          %v5168 = vunpack.i.l.s16 %v5106
          %v5169 = vunpack.i.h.s16 %v5106
          %v5170 = vunpack.i.l.s16 %v5113
          %v5171 = vunpack.i.h.s16 %v5113
          %v5172 = vunpack.i.l.s16 %v5114
          %v5173 = vcombine.high %v4844, %v4844
          %v5175 = vunpack.c.l.s4 1966171168
          %v5176 = vunpack.c.0.s8 %v5175
          %v5177 = vlaneseq
          %v5178 = vshrl.u32 %v5177, 7
          %v5179 = vsub.s32 %v5176, %v5178
          %v5180 = vrot.slane %v4844, %v5179
          %v5182 = vunpack.c.l.s4 1966171168
          %v5183 = vunpack.c.0.s8 %v5182
          %v5184 = vlaneseq
          %v5185 = vshrl.u32 %v5184, 7
          %v5186 = vsub.s32 %v5183, %v5185
          %v5187 = vrot.slane %v5173, %v5186
          %v5188 = vcombine.high %v5180, %v5180
          %v5189 = vcombine.high %v5187, %v5187
          %v5191 = vunpack.c.l.s4 1966171168
          %v5192 = vunpack.c.0.s8 %v5191
          %v5193 = vlaneseq
          %v5194 = vshrl.u32 %v5193, 7
          %v5195 = vsub.s32 %v5192, %v5194
          %v5196 = vrot.slane %v5180, %v5195
          %v5198 = vunpack.c.l.s4 1966171168
          %v5199 = vunpack.c.0.s8 %v5198
          %v5200 = vlaneseq
          %v5201 = vshrl.u32 %v5200, 7
          %v5202 = vsub.s32 %v5199, %v5201
          %v5203 = vrot.slane %v5187, %v5202
          %v5205 = vunpack.c.l.s4 1966171168
          %v5206 = vunpack.c.0.s8 %v5205
          %v5207 = vlaneseq
          %v5208 = vshrl.u32 %v5207, 7
          %v5209 = vsub.s32 %v5206, %v5208
          %v5210 = vrot.slane %v5188, %v5209
          %v5212 = vunpack.c.l.s4 1966171168
          %v5213 = vunpack.c.0.s8 %v5212
          %v5214 = vlaneseq
          %v5215 = vshrl.u32 %v5214, 7
          %v5216 = vsub.s32 %v5213, %v5215
          %v5217 = vrot.slane %v5189, %v5216
          %v5218 = vcombine.high %v5196, %v5196
          %v5219 = vcombine.high %v5203, %v5203
          %v5220 = vcombine.high %v5210, %v5210
          %v5221 = vcombine.high %v5217, %v5217
          %v5222 = vpack.i.b16 %v5116, %v5115
          %v5223 = vpack.i.b16 %v5118, %v5117
          %v5224 = vpack.i.b16 %v5120, %v5119
          %v5225 = vpack.i.b16 %v5122, %v5121
          %v5226 = vpack.i.b16 %v5124, %v5123
          %v5227 = vpack.i.b16 %v5126, %v5125
          %v5228 = vpack.i.b16 %v5128, %v5127
          %v5229 = vpack.i.b16 %v5130, %v5129
          %v5230 = vpack.i.b16 %v5132, %v5131
          %v5231 = vpack.i.b16 %v5134, %v5133
          %v5232 = vpack.i.b16 %v5136, %v5135
          %v5233 = vpack.i.b16 %v5138, %v5137
          %v5234 = vpack.i.b16 %v5140, %v5139
          %v5235 = vpack.i.b16 %v5142, %v5141
          %v5236 = vpack.i.b16 %v5144, %v5143
          %v5237 = vpack.i.b16 %v5146, %v5145
          %v5238 = vpack.i.b16 %v5148, %v5147
          %v5239 = vpack.i.b16 %v5150, %v5149
          %v5240 = vpack.i.b16 %v5152, %v5151
          %v5241 = vpack.i.b16 %v5154, %v5153
          %v5242 = vpack.i.b16 %v5156, %v5155
          %v5243 = vpack.i.b16 %v5158, %v5157
          %v5244 = vpack.i.b16 %v5160, %v5159
          %v5245 = vpack.i.b16 %v5162, %v5161
          %v5246 = vpack.i.b16 %v5164, %v5163
          %v5247 = vpack.i.b16 %v5166, %v5165
          %v5248 = vpack.i.b16 %v5168, %v5167
          %v5249 = vpack.i.b16 %v5170, %v5169
          %v5250 = vpack.i.b16 %v5172, %v5171
          %v5251 = vcombine.low %v5222, %v5223
          %v5252 = vcombine.low %v5224, %v5225
          %v5253 = vcombine.low %v5226, %v5227
          %v5254 = vcombine.low %v5228, %v5229
          %v5256 = vunpack.c.l.s4 1966171168
          %v5257 = vunpack.c.0.s8 %v5256
          %v5258 = vlaneseq
          %v5259 = vshrl.u32 %v5258, 7
          %v5260 = vsub.s32 %v5257, %v5259
          %v5261 = vrot.slane %v5251, %v5260
          %v5263 = vunpack.c.l.s4 1966171168
          %v5264 = vunpack.c.0.s8 %v5263
          %v5265 = vlaneseq
          %v5266 = vshrl.u32 %v5265, 7
          %v5267 = vsub.s32 %v5264, %v5266
          %v5268 = vrot.slane %v5252, %v5267
          %v5270 = vunpack.c.l.s4 1966171168
          %v5271 = vunpack.c.0.s8 %v5270
          %v5272 = vlaneseq
          %v5273 = vshrl.u32 %v5272, 7
          %v5274 = vsub.s32 %v5271, %v5273
          %v5275 = vrot.slane %v5253, %v5274
          %v5277 = vunpack.c.l.s4 1966171168
          %v5278 = vunpack.c.0.s8 %v5277
          %v5279 = vlaneseq
          %v5280 = vshrl.u32 %v5279, 7
          %v5281 = vsub.s32 %v5278, %v5280
          %v5282 = vrot.slane %v5254, %v5281
          %v5283 = vcombine.low %v5261, %v5268
          %v5284 = vcombine.high %v5261, %v5268
          %v5285 = vcombine.low %v5275, %v5282
          %v5286 = vcombine.high %v5275, %v5282
          %v5288 = vunpack.c.l.s4 1966171168
          %v5289 = vunpack.c.0.s8 %v5288
          %v5290 = vlaneseq
          %v5291 = vshrl.u32 %v5290, 7
          %v5292 = vsub.s32 %v5289, %v5291
          %v5293 = vrot.slane %v5283, %v5292
          %v5295 = vunpack.c.l.s4 1966171168
          %v5296 = vunpack.c.0.s8 %v5295
          %v5297 = vlaneseq
          %v5298 = vshrl.u32 %v5297, 7
          %v5299 = vsub.s32 %v5296, %v5298
          %v5300 = vrot.slane %v5284, %v5299
          %v5302 = vunpack.c.l.s4 1966171168
          %v5303 = vunpack.c.0.s8 %v5302
          %v5304 = vlaneseq
          %v5305 = vshrl.u32 %v5304, 7
          %v5306 = vsub.s32 %v5303, %v5305
          %v5307 = vrot.slane %v5285, %v5306
          %v5309 = vunpack.c.l.s4 1966171168
          %v5310 = vunpack.c.0.s8 %v5309
          %v5311 = vlaneseq
          %v5312 = vshrl.u32 %v5311, 7
          %v5313 = vsub.s32 %v5310, %v5312
          %v5314 = vrot.slane %v5286, %v5313
          %v5315 = vcombine.low %v5293, %v5307
          %v5316 = vcombine.high %v5293, %v5307
          %v5317 = vcombine.low %v5300, %v5314
          %v5318 = vcombine.low %v5230, %v5231
          %v5319 = vcombine.low %v5232, %v5233
          %v5320 = vcombine.low %v5234, %v5235
          %v5321 = vcombine.low %v5236, %v5237
          %v5323 = vunpack.c.l.s4 1966171168
          %v5324 = vunpack.c.0.s8 %v5323
          %v5325 = vlaneseq
          %v5326 = vshrl.u32 %v5325, 7
          %v5327 = vsub.s32 %v5324, %v5326
          %v5328 = vrot.slane %v5318, %v5327
          %v5330 = vunpack.c.l.s4 1966171168
          %v5331 = vunpack.c.0.s8 %v5330
          %v5332 = vlaneseq
          %v5333 = vshrl.u32 %v5332, 7
          %v5334 = vsub.s32 %v5331, %v5333
          %v5335 = vrot.slane %v5319, %v5334
          %v5337 = vunpack.c.l.s4 1966171168
          %v5338 = vunpack.c.0.s8 %v5337
          %v5339 = vlaneseq
          %v5340 = vshrl.u32 %v5339, 7
          %v5341 = vsub.s32 %v5338, %v5340
          %v5342 = vrot.slane %v5320, %v5341
          %v5344 = vunpack.c.l.s4 1966171168
          %v5345 = vunpack.c.0.s8 %v5344
          %v5346 = vlaneseq
          %v5347 = vshrl.u32 %v5346, 7
          %v5348 = vsub.s32 %v5345, %v5347
          %v5349 = vrot.slane %v5321, %v5348
          %v5350 = vcombine.low %v5328, %v5335
          %v5351 = vcombine.high %v5328, %v5335
          %v5352 = vcombine.low %v5342, %v5349
          %v5353 = vcombine.high %v5342, %v5349
          %v5355 = vunpack.c.l.s4 1966171168
          %v5356 = vunpack.c.0.s8 %v5355
          %v5357 = vlaneseq
          %v5358 = vshrl.u32 %v5357, 7
          %v5359 = vsub.s32 %v5356, %v5358
          %v5360 = vrot.slane %v5350, %v5359
          %v5362 = vunpack.c.l.s4 1966171168
          %v5363 = vunpack.c.0.s8 %v5362
          %v5364 = vlaneseq
          %v5365 = vshrl.u32 %v5364, 7
          %v5366 = vsub.s32 %v5363, %v5365
          %v5367 = vrot.slane %v5351, %v5366
          %v5369 = vunpack.c.l.s4 1966171168
          %v5370 = vunpack.c.0.s8 %v5369
          %v5371 = vlaneseq
          %v5372 = vshrl.u32 %v5371, 7
          %v5373 = vsub.s32 %v5370, %v5372
          %v5374 = vrot.slane %v5352, %v5373
          %v5376 = vunpack.c.l.s4 1966171168
          %v5377 = vunpack.c.0.s8 %v5376
          %v5378 = vlaneseq
          %v5379 = vshrl.u32 %v5378, 7
          %v5380 = vsub.s32 %v5377, %v5379
          %v5381 = vrot.slane %v5353, %v5380
          %v5382 = vcombine.low %v5360, %v5374
          %v5383 = vcombine.high %v5360, %v5374
          %v5384 = vcombine.low %v5367, %v5381
          %v5385 = vcombine.low %v5238, %v5239
          %v5386 = vcombine.low %v5240, %v5241
          %v5387 = vcombine.low %v5242, %v5243
          %v5388 = vcombine.low %v5244, %v5245
          %v5390 = vunpack.c.l.s4 1966171168
          %v5391 = vunpack.c.0.s8 %v5390
          %v5392 = vlaneseq
          %v5393 = vshrl.u32 %v5392, 7
          %v5394 = vsub.s32 %v5391, %v5393
          %v5395 = vrot.slane %v5385, %v5394
          %v5397 = vunpack.c.l.s4 1966171168
          %v5398 = vunpack.c.0.s8 %v5397
          %v5399 = vlaneseq
          %v5400 = vshrl.u32 %v5399, 7
          %v5401 = vsub.s32 %v5398, %v5400
          %v5402 = vrot.slane %v5386, %v5401
          %v5404 = vunpack.c.l.s4 1966171168
          %v5405 = vunpack.c.0.s8 %v5404
          %v5406 = vlaneseq
          %v5407 = vshrl.u32 %v5406, 7
          %v5408 = vsub.s32 %v5405, %v5407
          %v5409 = vrot.slane %v5387, %v5408
          %v5411 = vunpack.c.l.s4 1966171168
          %v5412 = vunpack.c.0.s8 %v5411
          %v5413 = vlaneseq
          %v5414 = vshrl.u32 %v5413, 7
          %v5415 = vsub.s32 %v5412, %v5414
          %v5416 = vrot.slane %v5388, %v5415
          %v5417 = vcombine.low %v5395, %v5402
          %v5418 = vcombine.high %v5395, %v5402
          %v5419 = vcombine.low %v5409, %v5416
          %v5420 = vcombine.high %v5409, %v5416
          %v5422 = vunpack.c.l.s4 1966171168
          %v5423 = vunpack.c.0.s8 %v5422
          %v5424 = vlaneseq
          %v5425 = vshrl.u32 %v5424, 7
          %v5426 = vsub.s32 %v5423, %v5425
          %v5427 = vrot.slane %v5417, %v5426
          %v5429 = vunpack.c.l.s4 1966171168
          %v5430 = vunpack.c.0.s8 %v5429
          %v5431 = vlaneseq
          %v5432 = vshrl.u32 %v5431, 7
          %v5433 = vsub.s32 %v5430, %v5432
          %v5434 = vrot.slane %v5418, %v5433
          %v5436 = vunpack.c.l.s4 1966171168
          %v5437 = vunpack.c.0.s8 %v5436
          %v5438 = vlaneseq
          %v5439 = vshrl.u32 %v5438, 7
          %v5440 = vsub.s32 %v5437, %v5439
          %v5441 = vrot.slane %v5419, %v5440
          %v5443 = vunpack.c.l.s4 1966171168
          %v5444 = vunpack.c.0.s8 %v5443
          %v5445 = vlaneseq
          %v5446 = vshrl.u32 %v5445, 7
          %v5447 = vsub.s32 %v5444, %v5446
          %v5448 = vrot.slane %v5420, %v5447
          %v5449 = vcombine.low %v5427, %v5441
          %v5450 = vcombine.high %v5427, %v5441
          %v5451 = vcombine.low %v5434, %v5448
          %v5452 = vcombine.low %v5246, %v5247
          %v5453 = vcombine.low %v5248, %v5249
          %v5455 = vunpack.c.l.s4 1966171168
          %v5456 = vunpack.c.0.s8 %v5455
          %v5457 = vlaneseq
          %v5458 = vshrl.u32 %v5457, 7
          %v5459 = vsub.s32 %v5456, %v5458
          %v5460 = vrot.slane %v5452, %v5459
          %v5462 = vunpack.c.l.s4 1966171168
          %v5463 = vunpack.c.0.s8 %v5462
          %v5464 = vlaneseq
          %v5465 = vshrl.u32 %v5464, 7
          %v5466 = vsub.s32 %v5463, %v5465
          %v5467 = vrot.slane %v5453, %v5466
          %v5469 = vunpack.c.l.s4 1966171168
          %v5470 = vunpack.c.0.s8 %v5469
          %v5471 = vlaneseq
          %v5472 = vshrl.u32 %v5471, 7
          %v5473 = vsub.s32 %v5470, %v5472
          %v5474 = vrot.slane %v5250, %v5473
          %v5475 = vcombine.low %v5460, %v5467
          %v5476 = vcombine.high %v5460, %v5467
          %v5477 = vcombine.high %v5474, %v5474
          %v5479 = vunpack.c.l.s4 1966171168
          %v5480 = vunpack.c.0.s8 %v5479
          %v5481 = vlaneseq
          %v5482 = vshrl.u32 %v5481, 7
          %v5483 = vsub.s32 %v5480, %v5482
          %v5484 = vrot.slane %v5475, %v5483
          %v5486 = vunpack.c.l.s4 1966171168
          %v5487 = vunpack.c.0.s8 %v5486
          %v5488 = vlaneseq
          %v5489 = vshrl.u32 %v5488, 7
          %v5490 = vsub.s32 %v5487, %v5489
          %v5491 = vrot.slane %v5476, %v5490
          %v5493 = vunpack.c.l.s4 1966171168
          %v5494 = vunpack.c.0.s8 %v5493
          %v5495 = vlaneseq
          %v5496 = vshrl.u32 %v5495, 7
          %v5497 = vsub.s32 %v5494, %v5496
          %v5498 = vrot.slane %v5474, %v5497
          %v5500 = vunpack.c.l.s4 1966171168
          %v5501 = vunpack.c.0.s8 %v5500
          %v5502 = vlaneseq
          %v5503 = vshrl.u32 %v5502, 7
          %v5504 = vsub.s32 %v5501, %v5503
          %v5505 = vrot.slane %v5477, %v5504
          %v5506 = vcombine.low %v5484, %v5498
          %v5507 = vcombine.high %v5484, %v5498
          %v5508 = vcombine.low %v5491, %v5505
          %v5557 = vunpack.c.l.b16 %v4799
          %v5558 = vunpack.c.l.b16 %v4800
          %v5559 = vunpack.c.l.b16 %v4801
          %v5560 = vunpack.c.l.b16 %v4802
          %v5561 = vunpack.c.l.b16 %v4803
          %v5562 = vunpack.c.l.b16 %v4804
          %v5563 = vunpack.c.l.b16 %v4805
          %v5564 = vunpack.c.l.b16 %v4806
          %v5565 = vunpack.c.l.b16 %v4807
          %v5566 = vunpack.c.l.b16 %v4808
          %v5567 = vunpack.c.l.b16 %v4809
          %v5568 = vunpack.c.l.b16 %v4810
          %v5569 = vunpack.c.l.b16 %v4811
          %v5570 = vunpack.c.l.b16 %v4812
          %v5571 = vunpack.c.l.b16 %v4813
          %v5572 = vunpack.c.l.b16 %v4814
          %v5573 = vunpack.c.l.b16 %v4815
          %v5574 = vunpack.c.l.b16 %v4816
          %v5575 = vunpack.c.l.b16 %v4817
          %v5576 = vunpack.c.l.b16 %v4818
          %v5577 = vunpack.c.l.b16 %v4819
          %v5578 = vunpack.c.l.b16 %v4820
          %v5579 = vunpack.c.l.b16 %v4821
          %v5580 = vunpack.c.l.b16 %v4822
          %v5581 = vunpack.c.l.b16 %v4823
          %v5582 = vunpack.c.l.b16 %v4824
          %v5583 = vunpack.c.l.b16 %v4825
          %v5584 = vunpack.c.l.b16 %v4826
          %v5585 = vunpack.c.l.b16 %v4827
          %v5586 = vunpack.c.l.b16 %v4828
          %v5587 = vunpack.c.l.b16 %v4829
          %v5588 = vunpack.c.l.b16 %v4830
          %v5589 = vunpack.c.l.b16 %v4831
          %v5590 = vunpack.c.l.b16 %v4832
          %v5591 = vunpack.c.l.b16 %v4833
          %v5592 = vunpack.c.l.b16 %v4834
          %v5593 = vunpack.c.l.b16 %v4835
          %v5594 = vunpack.c.l.b16 %v4836
          %v5595 = vunpack.c.l.b16 %v4837
          %v5596 = vunpack.c.l.b16 %v4838
          %v5597 = vpack.c.b16 %v5558, %v5557
          %v5598 = vpack.c.b16 %v5560, %v5559
          %v5599 = vpack.c.b16 %v5562, %v5561
          %v5600 = vpack.c.b16 %v5564, %v5563
          %v5601 = vpack.c.b16 %v5566, %v5565
          %v5602 = vpack.c.b16 %v5568, %v5567
          %v5603 = vpack.c.b16 %v5570, %v5569
          %v5604 = vpack.c.b16 %v5572, %v5571
          %v5605 = vpack.c.b16 %v5574, %v5573
          %v5606 = vpack.c.b16 %v5576, %v5575
          %v5607 = vpack.c.b16 %v5578, %v5577
          %v5608 = vpack.c.b16 %v5580, %v5579
          %v5609 = vpack.c.b16 %v5582, %v5581
          %v5610 = vpack.c.b16 %v5584, %v5583
          %v5611 = vpack.c.b16 %v5586, %v5585
          %v5612 = vpack.c.b16 %v5588, %v5587
          %v5613 = vpack.c.b16 %v5590, %v5589
          %v5614 = vpack.c.b16 %v5592, %v5591
          %v5615 = vpack.c.b16 %v5594, %v5593
          %v5616 = vpack.c.b16 %v5596, %v5595
          %v5637 = vcombine.low %v5196, %v5210
          %v5638 = vcombine.low %v5218, %v5220
          %v5639 = vcombine.low %v5203, %v5217
          %v5640 = vcombine.low %v5219, %v5221
          %v5642 = vunpack.c.l.s4 1966171168
          %v5643 = vunpack.c.0.s8 %v5642
          %v5644 = vlaneseq
          %v5645 = vshrl.u32 %v5644, 7
          %v5646 = vsub.s32 %v5643, %v5645
          %v5647 = vrot.slane %v5637, %v5646
          %v5649 = vunpack.c.l.s4 1966171168
          %v5650 = vunpack.c.0.s8 %v5649
          %v5651 = vlaneseq
          %v5652 = vshrl.u32 %v5651, 7
          %v5653 = vsub.s32 %v5650, %v5652
          %v5654 = vrot.slane %v5638, %v5653
          %v5656 = vunpack.c.l.s4 1966171168
          %v5657 = vunpack.c.0.s8 %v5656
          %v5658 = vlaneseq
          %v5659 = vshrl.u32 %v5658, 7
          %v5660 = vsub.s32 %v5657, %v5659
          %v5661 = vrot.slane %v5639, %v5660
          %v5663 = vunpack.c.l.s4 1966171168
          %v5664 = vunpack.c.0.s8 %v5663
          %v5665 = vlaneseq
          %v5666 = vshrl.u32 %v5665, 7
          %v5667 = vsub.s32 %v5664, %v5666
          %v5668 = vrot.slane %v5640, %v5667
          %v5669 = vcombine.low %v5647, %v5654
          %v5670 = vcombine.low %v5661, %v5668
          %v5672 = vunpack.c.l.s4 1966171168
          %v5673 = vunpack.c.0.s8 %v5672
          %v5674 = vlaneseq
          %v5675 = vshrl.u32 %v5674, 7
          %v5676 = vsub.s32 %v5673, %v5675
          %v5677 = vrot.slane %v5669, %v5676
          %v5679 = vunpack.c.l.s4 1966171168
          %v5680 = vunpack.c.0.s8 %v5679
          %v5681 = vlaneseq
          %v5682 = vshrl.u32 %v5681, 7
          %v5683 = vsub.s32 %v5680, %v5682
          %v5684 = vrot.slane %v5670, %v5683
          %v5685 = vcombine.low %v5677, %v5684
          %v5686 = vcombine.low %v5203, %v5196
          %v5687 = vcombine.low %v5210, %v5218
          %v5689 = vunpack.c.l.s4 1966171168
          %v5690 = vunpack.c.0.s8 %v5689
          %v5691 = vlaneseq
          %v5692 = vshrl.u32 %v5691, 7
          %v5693 = vsub.s32 %v5690, %v5692
          %v5694 = vrot.slane %v5686, %v5693
          %v5696 = vunpack.c.l.s4 1966171168
          %v5697 = vunpack.c.0.s8 %v5696
          %v5698 = vlaneseq
          %v5699 = vshrl.u32 %v5698, 7
          %v5700 = vsub.s32 %v5697, %v5699
          %v5701 = vrot.slane %v5687, %v5700
          %v5702 = vcombine.low %v5694, %v5701
          %v5704 = vunpack.c.l.s4 1966171168
          %v5705 = vunpack.c.0.s8 %v5704
          %v5706 = vlaneseq
          %v5707 = vshrl.u32 %v5706, 7
          %v5708 = vsub.s32 %v5705, %v5707
          %v5709 = vrot.slane %v5702, %v5708
          %v5710 = vcombine.low %v5677, %v5709
          %v5711 = vcombine.low %v5220, %v5203
          %v5712 = vcombine.low %v5217, %v5219
          %v5713 = vcombine.low %v5221, %v5196
          %v5715 = vunpack.c.l.s4 1966171168
          %v5716 = vunpack.c.0.s8 %v5715
          %v5717 = vlaneseq
          %v5718 = vshrl.u32 %v5717, 7
          %v5719 = vsub.s32 %v5716, %v5718
          %v5720 = vrot.slane %v5711, %v5719
          %v5722 = vunpack.c.l.s4 1966171168
          %v5723 = vunpack.c.0.s8 %v5722
          %v5724 = vlaneseq
          %v5725 = vshrl.u32 %v5724, 7
          %v5726 = vsub.s32 %v5723, %v5725
          %v5727 = vrot.slane %v5712, %v5726
          %v5729 = vunpack.c.l.s4 1966171168
          %v5730 = vunpack.c.0.s8 %v5729
          %v5731 = vlaneseq
          %v5732 = vshrl.u32 %v5731, 7
          %v5733 = vsub.s32 %v5730, %v5732
          %v5734 = vrot.slane %v5713, %v5733
          %v5735 = vcombine.low %v5720, %v5727
          %v5736 = vcombine.low %v5734, %v5701
          %v5738 = vunpack.c.l.s4 1966171168
          %v5739 = vunpack.c.0.s8 %v5738
          %v5740 = vlaneseq
          %v5741 = vshrl.u32 %v5740, 7
          %v5742 = vsub.s32 %v5739, %v5741
          %v5743 = vrot.slane %v5735, %v5742
          %v5745 = vunpack.c.l.s4 1966171168
          %v5746 = vunpack.c.0.s8 %v5745
          %v5747 = vlaneseq
          %v5748 = vshrl.u32 %v5747, 7
          %v5749 = vsub.s32 %v5746, %v5748
          %v5750 = vrot.slane %v5736, %v5749
          %v5751 = vcombine.low %v5743, %v5750
          %v5753 = vunpack.c.l.s4 1966171168
          %v5754 = vunpack.c.0.s8 %v5753
          %v5755 = vlaneseq
          %v5756 = vshrl.u32 %v5755, 7
          %v5757 = vsub.s32 %v5754, %v5756
          %v5758 = vrot.slane %v5720, %v5757
          %vm5763 = vcmask 523264
          %v5765 = vsel %vm5763, %v5316, 0
          %v5768 = vsel %vm5763, %v5383, 0
          %v5771 = vsel %vm5763, %v5450, 0
          %v5774 = vsel %vm5763, %v5507, 0
          %5776 = vmatprep.subr.bf16.mxu0 0
          %5777 = vmatpush1.bf16.msra.mxu0 %v5597
          %5778 = vmatprep.subr.bf16.mxu0 0
          %5779 = vmatpush1.bf16.msra.mxu0 %v5598
          %5780 = vmatprep.subr.bf16.mxu0 0
          %5781 = vmatpush1.bf16.msra.mxu0 %v5599
          %5782 = vmatprep.subr.bf16.mxu0 0
          %5783 = vmatpush1.bf16.msra.mxu0 %v5600
          %5784 = vmatprep.subr.bf16.mxu0 0
          %5785 = vmatpush1.bf16.msra.mxu0 %v5601
          %5786 = vmatprep.subr.bf16.mxu0 0
          %5787 = vmatpush1.bf16.msra.mxu0 %v5602
          %5788 = vmatprep.subr.bf16.mxu0 0
          %5789 = vmatpush1.bf16.msra.mxu0 %v5603
          %5790 = vmatprep.subr.bf16.mxu0 0
          %5791 = vmatpush1.bf16.msra.mxu0 %v5604
          %5792 = vmatprep.subr.bf16.mxu0 0
          %5793 = vmatpush1.bf16.msra.mxu0 %v5605
          %5794 = vmatprep.subr.bf16.mxu0 0
          %5795 = vmatpush1.bf16.msra.mxu0 %v5606
          %5796 = vmatprep.subr.bf16.mxu0 0
          %5797 = vmatpush1.bf16.msra.mxu0 %v5607
          %5798 = vmatprep.subr.bf16.mxu0 0
          %5799 = vmatpush1.bf16.msra.mxu0 %v5608
          %5800 = vmatprep.subr.bf16.mxu0 0
          %5801 = vmatpush1.bf16.msra.mxu0 %v5609
          %5802 = vmatprep.subr.bf16.mxu0 0
          %5803 = vmatpush1.bf16.msra.mxu0 %v5610
          %5804 = vmatprep.subr.bf16.mxu0 0
          %5805 = vmatpush1.bf16.msra.mxu0 %v5611
          %5806 = vmatprep.subr.bf16.mxu0 0
          %5807 = vmatpush1.bf16.msra.mxu0 %v5612
          %5808 = vmatprep.mubr.bf16.mxu0 %v5317
          %5809 = vmatmul.mubr.bf16.gmra.mrb[0].mxu0 %v5315
          %v5810 = vpop.f32.mrb[0].mxu0
          %v5811 = vadd.f32 %v5685, %v5810
          %v5812 = vpop.f32.mrb[0].mxu0
          %v5813 = vpop.f32.mrb[0].mxu0
          %v5814 = vadd.f32 %v5685, %v5813
          %v5815 = vpop.f32.mrb[0].mxu0
          %5816 = vmatprep.mubr.bf16.mxu0 %v5384
          %5817 = vmatmul.mubr.bf16.gmra.mrb[0].mxu0 %v5382
          %v5818 = vpop.f32.mrb[0].mxu0
          %v5819 = vadd.f32 %v5685, %v5818
          %v5820 = vpop.f32.mrb[0].mxu0
          %v5821 = vpop.f32.mrb[0].mxu0
          %v5822 = vadd.f32 %v5710, %v5821
          %v5823 = vpop.f32.mrb[0].mxu0
          %5824 = vmatprep.mubr.bf16.mxu0 %v5451
          %5825 = vmatmul.mubr.bf16.gmra.mrb[0].mxu0 %v5449
          %v5826 = vpop.f32.mrb[0].mxu0
          %v5827 = vadd.f32 %v5751, %v5826
          %v5828 = vpop.f32.mrb[0].mxu0
          %v5829 = vpop.f32.mrb[0].mxu0
          %v5830 = vadd.f32 %v5751, %v5829
          %v5831 = vpop.f32.mrb[0].mxu0
          %5832 = vmatprep.mubr.bf16.mxu0 %v5508
          %5833 = vmatmul.mubr.bf16.gmra.mrb[0].mxu0 %v5506
          %v5834 = vpop.f32.mrb[0].mxu0
          %v5835 = vadd.f32 %v5751, %v5834
          %v5836 = vpop.f32.mrb[0].mxu0
          %v5837 = vpop.f32.mrb[0].mxu0
          %v5838 = vadd.f32 %v5758, %v5837
          %v5839 = vpop.f32.mrb[0].mxu0
          %5840 = vdwg.mxu0
          %5841 = vmatprep.subr.bf16.mxu0 0
          %5842 = vmatpush1.bf16.msra.mxu0 %v5613
          %5843 = vmatprep.subr.bf16.mxu0 0
          %5844 = vmatpush1.bf16.msra.mxu0 %v5614
          %5845 = vmatprep.subr.bf16.mxu0 0
          %5846 = vmatpush1.bf16.msra.mxu0 %v5615
          %5847 = vmatprep.subr.bf16.mxu0 0
          %5848 = vmatpush1.bf16.msra.mxu0 %v5616
          %5849 = vmatprep.subr.bf16.mxu0 0
          %5850 = vmatpush1.bf16.msra.mxu0 0
          %5851 = vmatprep.subr.bf16.mxu0 0
          %5852 = vmatpush1.bf16.msra.mxu0 0
          %5853 = vmatprep.subr.bf16.mxu0 0
          %5854 = vmatpush1.bf16.msra.mxu0 0
          %5855 = vmatprep.subr.bf16.mxu0 0
          %5856 = vmatpush1.bf16.msra.mxu0 0
          %5857 = vmatprep.subr.bf16.mxu0 0
          %5858 = vmatpush1.bf16.msra.mxu0 0
          %5859 = vmatprep.subr.bf16.mxu0 0
          %5860 = vmatpush1.bf16.msra.mxu0 0
          %5861 = vmatprep.subr.bf16.mxu0 0
          %5862 = vmatpush1.bf16.msra.mxu0 0
          %5863 = vmatprep.subr.bf16.mxu0 0
          %5864 = vmatpush1.bf16.msra.mxu0 0
          %5865 = vmatprep.subr.bf16.mxu0 0
          %5866 = vmatpush1.bf16.msra.mxu0 0
          %5867 = vmatprep.subr.bf16.mxu0 0
          %5868 = vmatpush1.bf16.msra.mxu0 0
          %5869 = vmatprep.subr.bf16.mxu0 0
          %5870 = vmatpush1.bf16.msra.mxu0 0
          %5871 = vmatprep.subr.bf16.mxu0 0
          %5872 = vmatpush1.bf16.msra.mxu0 0
          %5873 = vmatprep.mubr.bf16.mxu0 0
          %5874 = vmatmul.mubr.bf16.gmra.mrb[0].mxu0 %v5765
          %v5875 = vpop.f32.mrb[0].mxu0
          %v5876 = vadd.f32 %v5811, %v5875
          %v5877 = vpop.f32.mrb[0].mxu0
          %v5878 = vpop.f32.mrb[0].mxu0
          %v5879 = vadd.f32 %v5814, %v5878
          %v5880 = vpop.f32.mrb[0].mxu0
          %5881 = vmatprep.mubr.bf16.mxu0 0
          %5882 = vmatmul.mubr.bf16.gmra.mrb[0].mxu0 %v5768
          %v5883 = vpop.f32.mrb[0].mxu0
          %v5884 = vadd.f32 %v5819, %v5883
          %v5885 = vpop.f32.mrb[0].mxu0
          %v5886 = vpop.f32.mrb[0].mxu0
          %v5887 = vadd.f32 %v5822, %v5886
          %v5888 = vpop.f32.mrb[0].mxu0
          %5889 = vmatprep.mubr.bf16.mxu0 0
          %5890 = vmatmul.mubr.bf16.gmra.mrb[0].mxu0 %v5771
          %v5891 = vpop.f32.mrb[0].mxu0
          %v5892 = vadd.f32 %v5827, %v5891
          %v5893 = vpop.f32.mrb[0].mxu0
          %v5894 = vpop.f32.mrb[0].mxu0
          %v5895 = vadd.f32 %v5830, %v5894
          %v5896 = vpop.f32.mrb[0].mxu0
          %5897 = vmatprep.mubr.bf16.mxu0 0
          %5898 = vmatmul.mubr.bf16.gmra.mrb[0].mxu0 %v5774
          %v5899 = vpop.f32.mrb[0].mxu0
          %v5900 = vadd.f32 %v5835, %v5899
          %v5901 = vpop.f32.mrb[0].mxu0
          %v5902 = vpop.f32.mrb[0].mxu0
          %v5903 = vadd.f32 %v5838, %v5902
          %v5904 = vpop.f32.mrb[0].mxu0
          %5905 = vdwg.mxu0
          %v5914 = vcombine.high %v5876, %v5876
          %v5916 = vunpack.c.l.s4 1966171168
          %v5917 = vunpack.c.0.s8 %v5916
          %v5918 = vlaneseq
          %v5919 = vshrl.u32 %v5918, 7
          %v5920 = vsub.s32 %v5917, %v5919
          %v5921 = vrot.slane %v5876, %v5920
          %v5923 = vunpack.c.l.s4 1966171168
          %v5924 = vunpack.c.0.s8 %v5923
          %v5925 = vlaneseq
          %v5926 = vshrl.u32 %v5925, 7
          %v5927 = vsub.s32 %v5924, %v5926
          %v5928 = vrot.slane %v5914, %v5927
          %v5929 = vcombine.high %v5921, %v5921
          %v5930 = vcombine.high %v5928, %v5928
          %v5932 = vunpack.c.l.s4 1966171168
          %v5933 = vunpack.c.0.s8 %v5932
          %v5934 = vlaneseq
          %v5935 = vshrl.u32 %v5934, 7
          %v5936 = vsub.s32 %v5933, %v5935
          %v5937 = vrot.slane %v5921, %v5936
          %v5939 = vunpack.c.l.s4 1966171168
          %v5940 = vunpack.c.0.s8 %v5939
          %v5941 = vlaneseq
          %v5942 = vshrl.u32 %v5941, 7
          %v5943 = vsub.s32 %v5940, %v5942
          %v5944 = vrot.slane %v5928, %v5943
          %v5946 = vunpack.c.l.s4 1966171168
          %v5947 = vunpack.c.0.s8 %v5946
          %v5948 = vlaneseq
          %v5949 = vshrl.u32 %v5948, 7
          %v5950 = vsub.s32 %v5947, %v5949
          %v5951 = vrot.slane %v5929, %v5950
          %v5953 = vunpack.c.l.s4 1966171168
          %v5954 = vunpack.c.0.s8 %v5953
          %v5955 = vlaneseq
          %v5956 = vshrl.u32 %v5955, 7
          %v5957 = vsub.s32 %v5954, %v5956
          %v5958 = vrot.slane %v5930, %v5957
          %v5959 = vcombine.high %v5937, %v5937
          %v5960 = vcombine.high %v5944, %v5944
          %v5961 = vcombine.high %v5951, %v5951
          %v5962 = vcombine.high %v5958, %v5958
          %v5963 = vcombine.high %v5879, %v5879
          %v5965 = vunpack.c.l.s4 1966171168
          %v5966 = vunpack.c.0.s8 %v5965
          %v5967 = vlaneseq
          %v5968 = vshrl.u32 %v5967, 7
          %v5969 = vsub.s32 %v5966, %v5968
          %v5970 = vrot.slane %v5879, %v5969
          %v5972 = vunpack.c.l.s4 1966171168
          %v5973 = vunpack.c.0.s8 %v5972
          %v5974 = vlaneseq
          %v5975 = vshrl.u32 %v5974, 7
          %v5976 = vsub.s32 %v5973, %v5975
          %v5977 = vrot.slane %v5963, %v5976
          %v5978 = vcombine.high %v5970, %v5970
          %v5979 = vcombine.high %v5977, %v5977
          %v5981 = vunpack.c.l.s4 1966171168
          %v5982 = vunpack.c.0.s8 %v5981
          %v5983 = vlaneseq
          %v5984 = vshrl.u32 %v5983, 7
          %v5985 = vsub.s32 %v5982, %v5984
          %v5986 = vrot.slane %v5970, %v5985
          %v5988 = vunpack.c.l.s4 1966171168
          %v5989 = vunpack.c.0.s8 %v5988
          %v5990 = vlaneseq
          %v5991 = vshrl.u32 %v5990, 7
          %v5992 = vsub.s32 %v5989, %v5991
          %v5993 = vrot.slane %v5977, %v5992
          %v5995 = vunpack.c.l.s4 1966171168
          %v5996 = vunpack.c.0.s8 %v5995
          %v5997 = vlaneseq
          %v5998 = vshrl.u32 %v5997, 7
          %v5999 = vsub.s32 %v5996, %v5998
          %v6000 = vrot.slane %v5978, %v5999
          %v6002 = vunpack.c.l.s4 1966171168
          %v6003 = vunpack.c.0.s8 %v6002
          %v6004 = vlaneseq
          %v6005 = vshrl.u32 %v6004, 7
          %v6006 = vsub.s32 %v6003, %v6005
          %v6007 = vrot.slane %v5979, %v6006
          %v6008 = vcombine.high %v5986, %v5986
          %v6009 = vcombine.high %v5993, %v5993
          %v6010 = vcombine.high %v6000, %v6000
          %v6011 = vcombine.high %v6007, %v6007
          %v6012 = vcombine.high %v5884, %v5884
          %v6014 = vunpack.c.l.s4 1966171168
          %v6015 = vunpack.c.0.s8 %v6014
          %v6016 = vlaneseq
          %v6017 = vshrl.u32 %v6016, 7
          %v6018 = vsub.s32 %v6015, %v6017
          %v6019 = vrot.slane %v5884, %v6018
          %v6021 = vunpack.c.l.s4 1966171168
          %v6022 = vunpack.c.0.s8 %v6021
          %v6023 = vlaneseq
          %v6024 = vshrl.u32 %v6023, 7
          %v6025 = vsub.s32 %v6022, %v6024
          %v6026 = vrot.slane %v6012, %v6025
          %v6027 = vcombine.high %v6019, %v6019
          %v6028 = vcombine.high %v6026, %v6026
          %v6030 = vunpack.c.l.s4 1966171168
          %v6031 = vunpack.c.0.s8 %v6030
          %v6032 = vlaneseq
          %v6033 = vshrl.u32 %v6032, 7
          %v6034 = vsub.s32 %v6031, %v6033
          %v6035 = vrot.slane %v6019, %v6034
          %v6037 = vunpack.c.l.s4 1966171168
          %v6038 = vunpack.c.0.s8 %v6037
          %v6039 = vlaneseq
          %v6040 = vshrl.u32 %v6039, 7
          %v6041 = vsub.s32 %v6038, %v6040
          %v6042 = vrot.slane %v6026, %v6041
          %v6044 = vunpack.c.l.s4 1966171168
          %v6045 = vunpack.c.0.s8 %v6044
          %v6046 = vlaneseq
          %v6047 = vshrl.u32 %v6046, 7
          %v6048 = vsub.s32 %v6045, %v6047
          %v6049 = vrot.slane %v6027, %v6048
          %v6051 = vunpack.c.l.s4 1966171168
          %v6052 = vunpack.c.0.s8 %v6051
          %v6053 = vlaneseq
          %v6054 = vshrl.u32 %v6053, 7
          %v6055 = vsub.s32 %v6052, %v6054
          %v6056 = vrot.slane %v6028, %v6055
          %v6057 = vcombine.high %v6035, %v6035
          %v6058 = vcombine.high %v6042, %v6042
          %v6059 = vcombine.high %v6049, %v6049
          %v6060 = vcombine.high %v6056, %v6056
          %v6061 = vcombine.high %v5887, %v5887
          %v6063 = vunpack.c.l.s4 1966171168
          %v6064 = vunpack.c.0.s8 %v6063
          %v6065 = vlaneseq
          %v6066 = vshrl.u32 %v6065, 7
          %v6067 = vsub.s32 %v6064, %v6066
          %v6068 = vrot.slane %v5887, %v6067
          %v6070 = vunpack.c.l.s4 1966171168
          %v6071 = vunpack.c.0.s8 %v6070
          %v6072 = vlaneseq
          %v6073 = vshrl.u32 %v6072, 7
          %v6074 = vsub.s32 %v6071, %v6073
          %v6075 = vrot.slane %v6061, %v6074
          %v6076 = vcombine.high %v6068, %v6068
          %v6077 = vcombine.high %v6075, %v6075
          %v6079 = vunpack.c.l.s4 1966171168
          %v6080 = vunpack.c.0.s8 %v6079
          %v6081 = vlaneseq
          %v6082 = vshrl.u32 %v6081, 7
          %v6083 = vsub.s32 %v6080, %v6082
          %v6084 = vrot.slane %v6068, %v6083
          %v6086 = vunpack.c.l.s4 1966171168
          %v6087 = vunpack.c.0.s8 %v6086
          %v6088 = vlaneseq
          %v6089 = vshrl.u32 %v6088, 7
          %v6090 = vsub.s32 %v6087, %v6089
          %v6091 = vrot.slane %v6075, %v6090
          %v6093 = vunpack.c.l.s4 1966171168
          %v6094 = vunpack.c.0.s8 %v6093
          %v6095 = vlaneseq
          %v6096 = vshrl.u32 %v6095, 7
          %v6097 = vsub.s32 %v6094, %v6096
          %v6098 = vrot.slane %v6076, %v6097
          %v6100 = vunpack.c.l.s4 1966171168
          %v6101 = vunpack.c.0.s8 %v6100
          %v6102 = vlaneseq
          %v6103 = vshrl.u32 %v6102, 7
          %v6104 = vsub.s32 %v6101, %v6103
          %v6105 = vrot.slane %v6077, %v6104
          %v6106 = vcombine.high %v6084, %v6084
          %v6107 = vcombine.high %v6091, %v6091
          %v6108 = vcombine.high %v6098, %v6098
          %v6109 = vcombine.high %v6105, %v6105
          %v6110 = vcombine.high %v5892, %v5892
          %v6112 = vunpack.c.l.s4 1966171168
          %v6113 = vunpack.c.0.s8 %v6112
          %v6114 = vlaneseq
          %v6115 = vshrl.u32 %v6114, 7
          %v6116 = vsub.s32 %v6113, %v6115
          %v6117 = vrot.slane %v5892, %v6116
          %v6119 = vunpack.c.l.s4 1966171168
          %v6120 = vunpack.c.0.s8 %v6119
          %v6121 = vlaneseq
          %v6122 = vshrl.u32 %v6121, 7
          %v6123 = vsub.s32 %v6120, %v6122
          %v6124 = vrot.slane %v6110, %v6123
          %v6125 = vcombine.high %v6117, %v6117
          %v6126 = vcombine.high %v6124, %v6124
          %v6128 = vunpack.c.l.s4 1966171168
          %v6129 = vunpack.c.0.s8 %v6128
          %v6130 = vlaneseq
          %v6131 = vshrl.u32 %v6130, 7
          %v6132 = vsub.s32 %v6129, %v6131
          %v6133 = vrot.slane %v6117, %v6132
          %v6135 = vunpack.c.l.s4 1966171168
          %v6136 = vunpack.c.0.s8 %v6135
          %v6137 = vlaneseq
          %v6138 = vshrl.u32 %v6137, 7
          %v6139 = vsub.s32 %v6136, %v6138
          %v6140 = vrot.slane %v6124, %v6139
          %v6142 = vunpack.c.l.s4 1966171168
          %v6143 = vunpack.c.0.s8 %v6142
          %v6144 = vlaneseq
          %v6145 = vshrl.u32 %v6144, 7
          %v6146 = vsub.s32 %v6143, %v6145
          %v6147 = vrot.slane %v6125, %v6146
          %v6149 = vunpack.c.l.s4 1966171168
          %v6150 = vunpack.c.0.s8 %v6149
          %v6151 = vlaneseq
          %v6152 = vshrl.u32 %v6151, 7
          %v6153 = vsub.s32 %v6150, %v6152
          %v6154 = vrot.slane %v6126, %v6153
          %v6155 = vcombine.high %v6133, %v6133
          %v6156 = vcombine.high %v6140, %v6140
          %v6157 = vcombine.high %v6147, %v6147
          %v6158 = vcombine.high %v6154, %v6154
          %v6159 = vcombine.high %v5895, %v5895
          %v6161 = vunpack.c.l.s4 1966171168
          %v6162 = vunpack.c.0.s8 %v6161
          %v6163 = vlaneseq
          %v6164 = vshrl.u32 %v6163, 7
          %v6165 = vsub.s32 %v6162, %v6164
          %v6166 = vrot.slane %v5895, %v6165
          %v6168 = vunpack.c.l.s4 1966171168
          %v6169 = vunpack.c.0.s8 %v6168
          %v6170 = vlaneseq
          %v6171 = vshrl.u32 %v6170, 7
          %v6172 = vsub.s32 %v6169, %v6171
          %v6173 = vrot.slane %v6159, %v6172
          %v6174 = vcombine.high %v6166, %v6166
          %v6175 = vcombine.high %v6173, %v6173
          %v6177 = vunpack.c.l.s4 1966171168
          %v6178 = vunpack.c.0.s8 %v6177
          %v6179 = vlaneseq
          %v6180 = vshrl.u32 %v6179, 7
          %v6181 = vsub.s32 %v6178, %v6180
          %v6182 = vrot.slane %v6166, %v6181
          %v6184 = vunpack.c.l.s4 1966171168
          %v6185 = vunpack.c.0.s8 %v6184
          %v6186 = vlaneseq
          %v6187 = vshrl.u32 %v6186, 7
          %v6188 = vsub.s32 %v6185, %v6187
          %v6189 = vrot.slane %v6173, %v6188
          %v6191 = vunpack.c.l.s4 1966171168
          %v6192 = vunpack.c.0.s8 %v6191
          %v6193 = vlaneseq
          %v6194 = vshrl.u32 %v6193, 7
          %v6195 = vsub.s32 %v6192, %v6194
          %v6196 = vrot.slane %v6174, %v6195
          %v6198 = vunpack.c.l.s4 1966171168
          %v6199 = vunpack.c.0.s8 %v6198
          %v6200 = vlaneseq
          %v6201 = vshrl.u32 %v6200, 7
          %v6202 = vsub.s32 %v6199, %v6201
          %v6203 = vrot.slane %v6175, %v6202
          %v6204 = vcombine.high %v6182, %v6182
          %v6205 = vcombine.high %v6189, %v6189
          %v6206 = vcombine.high %v6196, %v6196
          %v6207 = vcombine.high %v6203, %v6203
          %v6208 = vcombine.high %v5900, %v5900
          %v6210 = vunpack.c.l.s4 1966171168
          %v6211 = vunpack.c.0.s8 %v6210
          %v6212 = vlaneseq
          %v6213 = vshrl.u32 %v6212, 7
          %v6214 = vsub.s32 %v6211, %v6213
          %v6215 = vrot.slane %v5900, %v6214
          %v6217 = vunpack.c.l.s4 1966171168
          %v6218 = vunpack.c.0.s8 %v6217
          %v6219 = vlaneseq
          %v6220 = vshrl.u32 %v6219, 7
          %v6221 = vsub.s32 %v6218, %v6220
          %v6222 = vrot.slane %v6208, %v6221
          %v6223 = vcombine.high %v6215, %v6215
          %v6224 = vcombine.high %v6222, %v6222
          %v6226 = vunpack.c.l.s4 1966171168
          %v6227 = vunpack.c.0.s8 %v6226
          %v6228 = vlaneseq
          %v6229 = vshrl.u32 %v6228, 7
          %v6230 = vsub.s32 %v6227, %v6229
          %v6231 = vrot.slane %v6215, %v6230
          %v6233 = vunpack.c.l.s4 1966171168
          %v6234 = vunpack.c.0.s8 %v6233
          %v6235 = vlaneseq
          %v6236 = vshrl.u32 %v6235, 7
          %v6237 = vsub.s32 %v6234, %v6236
          %v6238 = vrot.slane %v6222, %v6237
          %v6240 = vunpack.c.l.s4 1966171168
          %v6241 = vunpack.c.0.s8 %v6240
          %v6242 = vlaneseq
          %v6243 = vshrl.u32 %v6242, 7
          %v6244 = vsub.s32 %v6241, %v6243
          %v6245 = vrot.slane %v6223, %v6244
          %v6247 = vunpack.c.l.s4 1966171168
          %v6248 = vunpack.c.0.s8 %v6247
          %v6249 = vlaneseq
          %v6250 = vshrl.u32 %v6249, 7
          %v6251 = vsub.s32 %v6248, %v6250
          %v6252 = vrot.slane %v6224, %v6251
          %v6253 = vcombine.high %v6231, %v6231
          %v6254 = vcombine.high %v6238, %v6238
          %v6255 = vcombine.high %v6245, %v6245
          %v6256 = vcombine.high %v6252, %v6252
          %v6258 = vunpack.c.l.s4 1966171168
          %v6259 = vunpack.c.0.s8 %v6258
          %v6260 = vlaneseq
          %v6261 = vshrl.u32 %v6260, 7
          %v6262 = vsub.s32 %v6259, %v6261
          %v6263 = vrot.slane %v5903, %v6262
          %v6264 = vcombine.high %v6263, %v6263
          %v6266 = vunpack.c.l.s4 1966171168
          %v6267 = vunpack.c.0.s8 %v6266
          %v6268 = vlaneseq
          %v6269 = vshrl.u32 %v6268, 7
          %v6270 = vsub.s32 %v6267, %v6269
          %v6271 = vrot.slane %v6263, %v6270
          %v6273 = vunpack.c.l.s4 1966171168
          %v6274 = vunpack.c.0.s8 %v6273
          %v6275 = vlaneseq
          %v6276 = vshrl.u32 %v6275, 7
          %v6277 = vsub.s32 %v6274, %v6276
          %v6278 = vrot.slane %v6264, %v6277
          %v6337 = vld [vmem:[%s9] sm:$0xff]
          %v6338 = vld [vmem:[%s9 + $0x8] sm:$0xff]
          %v6339 = vld [vmem:[%s9 + $0x10] sm:$0xff]
          %v6340 = vld [vmem:[%s9 + $0x18] sm:$0x1f]
          %v6345 = vcombine.high %v6337, %v6337
          %v6347 = vunpack.c.l.s4 1966171168
          %v6348 = vunpack.c.0.s8 %v6347
          %v6349 = vlaneseq
          %v6350 = vshrl.u32 %v6349, 7
          %v6351 = vsub.s32 %v6348, %v6350
          %v6352 = vrot.slane %v6337, %v6351
          %v6354 = vunpack.c.l.s4 1966171168
          %v6355 = vunpack.c.0.s8 %v6354
          %v6356 = vlaneseq
          %v6357 = vshrl.u32 %v6356, 7
          %v6358 = vsub.s32 %v6355, %v6357
          %v6359 = vrot.slane %v6345, %v6358
          %v6360 = vcombine.high %v6352, %v6352
          %v6361 = vcombine.high %v6359, %v6359
          %v6363 = vunpack.c.l.s4 1966171168
          %v6364 = vunpack.c.0.s8 %v6363
          %v6365 = vlaneseq
          %v6366 = vshrl.u32 %v6365, 7
          %v6367 = vsub.s32 %v6364, %v6366
          %v6368 = vrot.slane %v6352, %v6367
          %v6370 = vunpack.c.l.s4 1966171168
          %v6371 = vunpack.c.0.s8 %v6370
          %v6372 = vlaneseq
          %v6373 = vshrl.u32 %v6372, 7
          %v6374 = vsub.s32 %v6371, %v6373
          %v6375 = vrot.slane %v6359, %v6374
          %v6377 = vunpack.c.l.s4 1966171168
          %v6378 = vunpack.c.0.s8 %v6377
          %v6379 = vlaneseq
          %v6380 = vshrl.u32 %v6379, 7
          %v6381 = vsub.s32 %v6378, %v6380
          %v6382 = vrot.slane %v6360, %v6381
          %v6384 = vunpack.c.l.s4 1966171168
          %v6385 = vunpack.c.0.s8 %v6384
          %v6386 = vlaneseq
          %v6387 = vshrl.u32 %v6386, 7
          %v6388 = vsub.s32 %v6385, %v6387
          %v6389 = vrot.slane %v6361, %v6388
          %v6390 = vcombine.high %v6368, %v6368
          %v6391 = vcombine.high %v6375, %v6375
          %v6392 = vcombine.high %v6382, %v6382
          %v6393 = vcombine.high %v6389, %v6389
          %v6394 = vcombine.high %v6338, %v6338
          %v6396 = vunpack.c.l.s4 1966171168
          %v6397 = vunpack.c.0.s8 %v6396
          %v6398 = vlaneseq
          %v6399 = vshrl.u32 %v6398, 7
          %v6400 = vsub.s32 %v6397, %v6399
          %v6401 = vrot.slane %v6338, %v6400
          %v6403 = vunpack.c.l.s4 1966171168
          %v6404 = vunpack.c.0.s8 %v6403
          %v6405 = vlaneseq
          %v6406 = vshrl.u32 %v6405, 7
          %v6407 = vsub.s32 %v6404, %v6406
          %v6408 = vrot.slane %v6394, %v6407
          %v6409 = vcombine.high %v6401, %v6401
          %v6410 = vcombine.high %v6408, %v6408
          %v6412 = vunpack.c.l.s4 1966171168
          %v6413 = vunpack.c.0.s8 %v6412
          %v6414 = vlaneseq
          %v6415 = vshrl.u32 %v6414, 7
          %v6416 = vsub.s32 %v6413, %v6415
          %v6417 = vrot.slane %v6401, %v6416
          %v6419 = vunpack.c.l.s4 1966171168
          %v6420 = vunpack.c.0.s8 %v6419
          %v6421 = vlaneseq
          %v6422 = vshrl.u32 %v6421, 7
          %v6423 = vsub.s32 %v6420, %v6422
          %v6424 = vrot.slane %v6408, %v6423
          %v6426 = vunpack.c.l.s4 1966171168
          %v6427 = vunpack.c.0.s8 %v6426
          %v6428 = vlaneseq
          %v6429 = vshrl.u32 %v6428, 7
          %v6430 = vsub.s32 %v6427, %v6429
          %v6431 = vrot.slane %v6409, %v6430
          %v6433 = vunpack.c.l.s4 1966171168
          %v6434 = vunpack.c.0.s8 %v6433
          %v6435 = vlaneseq
          %v6436 = vshrl.u32 %v6435, 7
          %v6437 = vsub.s32 %v6434, %v6436
          %v6438 = vrot.slane %v6410, %v6437
          %v6439 = vcombine.high %v6417, %v6417
          %v6440 = vcombine.high %v6424, %v6424
          %v6441 = vcombine.high %v6431, %v6431
          %v6442 = vcombine.high %v6438, %v6438
          %v6443 = vcombine.high %v6339, %v6339
          %v6445 = vunpack.c.l.s4 1966171168
          %v6446 = vunpack.c.0.s8 %v6445
          %v6447 = vlaneseq
          %v6448 = vshrl.u32 %v6447, 7
          %v6449 = vsub.s32 %v6446, %v6448
          %v6450 = vrot.slane %v6339, %v6449
          %v6452 = vunpack.c.l.s4 1966171168
          %v6453 = vunpack.c.0.s8 %v6452
          %v6454 = vlaneseq
          %v6455 = vshrl.u32 %v6454, 7
          %v6456 = vsub.s32 %v6453, %v6455
          %v6457 = vrot.slane %v6443, %v6456
          %v6458 = vcombine.high %v6450, %v6450
          %v6459 = vcombine.high %v6457, %v6457
          %v6461 = vunpack.c.l.s4 1966171168
          %v6462 = vunpack.c.0.s8 %v6461
          %v6463 = vlaneseq
          %v6464 = vshrl.u32 %v6463, 7
          %v6465 = vsub.s32 %v6462, %v6464
          %v6466 = vrot.slane %v6450, %v6465
          %v6468 = vunpack.c.l.s4 1966171168
          %v6469 = vunpack.c.0.s8 %v6468
          %v6470 = vlaneseq
          %v6471 = vshrl.u32 %v6470, 7
          %v6472 = vsub.s32 %v6469, %v6471
          %v6473 = vrot.slane %v6457, %v6472
          %v6475 = vunpack.c.l.s4 1966171168
          %v6476 = vunpack.c.0.s8 %v6475
          %v6477 = vlaneseq
          %v6478 = vshrl.u32 %v6477, 7
          %v6479 = vsub.s32 %v6476, %v6478
          %v6480 = vrot.slane %v6458, %v6479
          %v6482 = vunpack.c.l.s4 1966171168
          %v6483 = vunpack.c.0.s8 %v6482
          %v6484 = vlaneseq
          %v6485 = vshrl.u32 %v6484, 7
          %v6486 = vsub.s32 %v6483, %v6485
          %v6487 = vrot.slane %v6459, %v6486
          %v6488 = vcombine.high %v6466, %v6466
          %v6489 = vcombine.high %v6473, %v6473
          %v6490 = vcombine.high %v6480, %v6480
          %v6491 = vcombine.high %v6487, %v6487
          %v6492 = vcombine.high %v6340, %v6340
          %v6494 = vunpack.c.l.s4 1966171168
          %v6495 = vunpack.c.0.s8 %v6494
          %v6496 = vlaneseq
          %v6497 = vshrl.u32 %v6496, 7
          %v6498 = vsub.s32 %v6495, %v6497
          %v6499 = vrot.slane %v6340, %v6498
          %v6501 = vunpack.c.l.s4 1966171168
          %v6502 = vunpack.c.0.s8 %v6501
          %v6503 = vlaneseq
          %v6504 = vshrl.u32 %v6503, 7
          %v6505 = vsub.s32 %v6502, %v6504
          %v6506 = vrot.slane %v6492, %v6505
          %v6507 = vcombine.high %v6499, %v6499
          %v6509 = vunpack.c.l.s4 1966171168
          %v6510 = vunpack.c.0.s8 %v6509
          %v6511 = vlaneseq
          %v6512 = vshrl.u32 %v6511, 7
          %v6513 = vsub.s32 %v6510, %v6512
          %v6514 = vrot.slane %v6499, %v6513
          %v6516 = vunpack.c.l.s4 1966171168
          %v6517 = vunpack.c.0.s8 %v6516
          %v6518 = vlaneseq
          %v6519 = vshrl.u32 %v6518, 7
          %v6520 = vsub.s32 %v6517, %v6519
          %v6521 = vrot.slane %v6506, %v6520
          %v6523 = vunpack.c.l.s4 1966171168
          %v6524 = vunpack.c.0.s8 %v6523
          %v6525 = vlaneseq
          %v6526 = vshrl.u32 %v6525, 7
          %v6527 = vsub.s32 %v6524, %v6526
          %v6528 = vrot.slane %v6507, %v6527
          %v6529 = vcombine.high %v6514, %v6514
          %v6530 = vcombine.high %v6528, %v6528
          %v6560 = vadd.f32 %v5937, %v6368
          %v6561 = vadd.f32 %v5951, %v6382
          %v6562 = vadd.f32 %v5959, %v6390
          %v6563 = vadd.f32 %v5961, %v6392
          %v6564 = vadd.f32 %v5944, %v6375
          %v6565 = vadd.f32 %v5958, %v6389
          %v6566 = vadd.f32 %v5960, %v6391
          %v6567 = vadd.f32 %v5962, %v6393
          %v6568 = vadd.f32 %v5986, %v6417
          %v6569 = vadd.f32 %v6000, %v6431
          %v6570 = vadd.f32 %v6008, %v6439
          %v6571 = vadd.f32 %v6010, %v6441
          %v6572 = vadd.f32 %v5993, %v6424
          %v6573 = vadd.f32 %v6007, %v6438
          %v6574 = vadd.f32 %v6009, %v6440
          %v6575 = vadd.f32 %v6011, %v6442
          %v6576 = vadd.f32 %v6035, %v6466
          %v6577 = vadd.f32 %v6049, %v6480
          %v6578 = vadd.f32 %v6057, %v6488
          %v6579 = vadd.f32 %v6059, %v6490
          %v6580 = vadd.f32 %v6042, %v6473
          %v6581 = vadd.f32 %v6056, %v6487
          %v6582 = vadd.f32 %v6058, %v6489
          %v6583 = vadd.f32 %v6060, %v6491
          %v6584 = vadd.f32 %v6084, %v6514
          %v6585 = vadd.f32 %v6098, %v6528
          %v6586 = vadd.f32 %v6106, %v6529
          %v6587 = vadd.f32 %v6108, %v6530
          %v6588 = vadd.f32 %v6091, %v6521
          %v6589 = vadd.f32 %v6105, %v6368
          %v6590 = vadd.f32 %v6107, %v6382
          %v6591 = vadd.f32 %v6109, %v6390
          %v6592 = vadd.f32 %v6133, %v6392
          %v6593 = vadd.f32 %v6147, %v6375
          %v6594 = vadd.f32 %v6155, %v6389
          %v6595 = vadd.f32 %v6157, %v6391
          %v6596 = vadd.f32 %v6140, %v6393
          %v6597 = vadd.f32 %v6154, %v6417
          %v6598 = vadd.f32 %v6156, %v6431
          %v6599 = vadd.f32 %v6158, %v6439
          %v6600 = vadd.f32 %v6182, %v6441
          %v6601 = vadd.f32 %v6196, %v6424
          %v6602 = vadd.f32 %v6204, %v6438
          %v6603 = vadd.f32 %v6206, %v6440
          %v6604 = vadd.f32 %v6189, %v6442
          %v6605 = vadd.f32 %v6203, %v6466
          %v6606 = vadd.f32 %v6205, %v6480
          %v6607 = vadd.f32 %v6207, %v6488
          %v6608 = vadd.f32 %v6231, %v6490
          %v6609 = vadd.f32 %v6245, %v6473
          %v6610 = vadd.f32 %v6253, %v6487
          %v6611 = vadd.f32 %v6255, %v6489
          %v6612 = vadd.f32 %v6238, %v6491
          %v6613 = vadd.f32 %v6252, %v6514
          %v6614 = vadd.f32 %v6254, %v6528
          %v6615 = vadd.f32 %v6256, %v6529
          %v6616 = vadd.f32 %v6271, %v6530
          %v6617 = vadd.f32 %v6278, %v6521
          %v6618 = vmax.f32 %v6560, 0.0
          %v6619 = vmax.f32 %v6561, 0.0
          %v6620 = vmax.f32 %v6562, 0.0
          %v6621 = vmax.f32 %v6563, 0.0
          %v6622 = vmax.f32 %v6564, 0.0
          %v6623 = vmax.f32 %v6565, 0.0
          %v6624 = vmax.f32 %v6566, 0.0
          %v6625 = vmax.f32 %v6567, 0.0
          %v6626 = vmax.f32 %v6568, 0.0
          %v6627 = vmax.f32 %v6569, 0.0
          %v6628 = vmax.f32 %v6570, 0.0
          %v6629 = vmax.f32 %v6571, 0.0
          %v6630 = vmax.f32 %v6572, 0.0
          %v6631 = vmax.f32 %v6573, 0.0
          %v6632 = vmax.f32 %v6574, 0.0
          %v6633 = vmax.f32 %v6575, 0.0
          %v6634 = vmax.f32 %v6576, 0.0
          %v6635 = vmax.f32 %v6577, 0.0
          %v6636 = vmax.f32 %v6578, 0.0
          %v6637 = vmax.f32 %v6579, 0.0
          %v6638 = vmax.f32 %v6580, 0.0
          %v6639 = vmax.f32 %v6581, 0.0
          %v6640 = vmax.f32 %v6582, 0.0
          %v6641 = vmax.f32 %v6583, 0.0
          %v6642 = vmax.f32 %v6584, 0.0
          %v6643 = vmax.f32 %v6585, 0.0
          %v6644 = vmax.f32 %v6586, 0.0
          %v6645 = vmax.f32 %v6587, 0.0
          %v6646 = vmax.f32 %v6588, 0.0
          %v6647 = vmax.f32 %v6589, 0.0
          %v6648 = vmax.f32 %v6590, 0.0
          %v6649 = vmax.f32 %v6591, 0.0
          %v6650 = vmax.f32 %v6592, 0.0
          %v6651 = vmax.f32 %v6593, 0.0
          %v6652 = vmax.f32 %v6594, 0.0
          %v6653 = vmax.f32 %v6595, 0.0
          %v6654 = vmax.f32 %v6596, 0.0
          %v6655 = vmax.f32 %v6597, 0.0
          %v6656 = vmax.f32 %v6598, 0.0
          %v6657 = vmax.f32 %v6599, 0.0
          %v6658 = vmax.f32 %v6600, 0.0
          %v6659 = vmax.f32 %v6601, 0.0
          %v6660 = vmax.f32 %v6602, 0.0
          %v6661 = vmax.f32 %v6603, 0.0
          %v6662 = vmax.f32 %v6604, 0.0
          %v6663 = vmax.f32 %v6605, 0.0
          %v6664 = vmax.f32 %v6606, 0.0
          %v6665 = vmax.f32 %v6607, 0.0
          %v6666 = vmax.f32 %v6608, 0.0
          %v6667 = vmax.f32 %v6609, 0.0
          %v6668 = vmax.f32 %v6610, 0.0
          %v6669 = vmax.f32 %v6611, 0.0
          %v6670 = vmax.f32 %v6612, 0.0
          %v6671 = vmax.f32 %v6613, 0.0
          %v6672 = vmax.f32 %v6614, 0.0
          %v6673 = vmax.f32 %v6615, 0.0
          %v6674 = vmax.f32 %v6616, 0.0
          %v6675 = vmax.f32 %v6617, 0.0
          %v6734 = vcombine.low %v6618, %v6619
          %v6735 = vcombine.low %v6620, %v6621
          %v6736 = vcombine.low %v6622, %v6623
          %v6737 = vcombine.low %v6624, %v6625
          %v6739 = vunpack.c.l.s4 1966171168
          %v6740 = vunpack.c.0.s8 %v6739
          %v6741 = vlaneseq
          %v6742 = vshrl.u32 %v6741, 7
          %v6743 = vsub.s32 %v6740, %v6742
          %v6744 = vrot.slane %v6734, %v6743
          %v6746 = vunpack.c.l.s4 1966171168
          %v6747 = vunpack.c.0.s8 %v6746
          %v6748 = vlaneseq
          %v6749 = vshrl.u32 %v6748, 7
          %v6750 = vsub.s32 %v6747, %v6749
          %v6751 = vrot.slane %v6735, %v6750
          %v6753 = vunpack.c.l.s4 1966171168
          %v6754 = vunpack.c.0.s8 %v6753
          %v6755 = vlaneseq
          %v6756 = vshrl.u32 %v6755, 7
          %v6757 = vsub.s32 %v6754, %v6756
          %v6758 = vrot.slane %v6736, %v6757
          %v6760 = vunpack.c.l.s4 1966171168
          %v6761 = vunpack.c.0.s8 %v6760
          %v6762 = vlaneseq
          %v6763 = vshrl.u32 %v6762, 7
          %v6764 = vsub.s32 %v6761, %v6763
          %v6765 = vrot.slane %v6737, %v6764
          %v6766 = vcombine.low %v6744, %v6751
          %v6767 = vcombine.low %v6758, %v6765
          %v6769 = vunpack.c.l.s4 1966171168
          %v6770 = vunpack.c.0.s8 %v6769
          %v6771 = vlaneseq
          %v6772 = vshrl.u32 %v6771, 7
          %v6773 = vsub.s32 %v6770, %v6772
          %v6774 = vrot.slane %v6766, %v6773
          %v6776 = vunpack.c.l.s4 1966171168
          %v6777 = vunpack.c.0.s8 %v6776
          %v6778 = vlaneseq
          %v6779 = vshrl.u32 %v6778, 7
          %v6780 = vsub.s32 %v6777, %v6779
          %v6781 = vrot.slane %v6767, %v6780
          %v6782 = vcombine.low %v6774, %v6781
          %v6783 = vcombine.low %v6626, %v6627
          %v6784 = vcombine.low %v6628, %v6629
          %v6785 = vcombine.low %v6630, %v6631
          %v6786 = vcombine.low %v6632, %v6633
          %v6788 = vunpack.c.l.s4 1966171168
          %v6789 = vunpack.c.0.s8 %v6788
          %v6790 = vlaneseq
          %v6791 = vshrl.u32 %v6790, 7
          %v6792 = vsub.s32 %v6789, %v6791
          %v6793 = vrot.slane %v6783, %v6792
          %v6795 = vunpack.c.l.s4 1966171168
          %v6796 = vunpack.c.0.s8 %v6795
          %v6797 = vlaneseq
          %v6798 = vshrl.u32 %v6797, 7
          %v6799 = vsub.s32 %v6796, %v6798
          %v6800 = vrot.slane %v6784, %v6799
          %v6802 = vunpack.c.l.s4 1966171168
          %v6803 = vunpack.c.0.s8 %v6802
          %v6804 = vlaneseq
          %v6805 = vshrl.u32 %v6804, 7
          %v6806 = vsub.s32 %v6803, %v6805
          %v6807 = vrot.slane %v6785, %v6806
          %v6809 = vunpack.c.l.s4 1966171168
          %v6810 = vunpack.c.0.s8 %v6809
          %v6811 = vlaneseq
          %v6812 = vshrl.u32 %v6811, 7
          %v6813 = vsub.s32 %v6810, %v6812
          %v6814 = vrot.slane %v6786, %v6813
          %v6815 = vcombine.low %v6793, %v6800
          %v6816 = vcombine.low %v6807, %v6814
          %v6818 = vunpack.c.l.s4 1966171168
          %v6819 = vunpack.c.0.s8 %v6818
          %v6820 = vlaneseq
          %v6821 = vshrl.u32 %v6820, 7
          %v6822 = vsub.s32 %v6819, %v6821
          %v6823 = vrot.slane %v6815, %v6822
          %v6825 = vunpack.c.l.s4 1966171168
          %v6826 = vunpack.c.0.s8 %v6825
          %v6827 = vlaneseq
          %v6828 = vshrl.u32 %v6827, 7
          %v6829 = vsub.s32 %v6826, %v6828
          %v6830 = vrot.slane %v6816, %v6829
          %v6831 = vcombine.low %v6823, %v6830
          %v6832 = vcombine.low %v6634, %v6635
          %v6833 = vcombine.low %v6636, %v6637
          %v6834 = vcombine.low %v6638, %v6639
          %v6835 = vcombine.low %v6640, %v6641
          %v6837 = vunpack.c.l.s4 1966171168
          %v6838 = vunpack.c.0.s8 %v6837
          %v6839 = vlaneseq
          %v6840 = vshrl.u32 %v6839, 7
          %v6841 = vsub.s32 %v6838, %v6840
          %v6842 = vrot.slane %v6832, %v6841
          %v6844 = vunpack.c.l.s4 1966171168
          %v6845 = vunpack.c.0.s8 %v6844
          %v6846 = vlaneseq
          %v6847 = vshrl.u32 %v6846, 7
          %v6848 = vsub.s32 %v6845, %v6847
          %v6849 = vrot.slane %v6833, %v6848
          %v6851 = vunpack.c.l.s4 1966171168
          %v6852 = vunpack.c.0.s8 %v6851
          %v6853 = vlaneseq
          %v6854 = vshrl.u32 %v6853, 7
          %v6855 = vsub.s32 %v6852, %v6854
          %v6856 = vrot.slane %v6834, %v6855
          %v6858 = vunpack.c.l.s4 1966171168
          %v6859 = vunpack.c.0.s8 %v6858
          %v6860 = vlaneseq
          %v6861 = vshrl.u32 %v6860, 7
          %v6862 = vsub.s32 %v6859, %v6861
          %v6863 = vrot.slane %v6835, %v6862
          %v6864 = vcombine.low %v6842, %v6849
          %v6865 = vcombine.low %v6856, %v6863
          %v6867 = vunpack.c.l.s4 1966171168
          %v6868 = vunpack.c.0.s8 %v6867
          %v6869 = vlaneseq
          %v6870 = vshrl.u32 %v6869, 7
          %v6871 = vsub.s32 %v6868, %v6870
          %v6872 = vrot.slane %v6864, %v6871
          %v6874 = vunpack.c.l.s4 1966171168
          %v6875 = vunpack.c.0.s8 %v6874
          %v6876 = vlaneseq
          %v6877 = vshrl.u32 %v6876, 7
          %v6878 = vsub.s32 %v6875, %v6877
          %v6879 = vrot.slane %v6865, %v6878
          %v6880 = vcombine.low %v6872, %v6879
          %v6881 = vcombine.low %v6642, %v6643
          %v6882 = vcombine.low %v6644, %v6645
          %v6884 = vunpack.c.l.s4 1966171168
          %v6885 = vunpack.c.0.s8 %v6884
          %v6886 = vlaneseq
          %v6887 = vshrl.u32 %v6886, 7
          %v6888 = vsub.s32 %v6885, %v6887
          %v6889 = vrot.slane %v6881, %v6888
          %v6891 = vunpack.c.l.s4 1966171168
          %v6892 = vunpack.c.0.s8 %v6891
          %v6893 = vlaneseq
          %v6894 = vshrl.u32 %v6893, 7
          %v6895 = vsub.s32 %v6892, %v6894
          %v6896 = vrot.slane %v6882, %v6895
          %v6898 = vunpack.c.l.s4 1966171168
          %v6899 = vunpack.c.0.s8 %v6898
          %v6900 = vlaneseq
          %v6901 = vshrl.u32 %v6900, 7
          %v6902 = vsub.s32 %v6899, %v6901
          %v6903 = vrot.slane %v6646, %v6902
          %v6904 = vcombine.low %v6889, %v6896
          %v6906 = vunpack.c.l.s4 1966171168
          %v6907 = vunpack.c.0.s8 %v6906
          %v6908 = vlaneseq
          %v6909 = vshrl.u32 %v6908, 7
          %v6910 = vsub.s32 %v6907, %v6909
          %v6911 = vrot.slane %v6904, %v6910
          %v6913 = vunpack.c.l.s4 1966171168
          %v6914 = vunpack.c.0.s8 %v6913
          %v6915 = vlaneseq
          %v6916 = vshrl.u32 %v6915, 7
          %v6917 = vsub.s32 %v6914, %v6916
          %v6918 = vrot.slane %v6903, %v6917
          %v6919 = vcombine.low %v6911, %v6918
          %v6920 = vcombine.low %v6647, %v6648
          %v6921 = vcombine.low %v6649, %v6650
          %v6922 = vcombine.low %v6651, %v6652
          %v6923 = vcombine.low %v6653, %v6654
          %v6925 = vunpack.c.l.s4 1966171168
          %v6926 = vunpack.c.0.s8 %v6925
          %v6927 = vlaneseq
          %v6928 = vshrl.u32 %v6927, 7
          %v6929 = vsub.s32 %v6926, %v6928
          %v6930 = vrot.slane %v6920, %v6929
          %v6932 = vunpack.c.l.s4 1966171168
          %v6933 = vunpack.c.0.s8 %v6932
          %v6934 = vlaneseq
          %v6935 = vshrl.u32 %v6934, 7
          %v6936 = vsub.s32 %v6933, %v6935
          %v6937 = vrot.slane %v6921, %v6936
          %v6939 = vunpack.c.l.s4 1966171168
          %v6940 = vunpack.c.0.s8 %v6939
          %v6941 = vlaneseq
          %v6942 = vshrl.u32 %v6941, 7
          %v6943 = vsub.s32 %v6940, %v6942
          %v6944 = vrot.slane %v6922, %v6943
          %v6946 = vunpack.c.l.s4 1966171168
          %v6947 = vunpack.c.0.s8 %v6946
          %v6948 = vlaneseq
          %v6949 = vshrl.u32 %v6948, 7
          %v6950 = vsub.s32 %v6947, %v6949
          %v6951 = vrot.slane %v6923, %v6950
          %v6952 = vcombine.low %v6930, %v6937
          %v6953 = vcombine.low %v6944, %v6951
          %v6955 = vunpack.c.l.s4 1966171168
          %v6956 = vunpack.c.0.s8 %v6955
          %v6957 = vlaneseq
          %v6958 = vshrl.u32 %v6957, 7
          %v6959 = vsub.s32 %v6956, %v6958
          %v6960 = vrot.slane %v6952, %v6959
          %v6962 = vunpack.c.l.s4 1966171168
          %v6963 = vunpack.c.0.s8 %v6962
          %v6964 = vlaneseq
          %v6965 = vshrl.u32 %v6964, 7
          %v6966 = vsub.s32 %v6963, %v6965
          %v6967 = vrot.slane %v6953, %v6966
          %v6968 = vcombine.low %v6960, %v6967
          %v6969 = vcombine.low %v6655, %v6656
          %v6970 = vcombine.low %v6657, %v6658
          %v6971 = vcombine.low %v6659, %v6660
          %v6972 = vcombine.low %v6661, %v6662
          %v6974 = vunpack.c.l.s4 1966171168
          %v6975 = vunpack.c.0.s8 %v6974
          %v6976 = vlaneseq
          %v6977 = vshrl.u32 %v6976, 7
          %v6978 = vsub.s32 %v6975, %v6977
          %v6979 = vrot.slane %v6969, %v6978
          %v6981 = vunpack.c.l.s4 1966171168
          %v6982 = vunpack.c.0.s8 %v6981
          %v6983 = vlaneseq
          %v6984 = vshrl.u32 %v6983, 7
          %v6985 = vsub.s32 %v6982, %v6984
          %v6986 = vrot.slane %v6970, %v6985
          %v6988 = vunpack.c.l.s4 1966171168
          %v6989 = vunpack.c.0.s8 %v6988
          %v6990 = vlaneseq
          %v6991 = vshrl.u32 %v6990, 7
          %v6992 = vsub.s32 %v6989, %v6991
          %v6993 = vrot.slane %v6971, %v6992
          %v6995 = vunpack.c.l.s4 1966171168
          %v6996 = vunpack.c.0.s8 %v6995
          %v6997 = vlaneseq
          %v6998 = vshrl.u32 %v6997, 7
          %v6999 = vsub.s32 %v6996, %v6998
          %v7000 = vrot.slane %v6972, %v6999
          %v7001 = vcombine.low %v6979, %v6986
          %v7002 = vcombine.low %v6993, %v7000
          %v7004 = vunpack.c.l.s4 1966171168
          %v7005 = vunpack.c.0.s8 %v7004
          %v7006 = vlaneseq
          %v7007 = vshrl.u32 %v7006, 7
          %v7008 = vsub.s32 %v7005, %v7007
          %v7009 = vrot.slane %v7001, %v7008
          %v7011 = vunpack.c.l.s4 1966171168
          %v7012 = vunpack.c.0.s8 %v7011
          %v7013 = vlaneseq
          %v7014 = vshrl.u32 %v7013, 7
          %v7015 = vsub.s32 %v7012, %v7014
          %v7016 = vrot.slane %v7002, %v7015
          %v7017 = vcombine.low %v7009, %v7016
          %v7018 = vcombine.low %v6663, %v6664
          %v7019 = vcombine.low %v6665, %v6666
          %v7020 = vcombine.low %v6667, %v6668
          %v7021 = vcombine.low %v6669, %v6670
          %v7023 = vunpack.c.l.s4 1966171168
          %v7024 = vunpack.c.0.s8 %v7023
          %v7025 = vlaneseq
          %v7026 = vshrl.u32 %v7025, 7
          %v7027 = vsub.s32 %v7024, %v7026
          %v7028 = vrot.slane %v7018, %v7027
          %v7030 = vunpack.c.l.s4 1966171168
          %v7031 = vunpack.c.0.s8 %v7030
          %v7032 = vlaneseq
          %v7033 = vshrl.u32 %v7032, 7
          %v7034 = vsub.s32 %v7031, %v7033
          %v7035 = vrot.slane %v7019, %v7034
          %v7037 = vunpack.c.l.s4 1966171168
          %v7038 = vunpack.c.0.s8 %v7037
          %v7039 = vlaneseq
          %v7040 = vshrl.u32 %v7039, 7
          %v7041 = vsub.s32 %v7038, %v7040
          %v7042 = vrot.slane %v7020, %v7041
          %v7044 = vunpack.c.l.s4 1966171168
          %v7045 = vunpack.c.0.s8 %v7044
          %v7046 = vlaneseq
          %v7047 = vshrl.u32 %v7046, 7
          %v7048 = vsub.s32 %v7045, %v7047
          %v7049 = vrot.slane %v7021, %v7048
          %v7050 = vcombine.low %v7028, %v7035
          %v7051 = vcombine.low %v7042, %v7049
          %v7053 = vunpack.c.l.s4 1966171168
          %v7054 = vunpack.c.0.s8 %v7053
          %v7055 = vlaneseq
          %v7056 = vshrl.u32 %v7055, 7
          %v7057 = vsub.s32 %v7054, %v7056
          %v7058 = vrot.slane %v7050, %v7057
          %v7060 = vunpack.c.l.s4 1966171168
          %v7061 = vunpack.c.0.s8 %v7060
          %v7062 = vlaneseq
          %v7063 = vshrl.u32 %v7062, 7
          %v7064 = vsub.s32 %v7061, %v7063
          %v7065 = vrot.slane %v7051, %v7064
          %v7066 = vcombine.low %v7058, %v7065
          %v7067 = vcombine.low %v6671, %v6672
          %v7068 = vcombine.low %v6673, %v6674
          %v7070 = vunpack.c.l.s4 1966171168
          %v7071 = vunpack.c.0.s8 %v7070
          %v7072 = vlaneseq
          %v7073 = vshrl.u32 %v7072, 7
          %v7074 = vsub.s32 %v7071, %v7073
          %v7075 = vrot.slane %v7067, %v7074
          %v7077 = vunpack.c.l.s4 1966171168
          %v7078 = vunpack.c.0.s8 %v7077
          %v7079 = vlaneseq
          %v7080 = vshrl.u32 %v7079, 7
          %v7081 = vsub.s32 %v7078, %v7080
          %v7082 = vrot.slane %v7068, %v7081
          %v7084 = vunpack.c.l.s4 1966171168
          %v7085 = vunpack.c.0.s8 %v7084
          %v7086 = vlaneseq
          %v7087 = vshrl.u32 %v7086, 7
          %v7088 = vsub.s32 %v7085, %v7087
          %v7089 = vrot.slane %v6675, %v7088
          %v7090 = vcombine.low %v7075, %v7082
          %v7092 = vunpack.c.l.s4 1966171168
          %v7093 = vunpack.c.0.s8 %v7092
          %v7094 = vlaneseq
          %v7095 = vshrl.u32 %v7094, 7
          %v7096 = vsub.s32 %v7093, %v7095
          %v7097 = vrot.slane %v7090, %v7096
          %v7099 = vunpack.c.l.s4 1966171168
          %v7100 = vunpack.c.0.s8 %v7099
          %v7101 = vlaneseq
          %v7102 = vshrl.u32 %v7101, 7
          %v7103 = vsub.s32 %v7100, %v7102
          %v7104 = vrot.slane %v7089, %v7103
          %v7105 = vcombine.low %v7097, %v7104
          %vm7114 = vcmask 261120
          %v7115 = vsel %vm7114, %v6782, -inf
          %v7116 = vsel %vm7114, %v6831, -inf
          %v7117 = vsel %vm7114, %v6880, -inf
          %v7118 = vmax.f32 %v7115, %v7117
          %vm7119 = vcmask 258048
          %v7120 = vsel %vm7119, %v6919, -inf
          %v7121 = vmax.f32 %v7116, %v7120
          %v7122 = vmax.f32 %v7118, %v7121
          %v7123 = vrot.slane %v7122, 4
          %v7124 = vmax.f32 %v7122, %v7123
          %v7125 = vrot.slane %v7124, 2
          %v7126 = vmax.f32 %v7124, %v7125
          %v7127 = vrot.slane %v7126, 1
          %v7128 = vmax.f32 %v7126, %v7127
          %v7129 = vsel %vm7114, %v6968, -inf
          %v7130 = vsel %vm7114, %v7017, -inf
          %v7131 = vsel %vm7114, %v7066, -inf
          %v7132 = vmax.f32 %v7129, %v7131
          %v7133 = vsel %vm7119, %v7105, -inf
          %v7134 = vmax.f32 %v7130, %v7133
          %v7135 = vmax.f32 %v7132, %v7134
          %v7136 = vrot.slane %v7135, 4
          %v7137 = vmax.f32 %v7135, %v7136
          %v7138 = vrot.slane %v7137, 2
          %v7139 = vmax.f32 %v7137, %v7138
          %v7140 = vrot.slane %v7139, 1
          %v7141 = vmax.f32 %v7139, %v7140
          %v7142 = vld [vmem:[%s10] sm:$0x1f]
          %v7143 = vmul.f32 %v4749, %v7142
          %v7144 = vmul.f32 %v4758, %v7142
          %v7145 = vsel %vm4740, %v7143, 0.0
          %7146 = vadd.xlane.f32.xlu0 %v7145
          %v7147 = vpop.xlane.xlu0 %7146
          %v7148 = vsel %vm4740, %v7144, 0.0
          %7149 = vadd.xlane.f32.xlu0 %v7148
          %v7150 = vpop.xlane.xlu0 %7149
          %v7151 = vld [vmem:[%s11] sm:$0x1f]
          %v7152 = vmul.f32 %v4773, %v7151
          %v7153 = vmul.f32 %v4782, %v7151
          %v7154 = vsel %vm4740, %v7152, 0.0
          %7155 = vadd.xlane.f32.xlu0 %v7154
          %v7156 = vpop.xlane.xlu0 %7155
          %v7157 = vsel %vm4740, %v7153, 0.0
          %7158 = vadd.xlane.f32.xlu0 %v7157
          %v7159 = vpop.xlane.xlu0 %7158
          %v7160 = vadd.f32 %v7147, %v7156
          %v7161 = vadd.f32 %v7150, %v7159
          %v7162 = vld [vmem:[%s12] sm:$0x1f]
          %v7163 = vmul.f32 %v7128, %v7162
          %v7164 = vmul.f32 %v7141, %v7162
          %v7165 = vsel %vm7119, %v7163, 0.0
          %7166 = vadd.xlane.f32.xlu0 %v7165
          %v7167 = vpop.xlane.xlu0 %7166
          %v7168 = vsel %vm7119, %v7164, 0.0
          %7169 = vadd.xlane.f32.xlu0 %v7168
          %v7170 = vpop.xlane.xlu0 %7169
          %v7171 = vadd.f32 %v7160, %v7167
          %v7172 = vadd.f32 %v7161, %v7170
          %v7173 = vld [vmem:[%s13] sm:$0x1]
          %v7175 = vlaneseq
          %v7176 = vshrl.u32 %v7175, 7
          %v7177 = vsub.s32 0, %v7176
          %v7178 = vrot.slane %v7173, %v7177
          %7180 = vbcast.lane.b32.xlu0 %v7178, 256
          %v7181 = vpop.permute.xlu0 %7180
          %v7183 = vadd.f32 %v7171, %v7181
          %v7184 = vadd.f32 %v7172, %v7181
          %7187 = vset.pattern.permute.xlu0 0
          %7188 = vperm.xlu0 %7187, %v7183
          %v7189 = vpop.permute.xlu0 %7188
          %7190 = vset.pattern.permute.xlu0 0
          %7191 = vperm.xlu0 %7190, %v7184
          %v7192 = vpop.permute.xlu0 %7191
          %v7193 = vlaneseq
          %v7194 = vand.u32 %v7193, 127
          %v7195 = vlaneseq
          %v7196 = vshrl.u32 %v7195, 7
          %v7197 = vsub.s32 %v7194, %v7196
          %v7198 = vrot.slane %v7189, %v7197
          %v7199 = vlaneseq
          %v7200 = vshrl.u32 %v7199, 7
          %v7201 = vsub.s32 %v7194, %v7200
          %v7202 = vrot.slane %v7192, %v7201
          %vm7203 = vcmask 1041409
          %v7204 = vsel %vm7203, %v7202, %v7198
          %vm7206 = vcmask 33792
          %v7207 = vsel %vm7206, %v7204, -inf
          %7208 = vmax.xlane.f32.xlu0 %v7207
          %v7209 = vpop.xlane.xlu0 %7208
          %v7211 = vlaneseq
          %v7212 = vshrl.u32 %v7211, 7
          %v7213 = vsub.s32 0, %v7212
          %v7214 = vrot.slane %v7209, %v7213
          %v7215 = vlaneseq
          %v7216 = vshrl.u32 %v7215, 7
          %v7217 = vsub.s32 1, %v7216
          %v7218 = vrot.slane %v7209, %v7217
          %v7221 = vsub.f32 %v7183, %v7214
          %v7222 = vsub.f32 %v7184, %v7218
          %v7223 = vmul.f32 %v7221, 1.442695
          %v7224 = vpow.pop %v7223
          %v7225 = vmul.f32 %v7222, 1.442695
          %v7226 = vpow.pop %v7225
          %7229 = vset.pattern.permute.xlu0 0
          %7230 = vperm.xlu0 %7229, %v7224
          %v7231 = vpop.permute.xlu0 %7230
          %7232 = vset.pattern.permute.xlu0 0
          %7233 = vperm.xlu0 %7232, %v7226
          %v7234 = vpop.permute.xlu0 %7233
          %v7235 = vlaneseq
          %v7236 = vshrl.u32 %v7235, 7
          %v7237 = vsub.s32 %v7194, %v7236
          %v7238 = vrot.slane %v7231, %v7237
          %v7239 = vlaneseq
          %v7240 = vshrl.u32 %v7239, 7
          %v7241 = vsub.s32 %v7194, %v7240
          %v7242 = vrot.slane %v7234, %v7241
          %v7243 = vsel %vm7203, %v7242, %v7238
          %v7245 = vsel %vm7206, %v7243, 0.0
          %7246 = vadd.xlane.f32.xlu0 %v7245
          %v7247 = vpop.xlane.xlu0 %7246
          %v7248 = vlog2.pop %v7247
          %v7249 = vmul.f32 %v7248, 0.6931472
          %v7251 = vlaneseq
          %v7252 = vshrl.u32 %v7251, 7
          %v7253 = vsub.s32 0, %v7252
          %v7254 = vrot.slane %v7249, %v7253
          %v7255 = vlaneseq
          %v7256 = vshrl.u32 %v7255, 7
          %v7257 = vsub.s32 1, %v7256
          %v7258 = vrot.slane %v7249, %v7257
          %v7261 = vsub.f32 %v7221, %v7254
          %v7262 = vsub.f32 %v7222, %v7258
          %7265 = vset.pattern.permute.xlu0 0
          %7266 = vperm.xlu0 %7265, %v7261
          %v7267 = vpop.permute.xlu0 %7266
          %7268 = vset.pattern.permute.xlu0 0
          %7269 = vperm.xlu0 %7268, %v7262
          %v7270 = vpop.permute.xlu0 %7269
          %v7271 = vlaneseq
          %v7272 = vshrl.u32 %v7271, 7
          %v7273 = vsub.s32 %v7194, %v7272
          %v7274 = vrot.slane %v7267, %v7273
          %v7275 = vlaneseq
          %v7276 = vshrl.u32 %v7275, 7
          %v7277 = vsub.s32 %v7194, %v7276
          %v7278 = vrot.slane %v7270, %v7277
          %v7279 = vsel %vm7203, %v7278, %v7274
          %7281 = vst.msk [vmem:[#allocation6] sm:$0x3] %vm7206, %v7279
        $region136: #{two_stream_forward.1} parent=119 // pred_fallthru
          _
        // Predicated region
        $region137: #{two_stream_forward.1} parent=119 // pred_check
          %p7282 = pneg %p353
        $region138: #{two_stream_forward.1} parent=119 // pred_check_branch
          %7284 = sbr.rel (%p7282) target = $region140
        $region139: #{two_stream_forward.1} parent=119 // pred_region
          %s7286 = ssub.s32 32, 32
          %7287 = vsyncadd [#allocation7], %s7286
          %s7289 = sshll.u32 [#allocation6], 4
          %s7290 = int_to_ptr.vmem [resolvable:$true] %s7289
          %7292 = dma.vmem_to_hbm [thread:$0]  %s7290, 32, %s14, [#allocation7]
        $region140: #{two_stream_forward.1} parent=119 // pred_fallthru
          _
        // Predicated region
        $region141: #{two_stream_forward.1} parent=119 // pred_check
          %p7293 = pneg %p353
        $region142: #{two_stream_forward.1} parent=119 // pred_check_branch
          %7295 = sbr.rel (%p7293) target = $region144
        $region143: #{two_stream_forward.1} parent=119 // pred_region
          %7296 = dma.done [#allocation7], 32
        $region144: #{two_stream_forward.1} parent=119 // pred_fallthru
          _
      $region120: #{two_stream_forward.1} parent=5 // pred_fallthru
        _
      %p7297 = scmp.le.s32.totalorder 2, %s21
      // Predicated region
      $region145: #{two_stream_forward.1} parent=5 // pred_check
        %p7298 = pneg %p7297
      $region146: #{two_stream_forward.1} parent=5 // pred_check_branch
        %7300 = sbr.rel (%p7298) target = $region148
      $region147: #{two_stream_forward.1} parent=5 // pred_region
        %s7301 = ssub.s32 %s21, 2
      $region148: #{two_stream_forward.1} parent=5 // pred_fallthru
        _
    $region6: #{two_stream_forward.1} parent=1 // loop_footer
      %s25 = sadd.s32 1, %s21
    $region7: #{two_stream_forward.1} parent=1 // loop_footer_branch
      %20 = sbr.rel target = $region3
    $region8: #{two_stream_forward.1} parent=1 // loop_exit
      _
    %7302 = vsyncpa [#allocation7], 1
    %s7303 = scalar_lea.sflag [#allocation7], 1
    %7304 = vsyncpa %s7303, 1

</llo_original>
